<compile_context>
chip_gen: v7x
topology: tpu7x:2x2x1
jax: 0.10.0
libtpu: 0.0.40
codegen_flags: <defaults>
</compile_context>

<pallas_src>
import functools
import math

import jax
import jax.numpy as jnp
from jax.experimental import pallas as pl
from jax.experimental.pallas import tpu as pltpu

# ----- stand-in for config.get_config() (small, self-consistent shapes) -----
CONFIG = dict(
    window_size=4,
    d_model=32,
    seq_len=8,
    number_of_heads=4,
    number_of_layers=2,
    d_att_weigh=32,   # total attention width; per-head dim = 32 / 4 = 8
    d_FFN=64,
    dropout=0.0,      # eval mode -> identity
)
VOCAB_SIZE = 32
LANE = 128
NEG_INF = -1e30       # mask fill; stays f32 on purpose


# ---------------------------- fused Pallas kernel ----------------------------

def _layernorm(x, g, b, eps=1e-5):
    mean = jnp.mean(x, axis=-1, keepdims=True)
    var = jnp.mean((x - mean) ** 2, axis=-1, keepdims=True)
    return (x - mean) * jax.lax.rsqrt(var + eps) * g + b


def _decoder_kernel(*refs, n_heads, d_head, n_layers, tile_b, seq_len, window,
                    with_loss):
    if with_loss:
        (idx_ref, tok_ref, pos_ref,
         ln1_g, ln1_b, w_qkv, b_qkv, wo, bo, ln2_g, ln2_b, w1, b1, w2, b2,
         lnf_g, lnf_b, w_out, b_out, labels_ref,
         logits_ref, loss_ref) = refs
    else:
        (idx_ref, tok_ref, pos_ref,
         ln1_g, ln1_b, w_qkv, b_qkv, wo, bo, ln2_g, ln2_b, w1, b1, w2, b2,
         lnf_g, lnf_b, w_out, b_out,
         logits_ref) = refs
        labels_ref = None
        loss_ref = None

    t = seq_len
    n = tile_b * t
    d_att = n_heads * d_head
    vocab = tok_ref.shape[0]

    # ---- fused embedding lookup: one-hot matmul, no gather ----
    col_v = jax.lax.broadcasted_iota(jnp.int32, (n, vocab), 1)
    onehot = (col_v == idx_ref[...]).astype(jnp.float32)
    x = jnp.dot(onehot, tok_ref[...], preferred_element_type=jnp.float32)
    pos = pos_ref[...]
    if tile_b > 1:
        pos = jnp.concatenate([pos] * tile_b, axis=0)
    x = x + pos                                           # (n, D) f32 residual

    # ---- sliding-window causal mask as additive bias (built in-kernel) ----
    row = jax.lax.broadcasted_iota(jnp.int32, (t, t), 0)
    colt = jax.lax.broadcasted_iota(jnp.int32, (t, t), 1)
    allowed = (colt <= row) & ((row - colt) < window)
    bias = jnp.where(allowed, 0.0, NEG_INF).astype(jnp.float32)

    for l in range(n_layers):                             # weights VMEM-resident
        # ----- attention sublayer: pre-LN, fused QKV, heads folded into W_O --
        hn = _layernorm(x, ln1_g[l], ln1_b[l])
        qkv = jnp.dot(hn.astype(jnp.bfloat16), w_qkv[l],
                      preferred_element_type=jnp.float32) + b_qkv[l]
        wo_l = wo[l]
        attn_rows = []
        for b in range(tile_b):                           # static unroll (<=2)
            r0 = b * t
            q_b = qkv[r0:r0 + t, 0 * d_att:1 * d_att]
            k_b = qkv[r0:r0 + t, 1 * d_att:2 * d_att]
            v_b = qkv[r0:r0 + t, 2 * d_att:3 * d_att]
            acc = None
            for h in range(n_heads):                      # static unroll (4)
                c0 = h * d_head
                qh = q_b[:, c0:c0 + d_head]
                kh = k_b[:, c0:c0 + d_head]
                vh = v_b[:, c0:c0 + d_head]
                # 1/sqrt(d_head) already folded into the Q weights/bias.
                s = jax.lax.dot_general(
                    qh, kh, (((1,), (1,)), ((), ())),
                    preferred_element_type=jnp.float32) + bias
                m = jnp.max(s, axis=-1, keepdims=True)
                p = jnp.exp(s - m)
                denom = jnp.sum(p, axis=-1, keepdims=True)
                oh = jnp.dot(p, vh, preferred_element_type=jnp.float32)
                oh = oh * pl.reciprocal(denom, approx=True)
                part = jnp.dot(oh.astype(jnp.bfloat16),
                               wo_l[c0:c0 + d_head, :],     # sublane slice of W_O
                               preferred_element_type=jnp.float32)
                acc = part if acc is None else acc + part
            attn_rows.append(acc)
        attn = attn_rows[0] if tile_b == 1 else jnp.concatenate(attn_rows, axis=0)
        x = x + attn + bo[l]

        # ----- feed-forward sublayer -----
        h2 = _layernorm(x, ln2_g[l], ln2_b[l])
        ff = jnp.dot(h2.astype(jnp.bfloat16), w1[l],
                     preferred_element_type=jnp.float32) + b1[l]
        ff = jnp.maximum(ff, 0.0)
        ff = jnp.dot(ff.astype(jnp.bfloat16), w2[l],
                     preferred_element_type=jnp.float32) + b2[l]
        x = x + ff

    # ---- final LayerNorm + vocab projection (lane-padded to 128) ----
    xf = _layernorm(x, lnf_g[...], lnf_b[...])
    logits = jnp.dot(xf.astype(jnp.bfloat16), w_out[...],
                     preferred_element_type=jnp.float32) + b_out[...]
    logits_ref[...] = logits.astype(logits_ref.dtype)

    if with_loss:
        # padded columns carry -1e30 bias -> contribute 0 to the logsumexp
        mx = jnp.max(logits, axis=-1, keepdims=True)
        lse = jnp.log(jnp.sum(jnp.exp(logits - mx), axis=-1, keepdims=True)) + mx
        col_l = jax.lax.broadcasted_iota(jnp.int32, logits.shape, 1)
        onehot_l = (col_l == labels_ref[...]).astype(jnp.float32)
        true_logit = jnp.sum(logits * onehot_l, axis=-1, keepdims=True)
        loss_ref[...] = jnp.sum(lse - true_logit, keepdims=True)


# ---------------------------- model glue ----------------------------

def _round_up(x, m):
    return ((x + m - 1) // m) * m


def init_params(key, vocab_size, cfg):
    """Builds kernel-ready parameters (bf16 matmul weights, pre-scaled Q,
    lane-padded output projection)."""
    d = cfg["d_model"]
    t = cfg["seq_len"]
    da = cfg["d_att_weigh"]
    dff = cfg["d_FFN"]
    n_layers = cfg["number_of_layers"]
    n_heads = cfg["number_of_heads"]
    d_head = da // n_heads
    vpad = _round_up(max(vocab_size, LANE), LANE)
    std = 0.02
    k_tok, k_pos, k_qkv, k_wo, k_w1, k_w2, k_out = jax.random.split(key, 7)

    def nrm(k, shape):
        return jax.random.normal(k, shape, jnp.float32) * std

    # fused Q|K|V with 1/sqrt(d_head) folded into the Q columns
    w_qkv = nrm(k_qkv, (n_layers, d, 3 * da))
    q_scale = 1.0 / math.sqrt(d_head)
    w_qkv = w_qkv.at[:, :, :da].multiply(q_scale)
    b_qkv = jnp.zeros((n_layers, 1, 3 * da), jnp.float32)   # zeros -> scale no-op

    # lane-padded vocab projection: zero weight columns, -inf bias columns
    w_out = jnp.zeros((d, vpad), jnp.float32).at[:, :vocab_size].set(
        nrm(k_out, (d, vocab_size)))
    b_out = jnp.full((1, vpad), NEG_INF, jnp.float32).at[:, :vocab_size].set(0.0)

    return {
        "tok_emb": nrm(k_tok, (vocab_size, d)),
        "pos_emb": nrm(k_pos, (t, d)),
        "ln_f_g": jnp.ones((1, d), jnp.float32),
        "ln_f_b": jnp.zeros((1, d), jnp.float32),
        "w_out": w_out.astype(jnp.bfloat16),
        "b_out": b_out,
        "blocks": {                       # per-layer weights stacked on axis 0
            "ln1_g": jnp.ones((n_layers, 1, d), jnp.float32),
            "ln1_b": jnp.zeros((n_layers, 1, d), jnp.float32),
            "w_qkv": w_qkv.astype(jnp.bfloat16),
            "b_qkv": b_qkv,
            "wo": nrm(k_wo, (n_layers, da, d)).astype(jnp.bfloat16),
            "bo": jnp.zeros((n_layers, 1, d), jnp.float32),
            "ln2_g": jnp.ones((n_layers, 1, d), jnp.float32),
            "ln2_b": jnp.zeros((n_layers, 1, d), jnp.float32),
            "w1": nrm(k_w1, (n_layers, d, dff)).astype(jnp.bfloat16),
            "b1": jnp.zeros((n_layers, 1, dff), jnp.float32),
            "w2": nrm(k_w2, (n_layers, dff, d)).astype(jnp.bfloat16),
            "b2": jnp.zeros((n_layers, 1, d), jnp.float32),
        },
    }


def _num_parallel_tiles(batch):
    """>1 only on v7x (2 TensorCores per chip); 1 on single-TC v5e/v6e."""
    try:
        kind = jax.devices()[0].device_kind.lower()
    except Exception:
        return 1
    if ("v7" in kind or "7x" in kind) and batch >= 2 and batch % 2 == 0:
        return 2
    return 1


def decoder_forward(params, idx, ground_truth=None, cfg=CONFIG,
                    vocab_size=VOCAB_SIZE):
    b, t = idx.shape
    d = cfg["d_model"]
    n_heads = cfg["number_of_heads"]
    d_head = cfg["d_att_weigh"] // n_heads
    d_att = cfg["d_att_weigh"]
    d_ffn = cfg["d_FFN"]
    n_layers = cfg["number_of_layers"]
    window = cfg["window_size"]
    vpad = params["w_out"].shape[1]
    with_loss = ground_truth is not None

    num_tiles = _num_parallel_tiles(b)
    tile_b = b // num_tiles
    n_rows = tile_b * t            # rows per grid step (batch folded into block)
    blk = params["blocks"]

    def resident(shape):           # whole array resident in VMEM, fetched once
        nd = len(shape)
        return pl.BlockSpec(shape, lambda i, _n=nd: (0,) * _n)

    def batch_tiled(shape):        # per-batch-tile block along the (only) grid axis
        nd = len(shape)
        return pl.BlockSpec(shape, lambda i, _n=nd: (i,) + (0,) * (_n - 1))

    in_specs = [
        batch_tiled((n_rows, 1)),                  # idx (flattened B*T)
        resident((vocab_size, d)),                 # tok_emb
        resident((t, d)),                          # pos_emb
        resident((n_layers, 1, d)),                # ln1_g
        resident((n_layers, 1, d)),                # ln1_b
        resident((n_layers, d, 3 * d_att)),        # w_qkv (fused, Q pre-scaled)
        resident((n_layers, 1, 3 * d_att)),        # b_qkv
        resident((n_layers, d_att, d)),            # wo
        resident((n_layers, 1, d)),                # bo
        resident((n_layers, 1, d)),                # ln2_g
        resident((n_layers, 1, d)),                # ln2_b
        resident((n_layers, d, d_ffn)),            # w1
        resident((n_layers, 1, d_ffn)),            # b1
        resident((n_layers, d_ffn, d)),            # w2
        resident((n_layers, 1, d)),                # b2
        resident((1, d)),                          # ln_f_g
        resident((1, d)),                          # ln_f_b
        resident((d, vpad)),                       # w_out (lane-padded)
        resident((1, vpad)),                       # b_out (lane-padded, -inf pad)
    ]
    args = [
        idx.reshape(b * t, 1).astype(jnp.int32),
        params["tok_emb"], params["pos_emb"],
        blk["ln1_g"], blk["ln1_b"], blk["w_qkv"], blk["b_qkv"],
        blk["wo"], blk["bo"], blk["ln2_g"], blk["ln2_b"],
        blk["w1"], blk["b1"], blk["w2"], blk["b2"],
        params["ln_f_g"], params["ln_f_b"], params["w_out"], params["b_out"],
    ]

    logits_shape = jax.ShapeDtypeStruct((b * t, vpad), jnp.float32)
    logits_spec = batch_tiled((n_rows, vpad))

    if with_loss:
        in_specs.append(batch_tiled((n_rows, 1)))                      # labels
        args.append(ground_truth.reshape(b * t, 1).astype(jnp.int32))
        out_shape = (logits_shape,
                     jax.ShapeDtypeStruct((num_tiles, 1, 1), jnp.float32))
        out_specs = (logits_spec,
                     pl.BlockSpec((None, 1, 1), lambda i: (i, 0, 0)))
    else:
        out_shape = logits_shape
        out_specs = logits_spec

    kernel = functools.partial(
        _decoder_kernel,
        n_heads=n_heads, d_head=d_head, n_layers=n_layers,
        tile_b=tile_b, seq_len=t, window=window, with_loss=with_loss,
    )

    outs = pl.pallas_call(
        kernel,
        grid=(num_tiles,),                       # 1 step on v5e/v6e; 2 on v7x
        out_shape=out_shape,
        in_specs=in_specs,
        out_specs=out_specs,
        compiler_params=pltpu.CompilerParams(
            dimension_semantics=("parallel",)),
    )(*args)

    if with_loss:
        logits_flat, loss_parts = outs
        loss = jnp.sum(loss_parts) / (b * t)            # mean CE over B*T tokens
        pred = logits_flat[:, :vocab_size]              # torch: pred.view(B*T, C)
        return pred, loss

    logits_flat = outs
    pred = logits_flat[:, :vocab_size].reshape(b, t, vocab_size)
    return pred, None


if __name__ == "__main__":
    cfg = CONFIG
    key = jax.random.PRNGKey(0)
    kp, ki, kg = jax.random.split(key, 3)

    params = init_params(kp, VOCAB_SIZE, cfg)
    B, T = 2, cfg["seq_len"]
    idx = jax.random.randint(ki, (B, T), 0, VOCAB_SIZE, dtype=jnp.int32)
    ground_truth = jax.random.randint(kg, (B, T), 0, VOCAB_SIZE, dtype=jnp.int32)

    # training-style call (with loss)
    pred, loss = decoder_forward(params, idx, ground_truth)
    jax.block_until_ready(pred)
    jax.block_until_ready(loss)
    assert pred.shape == (B * T, VOCAB_SIZE)
    assert loss.shape == ()
    assert bool(jnp.isfinite(loss))

    # inference-style call (no loss)
    pred2, loss2 = decoder_forward(params, idx, None)
    jax.block_until_ready(pred2)
    assert pred2.shape == (B, T, VOCAB_SIZE)
    assert loss2 is None

    print("KERNEL_OK")
</pallas_src>

<mosaic_0001>
module attributes {stable_mosaic.version = 11 : i64} {
  func.func @_decoder_kernel(%arg0: i32, %arg1: memref<16x1xi32, #tpu.memory_space<vmem>>, %arg2: memref<32x32xf32, #tpu.memory_space<vmem>>, %arg3: memref<8x32xf32, #tpu.memory_space<vmem>>, %arg4: memref<2x1x32xf32, #tpu.memory_space<vmem>>, %arg5: memref<2x1x32xf32, #tpu.memory_space<vmem>>, %arg6: memref<2x32x96xbf16, #tpu.memory_space<vmem>>, %arg7: memref<2x1x96xf32, #tpu.memory_space<vmem>>, %arg8: memref<2x32x32xbf16, #tpu.memory_space<vmem>>, %arg9: memref<2x1x32xf32, #tpu.memory_space<vmem>>, %arg10: memref<2x1x32xf32, #tpu.memory_space<vmem>>, %arg11: memref<2x1x32xf32, #tpu.memory_space<vmem>>, %arg12: memref<2x32x64xbf16, #tpu.memory_space<vmem>>, %arg13: memref<2x1x64xf32, #tpu.memory_space<vmem>>, %arg14: memref<2x64x32xbf16, #tpu.memory_space<vmem>>, %arg15: memref<2x1x32xf32, #tpu.memory_space<vmem>>, %arg16: memref<1x32xf32, #tpu.memory_space<vmem>>, %arg17: memref<1x32xf32, #tpu.memory_space<vmem>>, %arg18: memref<32x128xbf16, #tpu.memory_space<vmem>>, %arg19: memref<1x128xf32, #tpu.memory_space<vmem>>, %arg20: memref<16x1xi32, #tpu.memory_space<vmem>>, %arg21: memref<16x128xf32, #tpu.memory_space<vmem>>, %arg22: memref<1x1x1xf32, #tpu.memory_space<vmem>>) attributes {dimension_semantics = [#tpu.dimension_semantics<parallel>], iteration_bounds = array<i64: 1>, scalar_prefetch = 0 : i64, scratch_operands = 0 : i64, tpu.core_type = #tpu.core_type<tc>, window_params = [{transform_indices = @transform_0, window_bounds = array<i64: 16, 1>}, {pipeline_mode = #tpu.pipeline_mode<synchronous>, transform_indices = @transform_1, window_bounds = array<i64: 32, 32>}, {pipeline_mode = #tpu.pipeline_mode<synchronous>, transform_indices = @transform_2, window_bounds = array<i64: 8, 32>}, {pipeline_mode = #tpu.pipeline_mode<synchronous>, transform_indices = @transform_3, window_bounds = array<i64: 2, 1, 32>}, {pipeline_mode = #tpu.pipeline_mode<synchronous>, transform_indices = @transform_4, window_bounds = array<i64: 2, 1, 32>}, {pipeline_mode = #tpu.pipeline_mode<synchronous>, transform_indices = @transform_5, window_bounds = array<i64: 2, 32, 96>}, {pipeline_mode = #tpu.pipeline_mode<synchronous>, transform_indices = @transform_6, window_bounds = array<i64: 2, 1, 96>}, {pipeline_mode = #tpu.pipeline_mode<synchronous>, transform_indices = @transform_7, window_bounds = array<i64: 2, 32, 32>}, {pipeline_mode = #tpu.pipeline_mode<synchronous>, transform_indices = @transform_8, window_bounds = array<i64: 2, 1, 32>}, {pipeline_mode = #tpu.pipeline_mode<synchronous>, transform_indices = @transform_9, window_bounds = array<i64: 2, 1, 32>}, {pipeline_mode = #tpu.pipeline_mode<synchronous>, transform_indices = @transform_10, window_bounds = array<i64: 2, 1, 32>}, {pipeline_mode = #tpu.pipeline_mode<synchronous>, transform_indices = @transform_11, window_bounds = array<i64: 2, 32, 64>}, {pipeline_mode = #tpu.pipeline_mode<synchronous>, transform_indices = @transform_12, window_bounds = array<i64: 2, 1, 64>}, {pipeline_mode = #tpu.pipeline_mode<synchronous>, transform_indices = @transform_13, window_bounds = array<i64: 2, 64, 32>}, {pipeline_mode = #tpu.pipeline_mode<synchronous>, transform_indices = @transform_14, window_bounds = array<i64: 2, 1, 32>}, {pipeline_mode = #tpu.pipeline_mode<synchronous>, transform_indices = @transform_15, window_bounds = array<i64: 1, 32>}, {pipeline_mode = #tpu.pipeline_mode<synchronous>, transform_indices = @transform_16, window_bounds = array<i64: 1, 32>}, {pipeline_mode = #tpu.pipeline_mode<synchronous>, transform_indices = @transform_17, window_bounds = array<i64: 32, 128>}, {pipeline_mode = #tpu.pipeline_mode<synchronous>, transform_indices = @transform_18, window_bounds = array<i64: 1, 128>}, {transform_indices = @transform_19, window_bounds = array<i64: 16, 1>}, {transform_indices = @transform_20, window_bounds = array<i64: 16, 128>}, {transform_indices = @transform_21, window_bounds = array<i64: 1, 1, 1>}]} {
    %0 = tpu.iota {dimensions = array<i32: 1>} : vector<16x32xi32>
    %c0 = arith.constant 0 : index
    %c0_0 = arith.constant 0 : index
    %1 = vector.load %arg1[%c0, %c0_0] : memref<16x1xi32, #tpu.memory_space<vmem>>, vector<16x1xi32>
    %2 = vector.broadcast %1 : vector<16x1xi32> to vector<16x32xi32>
    %3 = arith.cmpi eq, %0, %2 : vector<16x32xi32>
    %4 = arith.extui %3 : vector<16x32xi1> to vector<16x32xi32>
    %5 = arith.sitofp %4 : vector<16x32xi32> to vector<16x32xf32>
    %c0_1 = arith.constant 0 : index
    %c0_2 = arith.constant 0 : index
    %6 = vector.load %arg2[%c0_1, %c0_2] : memref<32x32xf32, #tpu.memory_space<vmem>>, vector<32x32xf32>
    %cst = arith.constant dense<0.000000e+00> : vector<16x32xf32>
    %7 = tpu.matmul %5, %6, %cst {dimension_numbers = #tpu.dot_dimension_numbers<[1], [0], [0], [1], [0, 0, 1, 1], [], []>} : vector<16x32xf32>, vector<32x32xf32>, vector<16x32xf32> -> vector<16x32xf32>
    %c0_3 = arith.constant 0 : index
    %c0_4 = arith.constant 0 : index
    %8 = vector.load %arg3[%c0_3, %c0_4] : memref<8x32xf32, #tpu.memory_space<vmem>>, vector<8x32xf32>
    %9 = tpu.concatenate %8, %8 in 0 : vector<8x32xf32>, vector<8x32xf32> -> vector<16x32xf32>
    %10 = arith.addf %7, %9 : vector<16x32xf32>
    %11 = tpu.iota {dimensions = array<i32: 0>} : vector<8x8xi32>
    %12 = tpu.iota {dimensions = array<i32: 1>} : vector<8x8xi32>
    %13 = arith.cmpi sle, %12, %11 : vector<8x8xi32>
    %14 = arith.subi %11, %12 : vector<8x8xi32>
    %c4_i32 = arith.constant 4 : i32
    %15 = vector.broadcast %c4_i32 : i32 to vector<8x8xi32>
    %16 = arith.cmpi slt, %14, %15 : vector<8x8xi32>
    %17 = arith.andi %13, %16 : vector<8x8xi1>
    %cst_5 = arith.constant 0.000000e+00 : f32
    %cst_6 = arith.constant -1.000000e+30 : f32
    %18 = vector.broadcast %cst_5 : f32 to vector<8x8xf32>
    %19 = vector.broadcast %cst_6 : f32 to vector<8x8xf32>
    %20 = arith.select %17, %18, %19 : vector<8x8xi1>, vector<8x8xf32>
    %c0_7 = arith.constant 0 : index
    %c0_8 = arith.constant 0 : index
    %c0_9 = arith.constant 0 : index
    %21 = vector.load %arg4[%c0_7, %c0_8, %c0_9] : memref<2x1x32xf32, #tpu.memory_space<vmem>>, vector<1x1x32xf32>
    %22 = vector.shape_cast %21 : vector<1x1x32xf32> to vector<1x32xf32>
    %c0_10 = arith.constant 0 : index
    %c0_11 = arith.constant 0 : index
    %c0_12 = arith.constant 0 : index
    %23 = vector.load %arg5[%c0_10, %c0_11, %c0_12] : memref<2x1x32xf32, #tpu.memory_space<vmem>>, vector<1x1x32xf32>
    %24 = vector.shape_cast %23 : vector<1x1x32xf32> to vector<1x32xf32>
    %cst_13 = arith.constant dense<0.000000e+00> : vector<16xf32>
    %25 = vector.multi_reduction <add>, %10, %cst_13 [1] : vector<16x32xf32> to vector<16xf32>
    %26 = vector.shape_cast %25 : vector<16xf32> to vector<16x1xf32>
    %cst_14 = arith.constant 3.200000e+01 : f32
    %27 = vector.broadcast %cst_14 : f32 to vector<16x1xf32>
    %28 = arith.divf %26, %27 : vector<16x1xf32>
    %29 = vector.broadcast %28 : vector<16x1xf32> to vector<16x32xf32>
    %30 = arith.subf %10, %29 : vector<16x32xf32>
    %31 = arith.mulf %30, %30 : vector<16x32xf32>
    %cst_15 = arith.constant dense<0.000000e+00> : vector<16xf32>
    %32 = vector.multi_reduction <add>, %31, %cst_15 [1] : vector<16x32xf32> to vector<16xf32>
    %33 = vector.shape_cast %32 : vector<16xf32> to vector<16x1xf32>
    %cst_16 = arith.constant 3.200000e+01 : f32
    %34 = vector.broadcast %cst_16 : f32 to vector<16x1xf32>
    %35 = arith.divf %33, %34 : vector<16x1xf32>
    %36 = vector.broadcast %28 : vector<16x1xf32> to vector<16x32xf32>
    %37 = arith.subf %10, %36 : vector<16x32xf32>
    %cst_17 = arith.constant 9.99999974E-6 : f32
    %38 = vector.broadcast %cst_17 : f32 to vector<16x1xf32>
    %39 = arith.addf %35, %38 : vector<16x1xf32>
    %40 = math.rsqrt %39 : vector<16x1xf32>
    %41 = vector.broadcast %40 : vector<16x1xf32> to vector<16x32xf32>
    %42 = arith.mulf %37, %41 : vector<16x32xf32>
    %43 = vector.broadcast %22 : vector<1x32xf32> to vector<16x32xf32>
    %44 = arith.mulf %42, %43 : vector<16x32xf32>
    %45 = vector.broadcast %24 : vector<1x32xf32> to vector<16x32xf32>
    %46 = arith.addf %44, %45 : vector<16x32xf32>
    %47 = arith.truncf %46 : vector<16x32xf32> to vector<16x32xbf16>
    %c0_18 = arith.constant 0 : index
    %c0_19 = arith.constant 0 : index
    %c0_20 = arith.constant 0 : index
    %48 = vector.load %arg6[%c0_18, %c0_19, %c0_20] : memref<2x32x96xbf16, #tpu.memory_space<vmem>>, vector<1x32x96xbf16>
    %49 = vector.shape_cast %48 : vector<1x32x96xbf16> to vector<32x96xbf16>
    %cst_21 = arith.constant dense<0.000000e+00> : vector<16x96xf32>
    %50 = tpu.matmul %47, %49, %cst_21 {dimension_numbers = #tpu.dot_dimension_numbers<[1], [0], [0], [1], [0, 0, 1, 1], [], []>} : vector<16x32xbf16>, vector<32x96xbf16>, vector<16x96xf32> -> vector<16x96xf32>
    %c0_22 = arith.constant 0 : index
    %c0_23 = arith.constant 0 : index
    %c0_24 = arith.constant 0 : index
    %51 = vector.load %arg7[%c0_22, %c0_23, %c0_24] : memref<2x1x96xf32, #tpu.memory_space<vmem>>, vector<1x1x96xf32>
    %52 = vector.shape_cast %51 : vector<1x1x96xf32> to vector<1x96xf32>
    %53 = vector.broadcast %52 : vector<1x96xf32> to vector<16x96xf32>
    %54 = arith.addf %50, %53 : vector<16x96xf32>
    %c0_25 = arith.constant 0 : index
    %c0_26 = arith.constant 0 : index
    %c0_27 = arith.constant 0 : index
    %55 = vector.load %arg8[%c0_25, %c0_26, %c0_27] : memref<2x32x32xbf16, #tpu.memory_space<vmem>>, vector<1x32x32xbf16>
    %56 = vector.shape_cast %55 : vector<1x32x32xbf16> to vector<32x32xbf16>
    %57 = vector.extract_strided_slice %54 {offsets = [0, 0], sizes = [8, 32], strides = [1, 1]} : vector<16x96xf32> to vector<8x32xf32>
    %58 = vector.extract_strided_slice %54 {offsets = [0, 32], sizes = [8, 32], strides = [1, 1]} : vector<16x96xf32> to vector<8x32xf32>
    %59 = vector.extract_strided_slice %54 {offsets = [0, 64], sizes = [8, 32], strides = [1, 1]} : vector<16x96xf32> to vector<8x32xf32>
    %60 = vector.extract_strided_slice %57 {offsets = [0, 0], sizes = [8, 8], strides = [1, 1]} : vector<8x32xf32> to vector<8x8xf32>
    %61 = vector.extract_strided_slice %58 {offsets = [0, 0], sizes = [8, 8], strides = [1, 1]} : vector<8x32xf32> to vector<8x8xf32>
    %62 = vector.extract_strided_slice %59 {offsets = [0, 0], sizes = [8, 8], strides = [1, 1]} : vector<8x32xf32> to vector<8x8xf32>
    %cst_28 = arith.constant dense<0.000000e+00> : vector<8x8xf32>
    %63 = tpu.matmul %60, %61, %cst_28 {dimension_numbers = #tpu.dot_dimension_numbers<[1], [1], [0], [0], [0, 0, 1, 0], [], []>} : vector<8x8xf32>, vector<8x8xf32>, vector<8x8xf32> -> vector<8x8xf32>
    %64 = arith.addf %63, %20 : vector<8x8xf32>
    %cst_29 = arith.constant dense<0xFF800000> : vector<8xf32>
    %65 = vector.multi_reduction <maximumf>, %64, %cst_29 [1] : vector<8x8xf32> to vector<8xf32>
    %66 = vector.shape_cast %65 : vector<8xf32> to vector<8x1xf32>
    %67 = vector.broadcast %66 : vector<8x1xf32> to vector<8x8xf32>
    %68 = arith.subf %64, %67 : vector<8x8xf32>
    %69 = math.exp %68 : vector<8x8xf32>
    %cst_30 = arith.constant dense<0.000000e+00> : vector<8xf32>
    %70 = vector.multi_reduction <add>, %69, %cst_30 [1] : vector<8x8xf32> to vector<8xf32>
    %71 = vector.shape_cast %70 : vector<8xf32> to vector<8x1xf32>
    %cst_31 = arith.constant dense<0.000000e+00> : vector<8x8xf32>
    %72 = tpu.matmul %69, %62, %cst_31 {dimension_numbers = #tpu.dot_dimension_numbers<[1], [0], [0], [1], [0, 0, 1, 1], [], []>} : vector<8x8xf32>, vector<8x8xf32>, vector<8x8xf32> -> vector<8x8xf32>
    %73 = tpu.reciprocal %71 {approx = true} : vector<8x1xf32> -> vector<8x1xf32>
    %74 = vector.broadcast %73 : vector<8x1xf32> to vector<8x8xf32>
    %75 = arith.mulf %72, %74 : vector<8x8xf32>
    %76 = arith.truncf %75 : vector<8x8xf32> to vector<8x8xbf16>
    %77 = vector.extract_strided_slice %56 {offsets = [0, 0], sizes = [8, 32], strides = [1, 1]} : vector<32x32xbf16> to vector<8x32xbf16>
    %cst_32 = arith.constant dense<0.000000e+00> : vector<8x32xf32>
    %78 = tpu.matmul %76, %77, %cst_32 {dimension_numbers = #tpu.dot_dimension_numbers<[1], [0], [0], [1], [0, 0, 1, 1], [], []>} : vector<8x8xbf16>, vector<8x32xbf16>, vector<8x32xf32> -> vector<8x32xf32>
    %79 = vector.extract_strided_slice %57 {offsets = [0, 8], sizes = [8, 8], strides = [1, 1]} : vector<8x32xf32> to vector<8x8xf32>
    %80 = vector.extract_strided_slice %58 {offsets = [0, 8], sizes = [8, 8], strides = [1, 1]} : vector<8x32xf32> to vector<8x8xf32>
    %81 = vector.extract_strided_slice %59 {offsets = [0, 8], sizes = [8, 8], strides = [1, 1]} : vector<8x32xf32> to vector<8x8xf32>
    %cst_33 = arith.constant dense<0.000000e+00> : vector<8x8xf32>
    %82 = tpu.matmul %79, %80, %cst_33 {dimension_numbers = #tpu.dot_dimension_numbers<[1], [1], [0], [0], [0, 0, 1, 0], [], []>} : vector<8x8xf32>, vector<8x8xf32>, vector<8x8xf32> -> vector<8x8xf32>
    %83 = arith.addf %82, %20 : vector<8x8xf32>
    %cst_34 = arith.constant dense<0xFF800000> : vector<8xf32>
    %84 = vector.multi_reduction <maximumf>, %83, %cst_34 [1] : vector<8x8xf32> to vector<8xf32>
    %85 = vector.shape_cast %84 : vector<8xf32> to vector<8x1xf32>
    %86 = vector.broadcast %85 : vector<8x1xf32> to vector<8x8xf32>
    %87 = arith.subf %83, %86 : vector<8x8xf32>
    %88 = math.exp %87 : vector<8x8xf32>
    %cst_35 = arith.constant dense<0.000000e+00> : vector<8xf32>
    %89 = vector.multi_reduction <add>, %88, %cst_35 [1] : vector<8x8xf32> to vector<8xf32>
    %90 = vector.shape_cast %89 : vector<8xf32> to vector<8x1xf32>
    %cst_36 = arith.constant dense<0.000000e+00> : vector<8x8xf32>
    %91 = tpu.matmul %88, %81, %cst_36 {dimension_numbers = #tpu.dot_dimension_numbers<[1], [0], [0], [1], [0, 0, 1, 1], [], []>} : vector<8x8xf32>, vector<8x8xf32>, vector<8x8xf32> -> vector<8x8xf32>
    %92 = tpu.reciprocal %90 {approx = true} : vector<8x1xf32> -> vector<8x1xf32>
    %93 = vector.broadcast %92 : vector<8x1xf32> to vector<8x8xf32>
    %94 = arith.mulf %91, %93 : vector<8x8xf32>
    %95 = arith.truncf %94 : vector<8x8xf32> to vector<8x8xbf16>
    %96 = vector.extract_strided_slice %56 {offsets = [8, 0], sizes = [8, 32], strides = [1, 1]} : vector<32x32xbf16> to vector<8x32xbf16>
    %cst_37 = arith.constant dense<0.000000e+00> : vector<8x32xf32>
    %97 = tpu.matmul %95, %96, %cst_37 {dimension_numbers = #tpu.dot_dimension_numbers<[1], [0], [0], [1], [0, 0, 1, 1], [], []>} : vector<8x8xbf16>, vector<8x32xbf16>, vector<8x32xf32> -> vector<8x32xf32>
    %98 = arith.addf %78, %97 : vector<8x32xf32>
    %99 = vector.extract_strided_slice %57 {offsets = [0, 16], sizes = [8, 8], strides = [1, 1]} : vector<8x32xf32> to vector<8x8xf32>
    %100 = vector.extract_strided_slice %58 {offsets = [0, 16], sizes = [8, 8], strides = [1, 1]} : vector<8x32xf32> to vector<8x8xf32>
    %101 = vector.extract_strided_slice %59 {offsets = [0, 16], sizes = [8, 8], strides = [1, 1]} : vector<8x32xf32> to vector<8x8xf32>
    %cst_38 = arith.constant dense<0.000000e+00> : vector<8x8xf32>
    %102 = tpu.matmul %99, %100, %cst_38 {dimension_numbers = #tpu.dot_dimension_numbers<[1], [1], [0], [0], [0, 0, 1, 0], [], []>} : vector<8x8xf32>, vector<8x8xf32>, vector<8x8xf32> -> vector<8x8xf32>
    %103 = arith.addf %102, %20 : vector<8x8xf32>
    %cst_39 = arith.constant dense<0xFF800000> : vector<8xf32>
    %104 = vector.multi_reduction <maximumf>, %103, %cst_39 [1] : vector<8x8xf32> to vector<8xf32>
    %105 = vector.shape_cast %104 : vector<8xf32> to vector<8x1xf32>
    %106 = vector.broadcast %105 : vector<8x1xf32> to vector<8x8xf32>
    %107 = arith.subf %103, %106 : vector<8x8xf32>
    %108 = math.exp %107 : vector<8x8xf32>
    %cst_40 = arith.constant dense<0.000000e+00> : vector<8xf32>
    %109 = vector.multi_reduction <add>, %108, %cst_40 [1] : vector<8x8xf32> to vector<8xf32>
    %110 = vector.shape_cast %109 : vector<8xf32> to vector<8x1xf32>
    %cst_41 = arith.constant dense<0.000000e+00> : vector<8x8xf32>
    %111 = tpu.matmul %108, %101, %cst_41 {dimension_numbers = #tpu.dot_dimension_numbers<[1], [0], [0], [1], [0, 0, 1, 1], [], []>} : vector<8x8xf32>, vector<8x8xf32>, vector<8x8xf32> -> vector<8x8xf32>
    %112 = tpu.reciprocal %110 {approx = true} : vector<8x1xf32> -> vector<8x1xf32>
    %113 = vector.broadcast %112 : vector<8x1xf32> to vector<8x8xf32>
    %114 = arith.mulf %111, %113 : vector<8x8xf32>
    %115 = arith.truncf %114 : vector<8x8xf32> to vector<8x8xbf16>
    %116 = vector.extract_strided_slice %56 {offsets = [16, 0], sizes = [8, 32], strides = [1, 1]} : vector<32x32xbf16> to vector<8x32xbf16>
    %cst_42 = arith.constant dense<0.000000e+00> : vector<8x32xf32>
    %117 = tpu.matmul %115, %116, %cst_42 {dimension_numbers = #tpu.dot_dimension_numbers<[1], [0], [0], [1], [0, 0, 1, 1], [], []>} : vector<8x8xbf16>, vector<8x32xbf16>, vector<8x32xf32> -> vector<8x32xf32>
    %118 = arith.addf %98, %117 : vector<8x32xf32>
    %119 = vector.extract_strided_slice %57 {offsets = [0, 24], sizes = [8, 8], strides = [1, 1]} : vector<8x32xf32> to vector<8x8xf32>
    %120 = vector.extract_strided_slice %58 {offsets = [0, 24], sizes = [8, 8], strides = [1, 1]} : vector<8x32xf32> to vector<8x8xf32>
    %121 = vector.extract_strided_slice %59 {offsets = [0, 24], sizes = [8, 8], strides = [1, 1]} : vector<8x32xf32> to vector<8x8xf32>
    %cst_43 = arith.constant dense<0.000000e+00> : vector<8x8xf32>
    %122 = tpu.matmul %119, %120, %cst_43 {dimension_numbers = #tpu.dot_dimension_numbers<[1], [1], [0], [0], [0, 0, 1, 0], [], []>} : vector<8x8xf32>, vector<8x8xf32>, vector<8x8xf32> -> vector<8x8xf32>
    %123 = arith.addf %122, %20 : vector<8x8xf32>
    %cst_44 = arith.constant dense<0xFF800000> : vector<8xf32>
    %124 = vector.multi_reduction <maximumf>, %123, %cst_44 [1] : vector<8x8xf32> to vector<8xf32>
    %125 = vector.shape_cast %124 : vector<8xf32> to vector<8x1xf32>
    %126 = vector.broadcast %125 : vector<8x1xf32> to vector<8x8xf32>
    %127 = arith.subf %123, %126 : vector<8x8xf32>
    %128 = math.exp %127 : vector<8x8xf32>
    %cst_45 = arith.constant dense<0.000000e+00> : vector<8xf32>
    %129 = vector.multi_reduction <add>, %128, %cst_45 [1] : vector<8x8xf32> to vector<8xf32>
    %130 = vector.shape_cast %129 : vector<8xf32> to vector<8x1xf32>
    %cst_46 = arith.constant dense<0.000000e+00> : vector<8x8xf32>
    %131 = tpu.matmul %128, %121, %cst_46 {dimension_numbers = #tpu.dot_dimension_numbers<[1], [0], [0], [1], [0, 0, 1, 1], [], []>} : vector<8x8xf32>, vector<8x8xf32>, vector<8x8xf32> -> vector<8x8xf32>
    %132 = tpu.reciprocal %130 {approx = true} : vector<8x1xf32> -> vector<8x1xf32>
    %133 = vector.broadcast %132 : vector<8x1xf32> to vector<8x8xf32>
    %134 = arith.mulf %131, %133 : vector<8x8xf32>
    %135 = arith.truncf %134 : vector<8x8xf32> to vector<8x8xbf16>
    %136 = vector.extract_strided_slice %56 {offsets = [24, 0], sizes = [8, 32], strides = [1, 1]} : vector<32x32xbf16> to vector<8x32xbf16>
    %cst_47 = arith.constant dense<0.000000e+00> : vector<8x32xf32>
    %137 = tpu.matmul %135, %136, %cst_47 {dimension_numbers = #tpu.dot_dimension_numbers<[1], [0], [0], [1], [0, 0, 1, 1], [], []>} : vector<8x8xbf16>, vector<8x32xbf16>, vector<8x32xf32> -> vector<8x32xf32>
    %138 = arith.addf %118, %137 : vector<8x32xf32>
    %139 = vector.extract_strided_slice %54 {offsets = [8, 0], sizes = [8, 32], strides = [1, 1]} : vector<16x96xf32> to vector<8x32xf32>
    %140 = vector.extract_strided_slice %54 {offsets = [8, 32], sizes = [8, 32], strides = [1, 1]} : vector<16x96xf32> to vector<8x32xf32>
    %141 = vector.extract_strided_slice %54 {offsets = [8, 64], sizes = [8, 32], strides = [1, 1]} : vector<16x96xf32> to vector<8x32xf32>
    %142 = vector.extract_strided_slice %139 {offsets = [0, 0], sizes = [8, 8], strides = [1, 1]} : vector<8x32xf32> to vector<8x8xf32>
    %143 = vector.extract_strided_slice %140 {offsets = [0, 0], sizes = [8, 8], strides = [1, 1]} : vector<8x32xf32> to vector<8x8xf32>
    %144 = vector.extract_strided_slice %141 {offsets = [0, 0], sizes = [8, 8], strides = [1, 1]} : vector<8x32xf32> to vector<8x8xf32>
    %cst_48 = arith.constant dense<0.000000e+00> : vector<8x8xf32>
    %145 = tpu.matmul %142, %143, %cst_48 {dimension_numbers = #tpu.dot_dimension_numbers<[1], [1], [0], [0], [0, 0, 1, 0], [], []>} : vector<8x8xf32>, vector<8x8xf32>, vector<8x8xf32> -> vector<8x8xf32>
    %146 = arith.addf %145, %20 : vector<8x8xf32>
    %cst_49 = arith.constant dense<0xFF800000> : vector<8xf32>
    %147 = vector.multi_reduction <maximumf>, %146, %cst_49 [1] : vector<8x8xf32> to vector<8xf32>
    %148 = vector.shape_cast %147 : vector<8xf32> to vector<8x1xf32>
    %149 = vector.broadcast %148 : vector<8x1xf32> to vector<8x8xf32>
    %150 = arith.subf %146, %149 : vector<8x8xf32>
    %151 = math.exp %150 : vector<8x8xf32>
    %cst_50 = arith.constant dense<0.000000e+00> : vector<8xf32>
    %152 = vector.multi_reduction <add>, %151, %cst_50 [1] : vector<8x8xf32> to vector<8xf32>
    %153 = vector.shape_cast %152 : vector<8xf32> to vector<8x1xf32>
    %cst_51 = arith.constant dense<0.000000e+00> : vector<8x8xf32>
    %154 = tpu.matmul %151, %144, %cst_51 {dimension_numbers = #tpu.dot_dimension_numbers<[1], [0], [0], [1], [0, 0, 1, 1], [], []>} : vector<8x8xf32>, vector<8x8xf32>, vector<8x8xf32> -> vector<8x8xf32>
    %155 = tpu.reciprocal %153 {approx = true} : vector<8x1xf32> -> vector<8x1xf32>
    %156 = vector.broadcast %155 : vector<8x1xf32> to vector<8x8xf32>
    %157 = arith.mulf %154, %156 : vector<8x8xf32>
    %158 = arith.truncf %157 : vector<8x8xf32> to vector<8x8xbf16>
    %159 = vector.extract_strided_slice %56 {offsets = [0, 0], sizes = [8, 32], strides = [1, 1]} : vector<32x32xbf16> to vector<8x32xbf16>
    %cst_52 = arith.constant dense<0.000000e+00> : vector<8x32xf32>
    %160 = tpu.matmul %158, %159, %cst_52 {dimension_numbers = #tpu.dot_dimension_numbers<[1], [0], [0], [1], [0, 0, 1, 1], [], []>} : vector<8x8xbf16>, vector<8x32xbf16>, vector<8x32xf32> -> vector<8x32xf32>
    %161 = vector.extract_strided_slice %139 {offsets = [0, 8], sizes = [8, 8], strides = [1, 1]} : vector<8x32xf32> to vector<8x8xf32>
    %162 = vector.extract_strided_slice %140 {offsets = [0, 8], sizes = [8, 8], strides = [1, 1]} : vector<8x32xf32> to vector<8x8xf32>
    %163 = vector.extract_strided_slice %141 {offsets = [0, 8], sizes = [8, 8], strides = [1, 1]} : vector<8x32xf32> to vector<8x8xf32>
    %cst_53 = arith.constant dense<0.000000e+00> : vector<8x8xf32>
    %164 = tpu.matmul %161, %162, %cst_53 {dimension_numbers = #tpu.dot_dimension_numbers<[1], [1], [0], [0], [0, 0, 1, 0], [], []>} : vector<8x8xf32>, vector<8x8xf32>, vector<8x8xf32> -> vector<8x8xf32>
    %165 = arith.addf %164, %20 : vector<8x8xf32>
    %cst_54 = arith.constant dense<0xFF800000> : vector<8xf32>
    %166 = vector.multi_reduction <maximumf>, %165, %cst_54 [1] : vector<8x8xf32> to vector<8xf32>
    %167 = vector.shape_cast %166 : vector<8xf32> to vector<8x1xf32>
    %168 = vector.broadcast %167 : vector<8x1xf32> to vector<8x8xf32>
    %169 = arith.subf %165, %168 : vector<8x8xf32>
    %170 = math.exp %169 : vector<8x8xf32>
    %cst_55 = arith.constant dense<0.000000e+00> : vector<8xf32>
    %171 = vector.multi_reduction <add>, %170, %cst_55 [1] : vector<8x8xf32> to vector<8xf32>
    %172 = vector.shape_cast %171 : vector<8xf32> to vector<8x1xf32>
    %cst_56 = arith.constant dense<0.000000e+00> : vector<8x8xf32>
    %173 = tpu.matmul %170, %163, %cst_56 {dimension_numbers = #tpu.dot_dimension_numbers<[1], [0], [0], [1], [0, 0, 1, 1], [], []>} : vector<8x8xf32>, vector<8x8xf32>, vector<8x8xf32> -> vector<8x8xf32>
    %174 = tpu.reciprocal %172 {approx = true} : vector<8x1xf32> -> vector<8x1xf32>
    %175 = vector.broadcast %174 : vector<8x1xf32> to vector<8x8xf32>
    %176 = arith.mulf %173, %175 : vector<8x8xf32>
    %177 = arith.truncf %176 : vector<8x8xf32> to vector<8x8xbf16>
    %178 = vector.extract_strided_slice %56 {offsets = [8, 0], sizes = [8, 32], strides = [1, 1]} : vector<32x32xbf16> to vector<8x32xbf16>
    %cst_57 = arith.constant dense<0.000000e+00> : vector<8x32xf32>
    %179 = tpu.matmul %177, %178, %cst_57 {dimension_numbers = #tpu.dot_dimension_numbers<[1], [0], [0], [1], [0, 0, 1, 1], [], []>} : vector<8x8xbf16>, vector<8x32xbf16>, vector<8x32xf32> -> vector<8x32xf32>
    %180 = arith.addf %160, %179 : vector<8x32xf32>
    %181 = vector.extract_strided_slice %139 {offsets = [0, 16], sizes = [8, 8], strides = [1, 1]} : vector<8x32xf32> to vector<8x8xf32>
    %182 = vector.extract_strided_slice %140 {offsets = [0, 16], sizes = [8, 8], strides = [1, 1]} : vector<8x32xf32> to vector<8x8xf32>
    %183 = vector.extract_strided_slice %141 {offsets = [0, 16], sizes = [8, 8], strides = [1, 1]} : vector<8x32xf32> to vector<8x8xf32>
    %cst_58 = arith.constant dense<0.000000e+00> : vector<8x8xf32>
    %184 = tpu.matmul %181, %182, %cst_58 {dimension_numbers = #tpu.dot_dimension_numbers<[1], [1], [0], [0], [0, 0, 1, 0], [], []>} : vector<8x8xf32>, vector<8x8xf32>, vector<8x8xf32> -> vector<8x8xf32>
    %185 = arith.addf %184, %20 : vector<8x8xf32>
    %cst_59 = arith.constant dense<0xFF800000> : vector<8xf32>
    %186 = vector.multi_reduction <maximumf>, %185, %cst_59 [1] : vector<8x8xf32> to vector<8xf32>
    %187 = vector.shape_cast %186 : vector<8xf32> to vector<8x1xf32>
    %188 = vector.broadcast %187 : vector<8x1xf32> to vector<8x8xf32>
    %189 = arith.subf %185, %188 : vector<8x8xf32>
    %190 = math.exp %189 : vector<8x8xf32>
    %cst_60 = arith.constant dense<0.000000e+00> : vector<8xf32>
    %191 = vector.multi_reduction <add>, %190, %cst_60 [1] : vector<8x8xf32> to vector<8xf32>
    %192 = vector.shape_cast %191 : vector<8xf32> to vector<8x1xf32>
    %cst_61 = arith.constant dense<0.000000e+00> : vector<8x8xf32>
    %193 = tpu.matmul %190, %183, %cst_61 {dimension_numbers = #tpu.dot_dimension_numbers<[1], [0], [0], [1], [0, 0, 1, 1], [], []>} : vector<8x8xf32>, vector<8x8xf32>, vector<8x8xf32> -> vector<8x8xf32>
    %194 = tpu.reciprocal %192 {approx = true} : vector<8x1xf32> -> vector<8x1xf32>
    %195 = vector.broadcast %194 : vector<8x1xf32> to vector<8x8xf32>
    %196 = arith.mulf %193, %195 : vector<8x8xf32>
    %197 = arith.truncf %196 : vector<8x8xf32> to vector<8x8xbf16>
    %198 = vector.extract_strided_slice %56 {offsets = [16, 0], sizes = [8, 32], strides = [1, 1]} : vector<32x32xbf16> to vector<8x32xbf16>
    %cst_62 = arith.constant dense<0.000000e+00> : vector<8x32xf32>
    %199 = tpu.matmul %197, %198, %cst_62 {dimension_numbers = #tpu.dot_dimension_numbers<[1], [0], [0], [1], [0, 0, 1, 1], [], []>} : vector<8x8xbf16>, vector<8x32xbf16>, vector<8x32xf32> -> vector<8x32xf32>
    %200 = arith.addf %180, %199 : vector<8x32xf32>
    %201 = vector.extract_strided_slice %139 {offsets = [0, 24], sizes = [8, 8], strides = [1, 1]} : vector<8x32xf32> to vector<8x8xf32>
    %202 = vector.extract_strided_slice %140 {offsets = [0, 24], sizes = [8, 8], strides = [1, 1]} : vector<8x32xf32> to vector<8x8xf32>
    %203 = vector.extract_strided_slice %141 {offsets = [0, 24], sizes = [8, 8], strides = [1, 1]} : vector<8x32xf32> to vector<8x8xf32>
    %cst_63 = arith.constant dense<0.000000e+00> : vector<8x8xf32>
    %204 = tpu.matmul %201, %202, %cst_63 {dimension_numbers = #tpu.dot_dimension_numbers<[1], [1], [0], [0], [0, 0, 1, 0], [], []>} : vector<8x8xf32>, vector<8x8xf32>, vector<8x8xf32> -> vector<8x8xf32>
    %205 = arith.addf %204, %20 : vector<8x8xf32>
    %cst_64 = arith.constant dense<0xFF800000> : vector<8xf32>
    %206 = vector.multi_reduction <maximumf>, %205, %cst_64 [1] : vector<8x8xf32> to vector<8xf32>
    %207 = vector.shape_cast %206 : vector<8xf32> to vector<8x1xf32>
    %208 = vector.broadcast %207 : vector<8x1xf32> to vector<8x8xf32>
    %209 = arith.subf %205, %208 : vector<8x8xf32>
    %210 = math.exp %209 : vector<8x8xf32>
    %cst_65 = arith.constant dense<0.000000e+00> : vector<8xf32>
    %211 = vector.multi_reduction <add>, %210, %cst_65 [1] : vector<8x8xf32> to vector<8xf32>
    %212 = vector.shape_cast %211 : vector<8xf32> to vector<8x1xf32>
    %cst_66 = arith.constant dense<0.000000e+00> : vector<8x8xf32>
    %213 = tpu.matmul %210, %203, %cst_66 {dimension_numbers = #tpu.dot_dimension_numbers<[1], [0], [0], [1], [0, 0, 1, 1], [], []>} : vector<8x8xf32>, vector<8x8xf32>, vector<8x8xf32> -> vector<8x8xf32>
    %214 = tpu.reciprocal %212 {approx = true} : vector<8x1xf32> -> vector<8x1xf32>
    %215 = vector.broadcast %214 : vector<8x1xf32> to vector<8x8xf32>
    %216 = arith.mulf %213, %215 : vector<8x8xf32>
    %217 = arith.truncf %216 : vector<8x8xf32> to vector<8x8xbf16>
    %218 = vector.extract_strided_slice %56 {offsets = [24, 0], sizes = [8, 32], strides = [1, 1]} : vector<32x32xbf16> to vector<8x32xbf16>
    %cst_67 = arith.constant dense<0.000000e+00> : vector<8x32xf32>
    %219 = tpu.matmul %217, %218, %cst_67 {dimension_numbers = #tpu.dot_dimension_numbers<[1], [0], [0], [1], [0, 0, 1, 1], [], []>} : vector<8x8xbf16>, vector<8x32xbf16>, vector<8x32xf32> -> vector<8x32xf32>
    %220 = arith.addf %200, %219 : vector<8x32xf32>
    %221 = tpu.concatenate %138, %220 in 0 : vector<8x32xf32>, vector<8x32xf32> -> vector<16x32xf32>
    %222 = arith.addf %10, %221 : vector<16x32xf32>
    %c0_68 = arith.constant 0 : index
    %c0_69 = arith.constant 0 : index
    %c0_70 = arith.constant 0 : index
    %223 = vector.load %arg9[%c0_68, %c0_69, %c0_70] : memref<2x1x32xf32, #tpu.memory_space<vmem>>, vector<1x1x32xf32>
    %224 = vector.shape_cast %223 : vector<1x1x32xf32> to vector<1x32xf32>
    %225 = vector.broadcast %224 : vector<1x32xf32> to vector<16x32xf32>
    %226 = arith.addf %222, %225 : vector<16x32xf32>
    %c0_71 = arith.constant 0 : index
    %c0_72 = arith.constant 0 : index
    %c0_73 = arith.constant 0 : index
    %227 = vector.load %arg10[%c0_71, %c0_72, %c0_73] : memref<2x1x32xf32, #tpu.memory_space<vmem>>, vector<1x1x32xf32>
    %228 = vector.shape_cast %227 : vector<1x1x32xf32> to vector<1x32xf32>
    %c0_74 = arith.constant 0 : index
    %c0_75 = arith.constant 0 : index
    %c0_76 = arith.constant 0 : index
    %229 = vector.load %arg11[%c0_74, %c0_75, %c0_76] : memref<2x1x32xf32, #tpu.memory_space<vmem>>, vector<1x1x32xf32>
    %230 = vector.shape_cast %229 : vector<1x1x32xf32> to vector<1x32xf32>
    %cst_77 = arith.constant dense<0.000000e+00> : vector<16xf32>
    %231 = vector.multi_reduction <add>, %226, %cst_77 [1] : vector<16x32xf32> to vector<16xf32>
    %232 = vector.shape_cast %231 : vector<16xf32> to vector<16x1xf32>
    %cst_78 = arith.constant 3.200000e+01 : f32
    %233 = vector.broadcast %cst_78 : f32 to vector<16x1xf32>
    %234 = arith.divf %232, %233 : vector<16x1xf32>
    %235 = vector.broadcast %234 : vector<16x1xf32> to vector<16x32xf32>
    %236 = arith.subf %226, %235 : vector<16x32xf32>
    %237 = arith.mulf %236, %236 : vector<16x32xf32>
    %cst_79 = arith.constant dense<0.000000e+00> : vector<16xf32>
    %238 = vector.multi_reduction <add>, %237, %cst_79 [1] : vector<16x32xf32> to vector<16xf32>
    %239 = vector.shape_cast %238 : vector<16xf32> to vector<16x1xf32>
    %cst_80 = arith.constant 3.200000e+01 : f32
    %240 = vector.broadcast %cst_80 : f32 to vector<16x1xf32>
    %241 = arith.divf %239, %240 : vector<16x1xf32>
    %242 = vector.broadcast %234 : vector<16x1xf32> to vector<16x32xf32>
    %243 = arith.subf %226, %242 : vector<16x32xf32>
    %cst_81 = arith.constant 9.99999974E-6 : f32
    %244 = vector.broadcast %cst_81 : f32 to vector<16x1xf32>
    %245 = arith.addf %241, %244 : vector<16x1xf32>
    %246 = math.rsqrt %245 : vector<16x1xf32>
    %247 = vector.broadcast %246 : vector<16x1xf32> to vector<16x32xf32>
    %248 = arith.mulf %243, %247 : vector<16x32xf32>
    %249 = vector.broadcast %228 : vector<1x32xf32> to vector<16x32xf32>
    %250 = arith.mulf %248, %249 : vector<16x32xf32>
    %251 = vector.broadcast %230 : vector<1x32xf32> to vector<16x32xf32>
    %252 = arith.addf %250, %251 : vector<16x32xf32>
    %253 = arith.truncf %252 : vector<16x32xf32> to vector<16x32xbf16>
    %c0_82 = arith.constant 0 : index
    %c0_83 = arith.constant 0 : index
    %c0_84 = arith.constant 0 : index
    %254 = vector.load %arg12[%c0_82, %c0_83, %c0_84] : memref<2x32x64xbf16, #tpu.memory_space<vmem>>, vector<1x32x64xbf16>
    %255 = vector.shape_cast %254 : vector<1x32x64xbf16> to vector<32x64xbf16>
    %cst_85 = arith.constant dense<0.000000e+00> : vector<16x64xf32>
    %256 = tpu.matmul %253, %255, %cst_85 {dimension_numbers = #tpu.dot_dimension_numbers<[1], [0], [0], [1], [0, 0, 1, 1], [], []>} : vector<16x32xbf16>, vector<32x64xbf16>, vector<16x64xf32> -> vector<16x64xf32>
    %c0_86 = arith.constant 0 : index
    %c0_87 = arith.constant 0 : index
    %c0_88 = arith.constant 0 : index
    %257 = vector.load %arg13[%c0_86, %c0_87, %c0_88] : memref<2x1x64xf32, #tpu.memory_space<vmem>>, vector<1x1x64xf32>
    %258 = vector.shape_cast %257 : vector<1x1x64xf32> to vector<1x64xf32>
    %259 = vector.broadcast %258 : vector<1x64xf32> to vector<16x64xf32>
    %260 = arith.addf %256, %259 : vector<16x64xf32>
    %cst_89 = arith.constant 0.000000e+00 : f32
    %261 = vector.broadcast %cst_89 : f32 to vector<16x64xf32>
    %262 = arith.maximumf %260, %261 : vector<16x64xf32>
    %263 = arith.truncf %262 : vector<16x64xf32> to vector<16x64xbf16>
    %c0_90 = arith.constant 0 : index
    %c0_91 = arith.constant 0 : index
    %c0_92 = arith.constant 0 : index
    %264 = vector.load %arg14[%c0_90, %c0_91, %c0_92] : memref<2x64x32xbf16, #tpu.memory_space<vmem>>, vector<1x64x32xbf16>
    %265 = vector.shape_cast %264 : vector<1x64x32xbf16> to vector<64x32xbf16>
    %cst_93 = arith.constant dense<0.000000e+00> : vector<16x32xf32>
    %266 = tpu.matmul %263, %265, %cst_93 {dimension_numbers = #tpu.dot_dimension_numbers<[1], [0], [0], [1], [0, 0, 1, 1], [], []>} : vector<16x64xbf16>, vector<64x32xbf16>, vector<16x32xf32> -> vector<16x32xf32>
    %c0_94 = arith.constant 0 : index
    %c0_95 = arith.constant 0 : index
    %c0_96 = arith.constant 0 : index
    %267 = vector.load %arg15[%c0_94, %c0_95, %c0_96] : memref<2x1x32xf32, #tpu.memory_space<vmem>>, vector<1x1x32xf32>
    %268 = vector.shape_cast %267 : vector<1x1x32xf32> to vector<1x32xf32>
    %269 = vector.broadcast %268 : vector<1x32xf32> to vector<16x32xf32>
    %270 = arith.addf %266, %269 : vector<16x32xf32>
    %271 = arith.addf %226, %270 : vector<16x32xf32>
    %c1 = arith.constant 1 : index
    %c0_97 = arith.constant 0 : index
    %c0_98 = arith.constant 0 : index
    %272 = vector.load %arg4[%c1, %c0_97, %c0_98] : memref<2x1x32xf32, #tpu.memory_space<vmem>>, vector<1x1x32xf32>
    %273 = vector.shape_cast %272 : vector<1x1x32xf32> to vector<1x32xf32>
    %c1_99 = arith.constant 1 : index
    %c0_100 = arith.constant 0 : index
    %c0_101 = arith.constant 0 : index
    %274 = vector.load %arg5[%c1_99, %c0_100, %c0_101] : memref<2x1x32xf32, #tpu.memory_space<vmem>>, vector<1x1x32xf32>
    %275 = vector.shape_cast %274 : vector<1x1x32xf32> to vector<1x32xf32>
    %cst_102 = arith.constant dense<0.000000e+00> : vector<16xf32>
    %276 = vector.multi_reduction <add>, %271, %cst_102 [1] : vector<16x32xf32> to vector<16xf32>
    %277 = vector.shape_cast %276 : vector<16xf32> to vector<16x1xf32>
    %cst_103 = arith.constant 3.200000e+01 : f32
    %278 = vector.broadcast %cst_103 : f32 to vector<16x1xf32>
    %279 = arith.divf %277, %278 : vector<16x1xf32>
    %280 = vector.broadcast %279 : vector<16x1xf32> to vector<16x32xf32>
    %281 = arith.subf %271, %280 : vector<16x32xf32>
    %282 = arith.mulf %281, %281 : vector<16x32xf32>
    %cst_104 = arith.constant dense<0.000000e+00> : vector<16xf32>
    %283 = vector.multi_reduction <add>, %282, %cst_104 [1] : vector<16x32xf32> to vector<16xf32>
    %284 = vector.shape_cast %283 : vector<16xf32> to vector<16x1xf32>
    %cst_105 = arith.constant 3.200000e+01 : f32
    %285 = vector.broadcast %cst_105 : f32 to vector<16x1xf32>
    %286 = arith.divf %284, %285 : vector<16x1xf32>
    %287 = vector.broadcast %279 : vector<16x1xf32> to vector<16x32xf32>
    %288 = arith.subf %271, %287 : vector<16x32xf32>
    %cst_106 = arith.constant 9.99999974E-6 : f32
    %289 = vector.broadcast %cst_106 : f32 to vector<16x1xf32>
    %290 = arith.addf %286, %289 : vector<16x1xf32>
    %291 = math.rsqrt %290 : vector<16x1xf32>
    %292 = vector.broadcast %291 : vector<16x1xf32> to vector<16x32xf32>
    %293 = arith.mulf %288, %292 : vector<16x32xf32>
    %294 = vector.broadcast %273 : vector<1x32xf32> to vector<16x32xf32>
    %295 = arith.mulf %293, %294 : vector<16x32xf32>
    %296 = vector.broadcast %275 : vector<1x32xf32> to vector<16x32xf32>
    %297 = arith.addf %295, %296 : vector<16x32xf32>
    %298 = arith.truncf %297 : vector<16x32xf32> to vector<16x32xbf16>
    %c1_107 = arith.constant 1 : index
    %c0_108 = arith.constant 0 : index
    %c0_109 = arith.constant 0 : index
    %299 = vector.load %arg6[%c1_107, %c0_108, %c0_109] : memref<2x32x96xbf16, #tpu.memory_space<vmem>>, vector<1x32x96xbf16>
    %300 = vector.shape_cast %299 : vector<1x32x96xbf16> to vector<32x96xbf16>
    %cst_110 = arith.constant dense<0.000000e+00> : vector<16x96xf32>
    %301 = tpu.matmul %298, %300, %cst_110 {dimension_numbers = #tpu.dot_dimension_numbers<[1], [0], [0], [1], [0, 0, 1, 1], [], []>} : vector<16x32xbf16>, vector<32x96xbf16>, vector<16x96xf32> -> vector<16x96xf32>
    %c1_111 = arith.constant 1 : index
    %c0_112 = arith.constant 0 : index
    %c0_113 = arith.constant 0 : index
    %302 = vector.load %arg7[%c1_111, %c0_112, %c0_113] : memref<2x1x96xf32, #tpu.memory_space<vmem>>, vector<1x1x96xf32>
    %303 = vector.shape_cast %302 : vector<1x1x96xf32> to vector<1x96xf32>
    %304 = vector.broadcast %303 : vector<1x96xf32> to vector<16x96xf32>
    %305 = arith.addf %301, %304 : vector<16x96xf32>
    %c1_114 = arith.constant 1 : index
    %c0_115 = arith.constant 0 : index
    %c0_116 = arith.constant 0 : index
    %306 = vector.load %arg8[%c1_114, %c0_115, %c0_116] : memref<2x32x32xbf16, #tpu.memory_space<vmem>>, vector<1x32x32xbf16>
    %307 = vector.shape_cast %306 : vector<1x32x32xbf16> to vector<32x32xbf16>
    %308 = vector.extract_strided_slice %305 {offsets = [0, 0], sizes = [8, 32], strides = [1, 1]} : vector<16x96xf32> to vector<8x32xf32>
    %309 = vector.extract_strided_slice %305 {offsets = [0, 32], sizes = [8, 32], strides = [1, 1]} : vector<16x96xf32> to vector<8x32xf32>
    %310 = vector.extract_strided_slice %305 {offsets = [0, 64], sizes = [8, 32], strides = [1, 1]} : vector<16x96xf32> to vector<8x32xf32>
    %311 = vector.extract_strided_slice %308 {offsets = [0, 0], sizes = [8, 8], strides = [1, 1]} : vector<8x32xf32> to vector<8x8xf32>
    %312 = vector.extract_strided_slice %309 {offsets = [0, 0], sizes = [8, 8], strides = [1, 1]} : vector<8x32xf32> to vector<8x8xf32>
    %313 = vector.extract_strided_slice %310 {offsets = [0, 0], sizes = [8, 8], strides = [1, 1]} : vector<8x32xf32> to vector<8x8xf32>
    %cst_117 = arith.constant dense<0.000000e+00> : vector<8x8xf32>
    %314 = tpu.matmul %311, %312, %cst_117 {dimension_numbers = #tpu.dot_dimension_numbers<[1], [1], [0], [0], [0, 0, 1, 0], [], []>} : vector<8x8xf32>, vector<8x8xf32>, vector<8x8xf32> -> vector<8x8xf32>
    %315 = arith.addf %314, %20 : vector<8x8xf32>
    %cst_118 = arith.constant dense<0xFF800000> : vector<8xf32>
    %316 = vector.multi_reduction <maximumf>, %315, %cst_118 [1] : vector<8x8xf32> to vector<8xf32>
    %317 = vector.shape_cast %316 : vector<8xf32> to vector<8x1xf32>
    %318 = vector.broadcast %317 : vector<8x1xf32> to vector<8x8xf32>
    %319 = arith.subf %315, %318 : vector<8x8xf32>
    %320 = math.exp %319 : vector<8x8xf32>
    %cst_119 = arith.constant dense<0.000000e+00> : vector<8xf32>
    %321 = vector.multi_reduction <add>, %320, %cst_119 [1] : vector<8x8xf32> to vector<8xf32>
    %322 = vector.shape_cast %321 : vector<8xf32> to vector<8x1xf32>
    %cst_120 = arith.constant dense<0.000000e+00> : vector<8x8xf32>
    %323 = tpu.matmul %320, %313, %cst_120 {dimension_numbers = #tpu.dot_dimension_numbers<[1], [0], [0], [1], [0, 0, 1, 1], [], []>} : vector<8x8xf32>, vector<8x8xf32>, vector<8x8xf32> -> vector<8x8xf32>
    %324 = tpu.reciprocal %322 {approx = true} : vector<8x1xf32> -> vector<8x1xf32>
    %325 = vector.broadcast %324 : vector<8x1xf32> to vector<8x8xf32>
    %326 = arith.mulf %323, %325 : vector<8x8xf32>
    %327 = arith.truncf %326 : vector<8x8xf32> to vector<8x8xbf16>
    %328 = vector.extract_strided_slice %307 {offsets = [0, 0], sizes = [8, 32], strides = [1, 1]} : vector<32x32xbf16> to vector<8x32xbf16>
    %cst_121 = arith.constant dense<0.000000e+00> : vector<8x32xf32>
    %329 = tpu.matmul %327, %328, %cst_121 {dimension_numbers = #tpu.dot_dimension_numbers<[1], [0], [0], [1], [0, 0, 1, 1], [], []>} : vector<8x8xbf16>, vector<8x32xbf16>, vector<8x32xf32> -> vector<8x32xf32>
    %330 = vector.extract_strided_slice %308 {offsets = [0, 8], sizes = [8, 8], strides = [1, 1]} : vector<8x32xf32> to vector<8x8xf32>
    %331 = vector.extract_strided_slice %309 {offsets = [0, 8], sizes = [8, 8], strides = [1, 1]} : vector<8x32xf32> to vector<8x8xf32>
    %332 = vector.extract_strided_slice %310 {offsets = [0, 8], sizes = [8, 8], strides = [1, 1]} : vector<8x32xf32> to vector<8x8xf32>
    %cst_122 = arith.constant dense<0.000000e+00> : vector<8x8xf32>
    %333 = tpu.matmul %330, %331, %cst_122 {dimension_numbers = #tpu.dot_dimension_numbers<[1], [1], [0], [0], [0, 0, 1, 0], [], []>} : vector<8x8xf32>, vector<8x8xf32>, vector<8x8xf32> -> vector<8x8xf32>
    %334 = arith.addf %333, %20 : vector<8x8xf32>
    %cst_123 = arith.constant dense<0xFF800000> : vector<8xf32>
    %335 = vector.multi_reduction <maximumf>, %334, %cst_123 [1] : vector<8x8xf32> to vector<8xf32>
    %336 = vector.shape_cast %335 : vector<8xf32> to vector<8x1xf32>
    %337 = vector.broadcast %336 : vector<8x1xf32> to vector<8x8xf32>
    %338 = arith.subf %334, %337 : vector<8x8xf32>
    %339 = math.exp %338 : vector<8x8xf32>
    %cst_124 = arith.constant dense<0.000000e+00> : vector<8xf32>
    %340 = vector.multi_reduction <add>, %339, %cst_124 [1] : vector<8x8xf32> to vector<8xf32>
    %341 = vector.shape_cast %340 : vector<8xf32> to vector<8x1xf32>
    %cst_125 = arith.constant dense<0.000000e+00> : vector<8x8xf32>
    %342 = tpu.matmul %339, %332, %cst_125 {dimension_numbers = #tpu.dot_dimension_numbers<[1], [0], [0], [1], [0, 0, 1, 1], [], []>} : vector<8x8xf32>, vector<8x8xf32>, vector<8x8xf32> -> vector<8x8xf32>
    %343 = tpu.reciprocal %341 {approx = true} : vector<8x1xf32> -> vector<8x1xf32>
    %344 = vector.broadcast %343 : vector<8x1xf32> to vector<8x8xf32>
    %345 = arith.mulf %342, %344 : vector<8x8xf32>
    %346 = arith.truncf %345 : vector<8x8xf32> to vector<8x8xbf16>
    %347 = vector.extract_strided_slice %307 {offsets = [8, 0], sizes = [8, 32], strides = [1, 1]} : vector<32x32xbf16> to vector<8x32xbf16>
    %cst_126 = arith.constant dense<0.000000e+00> : vector<8x32xf32>
    %348 = tpu.matmul %346, %347, %cst_126 {dimension_numbers = #tpu.dot_dimension_numbers<[1], [0], [0], [1], [0, 0, 1, 1], [], []>} : vector<8x8xbf16>, vector<8x32xbf16>, vector<8x32xf32> -> vector<8x32xf32>
    %349 = arith.addf %329, %348 : vector<8x32xf32>
    %350 = vector.extract_strided_slice %308 {offsets = [0, 16], sizes = [8, 8], strides = [1, 1]} : vector<8x32xf32> to vector<8x8xf32>
    %351 = vector.extract_strided_slice %309 {offsets = [0, 16], sizes = [8, 8], strides = [1, 1]} : vector<8x32xf32> to vector<8x8xf32>
    %352 = vector.extract_strided_slice %310 {offsets = [0, 16], sizes = [8, 8], strides = [1, 1]} : vector<8x32xf32> to vector<8x8xf32>
    %cst_127 = arith.constant dense<0.000000e+00> : vector<8x8xf32>
    %353 = tpu.matmul %350, %351, %cst_127 {dimension_numbers = #tpu.dot_dimension_numbers<[1], [1], [0], [0], [0, 0, 1, 0], [], []>} : vector<8x8xf32>, vector<8x8xf32>, vector<8x8xf32> -> vector<8x8xf32>
    %354 = arith.addf %353, %20 : vector<8x8xf32>
    %cst_128 = arith.constant dense<0xFF800000> : vector<8xf32>
    %355 = vector.multi_reduction <maximumf>, %354, %cst_128 [1] : vector<8x8xf32> to vector<8xf32>
    %356 = vector.shape_cast %355 : vector<8xf32> to vector<8x1xf32>
    %357 = vector.broadcast %356 : vector<8x1xf32> to vector<8x8xf32>
    %358 = arith.subf %354, %357 : vector<8x8xf32>
    %359 = math.exp %358 : vector<8x8xf32>
    %cst_129 = arith.constant dense<0.000000e+00> : vector<8xf32>
    %360 = vector.multi_reduction <add>, %359, %cst_129 [1] : vector<8x8xf32> to vector<8xf32>
    %361 = vector.shape_cast %360 : vector<8xf32> to vector<8x1xf32>
    %cst_130 = arith.constant dense<0.000000e+00> : vector<8x8xf32>
    %362 = tpu.matmul %359, %352, %cst_130 {dimension_numbers = #tpu.dot_dimension_numbers<[1], [0], [0], [1], [0, 0, 1, 1], [], []>} : vector<8x8xf32>, vector<8x8xf32>, vector<8x8xf32> -> vector<8x8xf32>
    %363 = tpu.reciprocal %361 {approx = true} : vector<8x1xf32> -> vector<8x1xf32>
    %364 = vector.broadcast %363 : vector<8x1xf32> to vector<8x8xf32>
    %365 = arith.mulf %362, %364 : vector<8x8xf32>
    %366 = arith.truncf %365 : vector<8x8xf32> to vector<8x8xbf16>
    %367 = vector.extract_strided_slice %307 {offsets = [16, 0], sizes = [8, 32], strides = [1, 1]} : vector<32x32xbf16> to vector<8x32xbf16>
    %cst_131 = arith.constant dense<0.000000e+00> : vector<8x32xf32>
    %368 = tpu.matmul %366, %367, %cst_131 {dimension_numbers = #tpu.dot_dimension_numbers<[1], [0], [0], [1], [0, 0, 1, 1], [], []>} : vector<8x8xbf16>, vector<8x32xbf16>, vector<8x32xf32> -> vector<8x32xf32>
    %369 = arith.addf %349, %368 : vector<8x32xf32>
    %370 = vector.extract_strided_slice %308 {offsets = [0, 24], sizes = [8, 8], strides = [1, 1]} : vector<8x32xf32> to vector<8x8xf32>
    %371 = vector.extract_strided_slice %309 {offsets = [0, 24], sizes = [8, 8], strides = [1, 1]} : vector<8x32xf32> to vector<8x8xf32>
    %372 = vector.extract_strided_slice %310 {offsets = [0, 24], sizes = [8, 8], strides = [1, 1]} : vector<8x32xf32> to vector<8x8xf32>
    %cst_132 = arith.constant dense<0.000000e+00> : vector<8x8xf32>
    %373 = tpu.matmul %370, %371, %cst_132 {dimension_numbers = #tpu.dot_dimension_numbers<[1], [1], [0], [0], [0, 0, 1, 0], [], []>} : vector<8x8xf32>, vector<8x8xf32>, vector<8x8xf32> -> vector<8x8xf32>
    %374 = arith.addf %373, %20 : vector<8x8xf32>
    %cst_133 = arith.constant dense<0xFF800000> : vector<8xf32>
    %375 = vector.multi_reduction <maximumf>, %374, %cst_133 [1] : vector<8x8xf32> to vector<8xf32>
    %376 = vector.shape_cast %375 : vector<8xf32> to vector<8x1xf32>
    %377 = vector.broadcast %376 : vector<8x1xf32> to vector<8x8xf32>
    %378 = arith.subf %374, %377 : vector<8x8xf32>
    %379 = math.exp %378 : vector<8x8xf32>
    %cst_134 = arith.constant dense<0.000000e+00> : vector<8xf32>
    %380 = vector.multi_reduction <add>, %379, %cst_134 [1] : vector<8x8xf32> to vector<8xf32>
    %381 = vector.shape_cast %380 : vector<8xf32> to vector<8x1xf32>
    %cst_135 = arith.constant dense<0.000000e+00> : vector<8x8xf32>
    %382 = tpu.matmul %379, %372, %cst_135 {dimension_numbers = #tpu.dot_dimension_numbers<[1], [0], [0], [1], [0, 0, 1, 1], [], []>} : vector<8x8xf32>, vector<8x8xf32>, vector<8x8xf32> -> vector<8x8xf32>
    %383 = tpu.reciprocal %381 {approx = true} : vector<8x1xf32> -> vector<8x1xf32>
    %384 = vector.broadcast %383 : vector<8x1xf32> to vector<8x8xf32>
    %385 = arith.mulf %382, %384 : vector<8x8xf32>
    %386 = arith.truncf %385 : vector<8x8xf32> to vector<8x8xbf16>
    %387 = vector.extract_strided_slice %307 {offsets = [24, 0], sizes = [8, 32], strides = [1, 1]} : vector<32x32xbf16> to vector<8x32xbf16>
    %cst_136 = arith.constant dense<0.000000e+00> : vector<8x32xf32>
    %388 = tpu.matmul %386, %387, %cst_136 {dimension_numbers = #tpu.dot_dimension_numbers<[1], [0], [0], [1], [0, 0, 1, 1], [], []>} : vector<8x8xbf16>, vector<8x32xbf16>, vector<8x32xf32> -> vector<8x32xf32>
    %389 = arith.addf %369, %388 : vector<8x32xf32>
    %390 = vector.extract_strided_slice %305 {offsets = [8, 0], sizes = [8, 32], strides = [1, 1]} : vector<16x96xf32> to vector<8x32xf32>
    %391 = vector.extract_strided_slice %305 {offsets = [8, 32], sizes = [8, 32], strides = [1, 1]} : vector<16x96xf32> to vector<8x32xf32>
    %392 = vector.extract_strided_slice %305 {offsets = [8, 64], sizes = [8, 32], strides = [1, 1]} : vector<16x96xf32> to vector<8x32xf32>
    %393 = vector.extract_strided_slice %390 {offsets = [0, 0], sizes = [8, 8], strides = [1, 1]} : vector<8x32xf32> to vector<8x8xf32>
    %394 = vector.extract_strided_slice %391 {offsets = [0, 0], sizes = [8, 8], strides = [1, 1]} : vector<8x32xf32> to vector<8x8xf32>
    %395 = vector.extract_strided_slice %392 {offsets = [0, 0], sizes = [8, 8], strides = [1, 1]} : vector<8x32xf32> to vector<8x8xf32>
    %cst_137 = arith.constant dense<0.000000e+00> : vector<8x8xf32>
    %396 = tpu.matmul %393, %394, %cst_137 {dimension_numbers = #tpu.dot_dimension_numbers<[1], [1], [0], [0], [0, 0, 1, 0], [], []>} : vector<8x8xf32>, vector<8x8xf32>, vector<8x8xf32> -> vector<8x8xf32>
    %397 = arith.addf %396, %20 : vector<8x8xf32>
    %cst_138 = arith.constant dense<0xFF800000> : vector<8xf32>
    %398 = vector.multi_reduction <maximumf>, %397, %cst_138 [1] : vector<8x8xf32> to vector<8xf32>
    %399 = vector.shape_cast %398 : vector<8xf32> to vector<8x1xf32>
    %400 = vector.broadcast %399 : vector<8x1xf32> to vector<8x8xf32>
    %401 = arith.subf %397, %400 : vector<8x8xf32>
    %402 = math.exp %401 : vector<8x8xf32>
    %cst_139 = arith.constant dense<0.000000e+00> : vector<8xf32>
    %403 = vector.multi_reduction <add>, %402, %cst_139 [1] : vector<8x8xf32> to vector<8xf32>
    %404 = vector.shape_cast %403 : vector<8xf32> to vector<8x1xf32>
    %cst_140 = arith.constant dense<0.000000e+00> : vector<8x8xf32>
    %405 = tpu.matmul %402, %395, %cst_140 {dimension_numbers = #tpu.dot_dimension_numbers<[1], [0], [0], [1], [0, 0, 1, 1], [], []>} : vector<8x8xf32>, vector<8x8xf32>, vector<8x8xf32> -> vector<8x8xf32>
    %406 = tpu.reciprocal %404 {approx = true} : vector<8x1xf32> -> vector<8x1xf32>
    %407 = vector.broadcast %406 : vector<8x1xf32> to vector<8x8xf32>
    %408 = arith.mulf %405, %407 : vector<8x8xf32>
    %409 = arith.truncf %408 : vector<8x8xf32> to vector<8x8xbf16>
    %410 = vector.extract_strided_slice %307 {offsets = [0, 0], sizes = [8, 32], strides = [1, 1]} : vector<32x32xbf16> to vector<8x32xbf16>
    %cst_141 = arith.constant dense<0.000000e+00> : vector<8x32xf32>
    %411 = tpu.matmul %409, %410, %cst_141 {dimension_numbers = #tpu.dot_dimension_numbers<[1], [0], [0], [1], [0, 0, 1, 1], [], []>} : vector<8x8xbf16>, vector<8x32xbf16>, vector<8x32xf32> -> vector<8x32xf32>
    %412 = vector.extract_strided_slice %390 {offsets = [0, 8], sizes = [8, 8], strides = [1, 1]} : vector<8x32xf32> to vector<8x8xf32>
    %413 = vector.extract_strided_slice %391 {offsets = [0, 8], sizes = [8, 8], strides = [1, 1]} : vector<8x32xf32> to vector<8x8xf32>
    %414 = vector.extract_strided_slice %392 {offsets = [0, 8], sizes = [8, 8], strides = [1, 1]} : vector<8x32xf32> to vector<8x8xf32>
    %cst_142 = arith.constant dense<0.000000e+00> : vector<8x8xf32>
    %415 = tpu.matmul %412, %413, %cst_142 {dimension_numbers = #tpu.dot_dimension_numbers<[1], [1], [0], [0], [0, 0, 1, 0], [], []>} : vector<8x8xf32>, vector<8x8xf32>, vector<8x8xf32> -> vector<8x8xf32>
    %416 = arith.addf %415, %20 : vector<8x8xf32>
    %cst_143 = arith.constant dense<0xFF800000> : vector<8xf32>
    %417 = vector.multi_reduction <maximumf>, %416, %cst_143 [1] : vector<8x8xf32> to vector<8xf32>
    %418 = vector.shape_cast %417 : vector<8xf32> to vector<8x1xf32>
    %419 = vector.broadcast %418 : vector<8x1xf32> to vector<8x8xf32>
    %420 = arith.subf %416, %419 : vector<8x8xf32>
    %421 = math.exp %420 : vector<8x8xf32>
    %cst_144 = arith.constant dense<0.000000e+00> : vector<8xf32>
    %422 = vector.multi_reduction <add>, %421, %cst_144 [1] : vector<8x8xf32> to vector<8xf32>
    %423 = vector.shape_cast %422 : vector<8xf32> to vector<8x1xf32>
    %cst_145 = arith.constant dense<0.000000e+00> : vector<8x8xf32>
    %424 = tpu.matmul %421, %414, %cst_145 {dimension_numbers = #tpu.dot_dimension_numbers<[1], [0], [0], [1], [0, 0, 1, 1], [], []>} : vector<8x8xf32>, vector<8x8xf32>, vector<8x8xf32> -> vector<8x8xf32>
    %425 = tpu.reciprocal %423 {approx = true} : vector<8x1xf32> -> vector<8x1xf32>
    %426 = vector.broadcast %425 : vector<8x1xf32> to vector<8x8xf32>
    %427 = arith.mulf %424, %426 : vector<8x8xf32>
    %428 = arith.truncf %427 : vector<8x8xf32> to vector<8x8xbf16>
    %429 = vector.extract_strided_slice %307 {offsets = [8, 0], sizes = [8, 32], strides = [1, 1]} : vector<32x32xbf16> to vector<8x32xbf16>
    %cst_146 = arith.constant dense<0.000000e+00> : vector<8x32xf32>
    %430 = tpu.matmul %428, %429, %cst_146 {dimension_numbers = #tpu.dot_dimension_numbers<[1], [0], [0], [1], [0, 0, 1, 1], [], []>} : vector<8x8xbf16>, vector<8x32xbf16>, vector<8x32xf32> -> vector<8x32xf32>
    %431 = arith.addf %411, %430 : vector<8x32xf32>
    %432 = vector.extract_strided_slice %390 {offsets = [0, 16], sizes = [8, 8], strides = [1, 1]} : vector<8x32xf32> to vector<8x8xf32>
    %433 = vector.extract_strided_slice %391 {offsets = [0, 16], sizes = [8, 8], strides = [1, 1]} : vector<8x32xf32> to vector<8x8xf32>
    %434 = vector.extract_strided_slice %392 {offsets = [0, 16], sizes = [8, 8], strides = [1, 1]} : vector<8x32xf32> to vector<8x8xf32>
    %cst_147 = arith.constant dense<0.000000e+00> : vector<8x8xf32>
    %435 = tpu.matmul %432, %433, %cst_147 {dimension_numbers = #tpu.dot_dimension_numbers<[1], [1], [0], [0], [0, 0, 1, 0], [], []>} : vector<8x8xf32>, vector<8x8xf32>, vector<8x8xf32> -> vector<8x8xf32>
    %436 = arith.addf %435, %20 : vector<8x8xf32>
    %cst_148 = arith.constant dense<0xFF800000> : vector<8xf32>
    %437 = vector.multi_reduction <maximumf>, %436, %cst_148 [1] : vector<8x8xf32> to vector<8xf32>
    %438 = vector.shape_cast %437 : vector<8xf32> to vector<8x1xf32>
    %439 = vector.broadcast %438 : vector<8x1xf32> to vector<8x8xf32>
    %440 = arith.subf %436, %439 : vector<8x8xf32>
    %441 = math.exp %440 : vector<8x8xf32>
    %cst_149 = arith.constant dense<0.000000e+00> : vector<8xf32>
    %442 = vector.multi_reduction <add>, %441, %cst_149 [1] : vector<8x8xf32> to vector<8xf32>
    %443 = vector.shape_cast %442 : vector<8xf32> to vector<8x1xf32>
    %cst_150 = arith.constant dense<0.000000e+00> : vector<8x8xf32>
    %444 = tpu.matmul %441, %434, %cst_150 {dimension_numbers = #tpu.dot_dimension_numbers<[1], [0], [0], [1], [0, 0, 1, 1], [], []>} : vector<8x8xf32>, vector<8x8xf32>, vector<8x8xf32> -> vector<8x8xf32>
    %445 = tpu.reciprocal %443 {approx = true} : vector<8x1xf32> -> vector<8x1xf32>
    %446 = vector.broadcast %445 : vector<8x1xf32> to vector<8x8xf32>
    %447 = arith.mulf %444, %446 : vector<8x8xf32>
    %448 = arith.truncf %447 : vector<8x8xf32> to vector<8x8xbf16>
    %449 = vector.extract_strided_slice %307 {offsets = [16, 0], sizes = [8, 32], strides = [1, 1]} : vector<32x32xbf16> to vector<8x32xbf16>
    %cst_151 = arith.constant dense<0.000000e+00> : vector<8x32xf32>
    %450 = tpu.matmul %448, %449, %cst_151 {dimension_numbers = #tpu.dot_dimension_numbers<[1], [0], [0], [1], [0, 0, 1, 1], [], []>} : vector<8x8xbf16>, vector<8x32xbf16>, vector<8x32xf32> -> vector<8x32xf32>
    %451 = arith.addf %431, %450 : vector<8x32xf32>
    %452 = vector.extract_strided_slice %390 {offsets = [0, 24], sizes = [8, 8], strides = [1, 1]} : vector<8x32xf32> to vector<8x8xf32>
    %453 = vector.extract_strided_slice %391 {offsets = [0, 24], sizes = [8, 8], strides = [1, 1]} : vector<8x32xf32> to vector<8x8xf32>
    %454 = vector.extract_strided_slice %392 {offsets = [0, 24], sizes = [8, 8], strides = [1, 1]} : vector<8x32xf32> to vector<8x8xf32>
    %cst_152 = arith.constant dense<0.000000e+00> : vector<8x8xf32>
    %455 = tpu.matmul %452, %453, %cst_152 {dimension_numbers = #tpu.dot_dimension_numbers<[1], [1], [0], [0], [0, 0, 1, 0], [], []>} : vector<8x8xf32>, vector<8x8xf32>, vector<8x8xf32> -> vector<8x8xf32>
    %456 = arith.addf %455, %20 : vector<8x8xf32>
    %cst_153 = arith.constant dense<0xFF800000> : vector<8xf32>
    %457 = vector.multi_reduction <maximumf>, %456, %cst_153 [1] : vector<8x8xf32> to vector<8xf32>
    %458 = vector.shape_cast %457 : vector<8xf32> to vector<8x1xf32>
    %459 = vector.broadcast %458 : vector<8x1xf32> to vector<8x8xf32>
    %460 = arith.subf %456, %459 : vector<8x8xf32>
    %461 = math.exp %460 : vector<8x8xf32>
    %cst_154 = arith.constant dense<0.000000e+00> : vector<8xf32>
    %462 = vector.multi_reduction <add>, %461, %cst_154 [1] : vector<8x8xf32> to vector<8xf32>
    %463 = vector.shape_cast %462 : vector<8xf32> to vector<8x1xf32>
    %cst_155 = arith.constant dense<0.000000e+00> : vector<8x8xf32>
    %464 = tpu.matmul %461, %454, %cst_155 {dimension_numbers = #tpu.dot_dimension_numbers<[1], [0], [0], [1], [0, 0, 1, 1], [], []>} : vector<8x8xf32>, vector<8x8xf32>, vector<8x8xf32> -> vector<8x8xf32>
    %465 = tpu.reciprocal %463 {approx = true} : vector<8x1xf32> -> vector<8x1xf32>
    %466 = vector.broadcast %465 : vector<8x1xf32> to vector<8x8xf32>
    %467 = arith.mulf %464, %466 : vector<8x8xf32>
    %468 = arith.truncf %467 : vector<8x8xf32> to vector<8x8xbf16>
    %469 = vector.extract_strided_slice %307 {offsets = [24, 0], sizes = [8, 32], strides = [1, 1]} : vector<32x32xbf16> to vector<8x32xbf16>
    %cst_156 = arith.constant dense<0.000000e+00> : vector<8x32xf32>
    %470 = tpu.matmul %468, %469, %cst_156 {dimension_numbers = #tpu.dot_dimension_numbers<[1], [0], [0], [1], [0, 0, 1, 1], [], []>} : vector<8x8xbf16>, vector<8x32xbf16>, vector<8x32xf32> -> vector<8x32xf32>
    %471 = arith.addf %451, %470 : vector<8x32xf32>
    %472 = tpu.concatenate %389, %471 in 0 : vector<8x32xf32>, vector<8x32xf32> -> vector<16x32xf32>
    %473 = arith.addf %271, %472 : vector<16x32xf32>
    %c1_157 = arith.constant 1 : index
    %c0_158 = arith.constant 0 : index
    %c0_159 = arith.constant 0 : index
    %474 = vector.load %arg9[%c1_157, %c0_158, %c0_159] : memref<2x1x32xf32, #tpu.memory_space<vmem>>, vector<1x1x32xf32>
    %475 = vector.shape_cast %474 : vector<1x1x32xf32> to vector<1x32xf32>
    %476 = vector.broadcast %475 : vector<1x32xf32> to vector<16x32xf32>
    %477 = arith.addf %473, %476 : vector<16x32xf32>
    %c1_160 = arith.constant 1 : index
    %c0_161 = arith.constant 0 : index
    %c0_162 = arith.constant 0 : index
    %478 = vector.load %arg10[%c1_160, %c0_161, %c0_162] : memref<2x1x32xf32, #tpu.memory_space<vmem>>, vector<1x1x32xf32>
    %479 = vector.shape_cast %478 : vector<1x1x32xf32> to vector<1x32xf32>
    %c1_163 = arith.constant 1 : index
    %c0_164 = arith.constant 0 : index
    %c0_165 = arith.constant 0 : index
    %480 = vector.load %arg11[%c1_163, %c0_164, %c0_165] : memref<2x1x32xf32, #tpu.memory_space<vmem>>, vector<1x1x32xf32>
    %481 = vector.shape_cast %480 : vector<1x1x32xf32> to vector<1x32xf32>
    %cst_166 = arith.constant dense<0.000000e+00> : vector<16xf32>
    %482 = vector.multi_reduction <add>, %477, %cst_166 [1] : vector<16x32xf32> to vector<16xf32>
    %483 = vector.shape_cast %482 : vector<16xf32> to vector<16x1xf32>
    %cst_167 = arith.constant 3.200000e+01 : f32
    %484 = vector.broadcast %cst_167 : f32 to vector<16x1xf32>
    %485 = arith.divf %483, %484 : vector<16x1xf32>
    %486 = vector.broadcast %485 : vector<16x1xf32> to vector<16x32xf32>
    %487 = arith.subf %477, %486 : vector<16x32xf32>
    %488 = arith.mulf %487, %487 : vector<16x32xf32>
    %cst_168 = arith.constant dense<0.000000e+00> : vector<16xf32>
    %489 = vector.multi_reduction <add>, %488, %cst_168 [1] : vector<16x32xf32> to vector<16xf32>
    %490 = vector.shape_cast %489 : vector<16xf32> to vector<16x1xf32>
    %cst_169 = arith.constant 3.200000e+01 : f32
    %491 = vector.broadcast %cst_169 : f32 to vector<16x1xf32>
    %492 = arith.divf %490, %491 : vector<16x1xf32>
    %493 = vector.broadcast %485 : vector<16x1xf32> to vector<16x32xf32>
    %494 = arith.subf %477, %493 : vector<16x32xf32>
    %cst_170 = arith.constant 9.99999974E-6 : f32
    %495 = vector.broadcast %cst_170 : f32 to vector<16x1xf32>
    %496 = arith.addf %492, %495 : vector<16x1xf32>
    %497 = math.rsqrt %496 : vector<16x1xf32>
    %498 = vector.broadcast %497 : vector<16x1xf32> to vector<16x32xf32>
    %499 = arith.mulf %494, %498 : vector<16x32xf32>
    %500 = vector.broadcast %479 : vector<1x32xf32> to vector<16x32xf32>
    %501 = arith.mulf %499, %500 : vector<16x32xf32>
    %502 = vector.broadcast %481 : vector<1x32xf32> to vector<16x32xf32>
    %503 = arith.addf %501, %502 : vector<16x32xf32>
    %504 = arith.truncf %503 : vector<16x32xf32> to vector<16x32xbf16>
    %c1_171 = arith.constant 1 : index
    %c0_172 = arith.constant 0 : index
    %c0_173 = arith.constant 0 : index
    %505 = vector.load %arg12[%c1_171, %c0_172, %c0_173] : memref<2x32x64xbf16, #tpu.memory_space<vmem>>, vector<1x32x64xbf16>
    %506 = vector.shape_cast %505 : vector<1x32x64xbf16> to vector<32x64xbf16>
    %cst_174 = arith.constant dense<0.000000e+00> : vector<16x64xf32>
    %507 = tpu.matmul %504, %506, %cst_174 {dimension_numbers = #tpu.dot_dimension_numbers<[1], [0], [0], [1], [0, 0, 1, 1], [], []>} : vector<16x32xbf16>, vector<32x64xbf16>, vector<16x64xf32> -> vector<16x64xf32>
    %c1_175 = arith.constant 1 : index
    %c0_176 = arith.constant 0 : index
    %c0_177 = arith.constant 0 : index
    %508 = vector.load %arg13[%c1_175, %c0_176, %c0_177] : memref<2x1x64xf32, #tpu.memory_space<vmem>>, vector<1x1x64xf32>
    %509 = vector.shape_cast %508 : vector<1x1x64xf32> to vector<1x64xf32>
    %510 = vector.broadcast %509 : vector<1x64xf32> to vector<16x64xf32>
    %511 = arith.addf %507, %510 : vector<16x64xf32>
    %cst_178 = arith.constant 0.000000e+00 : f32
    %512 = vector.broadcast %cst_178 : f32 to vector<16x64xf32>
    %513 = arith.maximumf %511, %512 : vector<16x64xf32>
    %514 = arith.truncf %513 : vector<16x64xf32> to vector<16x64xbf16>
    %c1_179 = arith.constant 1 : index
    %c0_180 = arith.constant 0 : index
    %c0_181 = arith.constant 0 : index
    %515 = vector.load %arg14[%c1_179, %c0_180, %c0_181] : memref<2x64x32xbf16, #tpu.memory_space<vmem>>, vector<1x64x32xbf16>
    %516 = vector.shape_cast %515 : vector<1x64x32xbf16> to vector<64x32xbf16>
    %cst_182 = arith.constant dense<0.000000e+00> : vector<16x32xf32>
    %517 = tpu.matmul %514, %516, %cst_182 {dimension_numbers = #tpu.dot_dimension_numbers<[1], [0], [0], [1], [0, 0, 1, 1], [], []>} : vector<16x64xbf16>, vector<64x32xbf16>, vector<16x32xf32> -> vector<16x32xf32>
    %c1_183 = arith.constant 1 : index
    %c0_184 = arith.constant 0 : index
    %c0_185 = arith.constant 0 : index
    %518 = vector.load %arg15[%c1_183, %c0_184, %c0_185] : memref<2x1x32xf32, #tpu.memory_space<vmem>>, vector<1x1x32xf32>
    %519 = vector.shape_cast %518 : vector<1x1x32xf32> to vector<1x32xf32>
    %520 = vector.broadcast %519 : vector<1x32xf32> to vector<16x32xf32>
    %521 = arith.addf %517, %520 : vector<16x32xf32>
    %522 = arith.addf %477, %521 : vector<16x32xf32>
    %c0_186 = arith.constant 0 : index
    %c0_187 = arith.constant 0 : index
    %523 = vector.load %arg16[%c0_186, %c0_187] : memref<1x32xf32, #tpu.memory_space<vmem>>, vector<1x32xf32>
    %c0_188 = arith.constant 0 : index
    %c0_189 = arith.constant 0 : index
    %524 = vector.load %arg17[%c0_188, %c0_189] : memref<1x32xf32, #tpu.memory_space<vmem>>, vector<1x32xf32>
    %cst_190 = arith.constant dense<0.000000e+00> : vector<16xf32>
    %525 = vector.multi_reduction <add>, %522, %cst_190 [1] : vector<16x32xf32> to vector<16xf32>
    %526 = vector.shape_cast %525 : vector<16xf32> to vector<16x1xf32>
    %cst_191 = arith.constant 3.200000e+01 : f32
    %527 = vector.broadcast %cst_191 : f32 to vector<16x1xf32>
    %528 = arith.divf %526, %527 : vector<16x1xf32>
    %529 = vector.broadcast %528 : vector<16x1xf32> to vector<16x32xf32>
    %530 = arith.subf %522, %529 : vector<16x32xf32>
    %531 = arith.mulf %530, %530 : vector<16x32xf32>
    %cst_192 = arith.constant dense<0.000000e+00> : vector<16xf32>
    %532 = vector.multi_reduction <add>, %531, %cst_192 [1] : vector<16x32xf32> to vector<16xf32>
    %533 = vector.shape_cast %532 : vector<16xf32> to vector<16x1xf32>
    %cst_193 = arith.constant 3.200000e+01 : f32
    %534 = vector.broadcast %cst_193 : f32 to vector<16x1xf32>
    %535 = arith.divf %533, %534 : vector<16x1xf32>
    %536 = vector.broadcast %528 : vector<16x1xf32> to vector<16x32xf32>
    %537 = arith.subf %522, %536 : vector<16x32xf32>
    %cst_194 = arith.constant 9.99999974E-6 : f32
    %538 = vector.broadcast %cst_194 : f32 to vector<16x1xf32>
    %539 = arith.addf %535, %538 : vector<16x1xf32>
    %540 = math.rsqrt %539 : vector<16x1xf32>
    %541 = vector.broadcast %540 : vector<16x1xf32> to vector<16x32xf32>
    %542 = arith.mulf %537, %541 : vector<16x32xf32>
    %543 = vector.broadcast %523 : vector<1x32xf32> to vector<16x32xf32>
    %544 = arith.mulf %542, %543 : vector<16x32xf32>
    %545 = vector.broadcast %524 : vector<1x32xf32> to vector<16x32xf32>
    %546 = arith.addf %544, %545 : vector<16x32xf32>
    %547 = arith.truncf %546 : vector<16x32xf32> to vector<16x32xbf16>
    %c0_195 = arith.constant 0 : index
    %c0_196 = arith.constant 0 : index
    %548 = vector.load %arg18[%c0_195, %c0_196] : memref<32x128xbf16, #tpu.memory_space<vmem>>, vector<32x128xbf16>
    %cst_197 = arith.constant dense<0.000000e+00> : vector<16x128xf32>
    %549 = tpu.matmul %547, %548, %cst_197 {dimension_numbers = #tpu.dot_dimension_numbers<[1], [0], [0], [1], [0, 0, 1, 1], [], []>} : vector<16x32xbf16>, vector<32x128xbf16>, vector<16x128xf32> -> vector<16x128xf32>
    %c0_198 = arith.constant 0 : index
    %c0_199 = arith.constant 0 : index
    %550 = vector.load %arg19[%c0_198, %c0_199] : memref<1x128xf32, #tpu.memory_space<vmem>>, vector<1x128xf32>
    %551 = vector.broadcast %550 : vector<1x128xf32> to vector<16x128xf32>
    %552 = arith.addf %549, %551 : vector<16x128xf32>
    %c0_200 = arith.constant 0 : index
    %c0_201 = arith.constant 0 : index
    %553 = vector.load %arg21[%c0_200, %c0_201] : memref<16x128xf32, #tpu.memory_space<vmem>>, vector<16x128xf32>
    tpu.vector_store %arg21[%c0_200, %c0_201], %552 {strides = array<i32>} : memref<16x128xf32, #tpu.memory_space<vmem>>, vector<16x128xf32>,
    %cst_202 = arith.constant dense<0xFF800000> : vector<16xf32>
    %554 = vector.multi_reduction <maximumf>, %552, %cst_202 [1] : vector<16x128xf32> to vector<16xf32>
    %555 = vector.shape_cast %554 : vector<16xf32> to vector<16x1xf32>
    %556 = vector.broadcast %555 : vector<16x1xf32> to vector<16x128xf32>
    %557 = arith.subf %552, %556 : vector<16x128xf32>
    %558 = math.exp %557 : vector<16x128xf32>
    %cst_203 = arith.constant dense<0.000000e+00> : vector<16xf32>
    %559 = vector.multi_reduction <add>, %558, %cst_203 [1] : vector<16x128xf32> to vector<16xf32>
    %560 = vector.shape_cast %559 : vector<16xf32> to vector<16x1xf32>
    %561 = math.log %560 : vector<16x1xf32>
    %562 = arith.addf %561, %555 : vector<16x1xf32>
    %563 = tpu.iota {dimensions = array<i32: 1>} : vector<16x128xi32>
    %c0_204 = arith.constant 0 : index
    %c0_205 = arith.constant 0 : index
    %564 = vector.load %arg20[%c0_204, %c0_205] : memref<16x1xi32, #tpu.memory_space<vmem>>, vector<16x1xi32>
    %565 = vector.broadcast %564 : vector<16x1xi32> to vector<16x128xi32>
    %566 = arith.cmpi eq, %563, %565 : vector<16x128xi32>
    %567 = arith.extui %566 : vector<16x128xi1> to vector<16x128xi32>
    %568 = arith.sitofp %567 : vector<16x128xi32> to vector<16x128xf32>
    %569 = arith.mulf %552, %568 : vector<16x128xf32>
    %cst_206 = arith.constant dense<0.000000e+00> : vector<16xf32>
    %570 = vector.multi_reduction <add>, %569, %cst_206 [1] : vector<16x128xf32> to vector<16xf32>
    %571 = vector.shape_cast %570 : vector<16xf32> to vector<16x1xf32>
    %572 = arith.subf %562, %571 : vector<16x1xf32>
    %573 = vector.shape_cast %572 : vector<16x1xf32> to vector<1x16x1xf32>
    %cst_207 = arith.constant dense<0.000000e+00> : vector<1xf32>
    %574 = vector.multi_reduction <add>, %573, %cst_207 [1, 2] : vector<1x16x1xf32> to vector<1xf32>
    %575 = vector.shape_cast %574 : vector<1xf32> to vector<1x1x1xf32>
    %576 = vector.extract %575[0, 0, 0] : f32 from vector<1x1x1xf32>
    %577 = vector.broadcast %576 : f32 to vector<1x1xf32>
    %c0_208 = arith.constant 0 : index
    %c0_209 = arith.constant 0 : index
    %c0_210 = arith.constant 0 : index
    %578 = vector.load %arg22[%c0_208, %c0_209, %c0_210] : memref<1x1x1xf32, #tpu.memory_space<vmem>>, vector<1x1x1xf32>
    %579 = vector.shape_cast %578 : vector<1x1x1xf32> to vector<1x1xf32>
    %580 = vector.shape_cast %577 : vector<1x1xf32> to vector<1x1x1xf32>
    tpu.vector_store %arg22[%c0_208, %c0_209, %c0_210], %580 {strides = array<i32>} : memref<1x1x1xf32, #tpu.memory_space<vmem>>, vector<1x1x1xf32>,
    return
  }
  func.func @transform_0(%arg0: i32) -> (i32, i32) {
    %c0_i32 = arith.constant 0 : i32
    %c0_i32_0 = arith.constant 0 : i32
    return %arg0, %c0_i32 : i32, i32
  }
  func.func @transform_1(%arg0: i32) -> (i32, i32) {
    %c0_i32 = arith.constant 0 : i32
    %c0_i32_0 = arith.constant 0 : i32
    %c0_i32_1 = arith.constant 0 : i32
    return %c0_i32, %c0_i32_0 : i32, i32
  }
  func.func @transform_2(%arg0: i32) -> (i32, i32) {
    %c0_i32 = arith.constant 0 : i32
    %c0_i32_0 = arith.constant 0 : i32
    %c0_i32_1 = arith.constant 0 : i32
    return %c0_i32, %c0_i32_0 : i32, i32
  }
  func.func @transform_3(%arg0: i32) -> (i32, i32, i32) {
    %c0_i32 = arith.constant 0 : i32
    %c0_i32_0 = arith.constant 0 : i32
    %c0_i32_1 = arith.constant 0 : i32
    %c0_i32_2 = arith.constant 0 : i32
    return %c0_i32, %c0_i32_0, %c0_i32_1 : i32, i32, i32
  }
  func.func @transform_4(%arg0: i32) -> (i32, i32, i32) {
    %c0_i32 = arith.constant 0 : i32
    %c0_i32_0 = arith.constant 0 : i32
    %c0_i32_1 = arith.constant 0 : i32
    %c0_i32_2 = arith.constant 0 : i32
    return %c0_i32, %c0_i32_0, %c0_i32_1 : i32, i32, i32
  }
  func.func @transform_5(%arg0: i32) -> (i32, i32, i32) {
    %c0_i32 = arith.constant 0 : i32
    %c0_i32_0 = arith.constant 0 : i32
    %c0_i32_1 = arith.constant 0 : i32
    %c0_i32_2 = arith.constant 0 : i32
    return %c0_i32, %c0_i32_0, %c0_i32_1 : i32, i32, i32
  }
  func.func @transform_6(%arg0: i32) -> (i32, i32, i32) {
    %c0_i32 = arith.constant 0 : i32
    %c0_i32_0 = arith.constant 0 : i32
    %c0_i32_1 = arith.constant 0 : i32
    %c0_i32_2 = arith.constant 0 : i32
    return %c0_i32, %c0_i32_0, %c0_i32_1 : i32, i32, i32
  }
  func.func @transform_7(%arg0: i32) -> (i32, i32, i32) {
    %c0_i32 = arith.constant 0 : i32
    %c0_i32_0 = arith.constant 0 : i32
    %c0_i32_1 = arith.constant 0 : i32
    %c0_i32_2 = arith.constant 0 : i32
    return %c0_i32, %c0_i32_0, %c0_i32_1 : i32, i32, i32
  }
  func.func @transform_8(%arg0: i32) -> (i32, i32, i32) {
    %c0_i32 = arith.constant 0 : i32
    %c0_i32_0 = arith.constant 0 : i32
    %c0_i32_1 = arith.constant 0 : i32
    %c0_i32_2 = arith.constant 0 : i32
    return %c0_i32, %c0_i32_0, %c0_i32_1 : i32, i32, i32
  }
  func.func @transform_9(%arg0: i32) -> (i32, i32, i32) {
    %c0_i32 = arith.constant 0 : i32
    %c0_i32_0 = arith.constant 0 : i32
    %c0_i32_1 = arith.constant 0 : i32
    %c0_i32_2 = arith.constant 0 : i32
    return %c0_i32, %c0_i32_0, %c0_i32_1 : i32, i32, i32
  }
  func.func @transform_10(%arg0: i32) -> (i32, i32, i32) {
    %c0_i32 = arith.constant 0 : i32
    %c0_i32_0 = arith.constant 0 : i32
    %c0_i32_1 = arith.constant 0 : i32
    %c0_i32_2 = arith.constant 0 : i32
    return %c0_i32, %c0_i32_0, %c0_i32_1 : i32, i32, i32
  }
  func.func @transform_11(%arg0: i32) -> (i32, i32, i32) {
    %c0_i32 = arith.constant 0 : i32
    %c0_i32_0 = arith.constant 0 : i32
    %c0_i32_1 = arith.constant 0 : i32
    %c0_i32_2 = arith.constant 0 : i32
    return %c0_i32, %c0_i32_0, %c0_i32_1 : i32, i32, i32
  }
  func.func @transform_12(%arg0: i32) -> (i32, i32, i32) {
    %c0_i32 = arith.constant 0 : i32
    %c0_i32_0 = arith.constant 0 : i32
    %c0_i32_1 = arith.constant 0 : i32
    %c0_i32_2 = arith.constant 0 : i32
    return %c0_i32, %c0_i32_0, %c0_i32_1 : i32, i32, i32
  }
  func.func @transform_13(%arg0: i32) -> (i32, i32, i32) {
    %c0_i32 = arith.constant 0 : i32
    %c0_i32_0 = arith.constant 0 : i32
    %c0_i32_1 = arith.constant 0 : i32
    %c0_i32_2 = arith.constant 0 : i32
    return %c0_i32, %c0_i32_0, %c0_i32_1 : i32, i32, i32
  }
  func.func @transform_14(%arg0: i32) -> (i32, i32, i32) {
    %c0_i32 = arith.constant 0 : i32
    %c0_i32_0 = arith.constant 0 : i32
    %c0_i32_1 = arith.constant 0 : i32
    %c0_i32_2 = arith.constant 0 : i32
    return %c0_i32, %c0_i32_0, %c0_i32_1 : i32, i32, i32
  }
  func.func @transform_15(%arg0: i32) -> (i32, i32) {
    %c0_i32 = arith.constant 0 : i32
    %c0_i32_0 = arith.constant 0 : i32
    %c0_i32_1 = arith.constant 0 : i32
    return %c0_i32, %c0_i32_0 : i32, i32
  }
  func.func @transform_16(%arg0: i32) -> (i32, i32) {
    %c0_i32 = arith.constant 0 : i32
    %c0_i32_0 = arith.constant 0 : i32
    %c0_i32_1 = arith.constant 0 : i32
    return %c0_i32, %c0_i32_0 : i32, i32
  }
  func.func @transform_17(%arg0: i32) -> (i32, i32) {
    %c0_i32 = arith.constant 0 : i32
    %c0_i32_0 = arith.constant 0 : i32
    %c0_i32_1 = arith.constant 0 : i32
    return %c0_i32, %c0_i32_0 : i32, i32
  }
  func.func @transform_18(%arg0: i32) -> (i32, i32) {
    %c0_i32 = arith.constant 0 : i32
    %c0_i32_0 = arith.constant 0 : i32
    %c0_i32_1 = arith.constant 0 : i32
    return %c0_i32, %c0_i32_0 : i32, i32
  }
  func.func @transform_19(%arg0: i32) -> (i32, i32) {
    %c0_i32 = arith.constant 0 : i32
    %c0_i32_0 = arith.constant 0 : i32
    return %arg0, %c0_i32 : i32, i32
  }
  func.func @transform_20(%arg0: i32) -> (i32, i32) {
    %c0_i32 = arith.constant 0 : i32
    %c0_i32_0 = arith.constant 0 : i32
    return %arg0, %c0_i32 : i32, i32
  }
  func.func @transform_21(%arg0: i32) -> (i32, i32, i32) {
    %c0_i32 = arith.constant 0 : i32
    %c0_i32_0 = arith.constant 0 : i32
    %c0_i32_1 = arith.constant 0 : i32
    return %arg0, %c0_i32, %c0_i32_0 : i32, i32, i32
  }
}

</mosaic_0001>

<llo_original>
// kernel: tpu_custom_call.1
$region0: #{tpu_custom_call.1}
  #allocation0 [shape = 'u32[]', space=smem, size = 0x4, offset = 0x4, fixed_abs, tag = 'smem constant byte address 0x4 - core index']
  #allocation1 [shape = 'u32[144,128]{1,0:T(1,128)}', space=vmem, size = 0x12000, scoped, tag = 'internal scratch']
  %s0 = inlined_call_operand.vmem [shape: s32[16,1], index: 0, kind: input, shape index: {}]
  %s1 = inlined_call_operand.vmem [shape: f32[32,32], index: 1, kind: input, shape index: {}]
  %s2 = inlined_call_operand.hbm [shape: f32[8,32], index: 2, kind: input, shape index: {}]
  %s3 = inlined_call_operand.hbm [shape: f32[2,1,32], index: 3, kind: input, shape index: {}]
  %s4 = inlined_call_operand.hbm [shape: f32[2,1,32], index: 4, kind: input, shape index: {}]
  %s5 = inlined_call_operand.vmem [shape: bf16[2,32,96], index: 5, kind: input, shape index: {}]
  %s6 = inlined_call_operand.hbm [shape: f32[2,1,96], index: 6, kind: input, shape index: {}]
  %s7 = inlined_call_operand.vmem [shape: bf16[2,32,32], index: 7, kind: input, shape index: {}]
  %s8 = inlined_call_operand.hbm [shape: f32[2,1,32], index: 8, kind: input, shape index: {}]
  %s9 = inlined_call_operand.vmem [shape: f32[2,1,32], index: 9, kind: input, shape index: {}]
  %s10 = inlined_call_operand.hbm [shape: f32[2,1,32], index: 10, kind: input, shape index: {}]
  %s11 = inlined_call_operand.vmem [shape: bf16[2,32,64], index: 11, kind: input, shape index: {}]
  %s12 = inlined_call_operand.hbm [shape: f32[2,1,64], index: 12, kind: input, shape index: {}]
  %s13 = inlined_call_operand.vmem [shape: bf16[2,64,32], index: 13, kind: input, shape index: {}]
  %s14 = inlined_call_operand.vmem [shape: f32[2,1,32], index: 14, kind: input, shape index: {}]
  %s15 = inlined_call_operand.vmem [shape: f32[1,32], index: 15, kind: input, shape index: {}]
  %s16 = inlined_call_operand.vmem [shape: f32[1,32], index: 16, kind: input, shape index: {}]
  %s17 = inlined_call_operand.vmem [shape: bf16[32,128], index: 17, kind: input, shape index: {}]
  %s18 = inlined_call_operand.vmem [shape: f32[1,128], index: 18, kind: input, shape index: {}]
  %s19 = inlined_call_operand.vmem [shape: s32[16,1], index: 19, kind: input, shape index: {}]
  %s20 = inlined_call_operand.hbm [shape: f32[16,128], index: 20, kind: output, shape index: {0}]
  %s21 = inlined_call_operand.hbm [shape: f32[1,1,1], index: 21, kind: output, shape index: {1}]
  %22 = xla_tuple %s20, %s21
  %s23 = sld [smem:[#allocation0]]
  $region126: #{tpu_custom_call.1} parent=0
    _
  %s25 = ssub.s32 1, %s23
  %s26 = scalar_select 0, %s25, %s23
  $region1: #{tpu_custom_call.1} parent=0
    #allocation2 [shape = 'u8[4096]{0}', space=vmem, size = 0x1000, scoped, tag = 'input window, operand 2, single buffered']
    #allocation3 [shape = 's32[1]{0}', space=sflag, size = 0x4, scoped, tag = 'scoped memory for tpu_custom_call.1']
    #allocation4 [shape = 's32[1]{0}', space=sflag, size = 0x4, scoped, tag = 'scoped memory for tpu_custom_call.1']
    #allocation5 [shape = 'u8[1024]{0}', space=vmem, size = 0x400, scoped, tag = 'input window, operand 3, single buffered']
    #allocation6 [shape = 's32[1]{0}', space=sflag, size = 0x4, scoped, tag = 'scoped memory for tpu_custom_call.1']
    #allocation7 [shape = 'u8[1024]{0}', space=vmem, size = 0x400, scoped, tag = 'input window, operand 4, single buffered']
    #allocation8 [shape = 'u8[1024]{0}', space=vmem, size = 0x400, scoped, tag = 'input window, operand 6, single buffered']
    #allocation9 [shape = 's32[1]{0}', space=sflag, size = 0x4, scoped, tag = 'scoped memory for tpu_custom_call.1']
    #allocation10 [shape = 'u8[1024]{0}', space=vmem, size = 0x400, scoped, tag = 'input window, operand 8, single buffered']
    #allocation11 [shape = 'u8[1024]{0}', space=vmem, size = 0x400, scoped, tag = 'input window, operand 10, single buffered']
    #allocation12 [shape = 's32[1]{0}', space=sflag, size = 0x4, scoped, tag = 'scoped memory for tpu_custom_call.1']
    #allocation13 [shape = 'u8[1024]{0}', space=vmem, size = 0x400, scoped, tag = 'input window, operand 12, single buffered']
    #allocation14 [shape = 'u8[8192]{0}', space=vmem, size = 0x2000, scoped, tag = 'output window, operand 0, single buffered']
    #allocation15 [shape = 'u8[512]{0}', space=vmem, size = 0x400, scoped, tag = 'output window, operand 1, single buffered']
    #allocation16 [shape = 's32[1]{0}', space=sflag, size = 0x4, scoped, tag = 'scoped memory for tpu_custom_call.1']
    %27 = vsyncpa [#allocation3], 0
    %28 = vsyncpa [#allocation6], 0
    %29 = vsyncpa [#allocation9], 0
    %30 = vsyncpa [#allocation12], 0
    %31 = vsyncpa [#allocation4], 0
    %32 = vsyncpa [#allocation16], 0
    // Predicated region
    $region2: #{tpu_custom_call.1} parent=1 // pred_check
      _
    $region3: #{tpu_custom_call.1} parent=1 // pred_check_branch
      %34 = sbr.rel (0) target = $region5
    $region4: #{tpu_custom_call.1} parent=1 // pred_region
      _
    $region5: #{tpu_custom_call.1} parent=1 // pred_fallthru
      _
    // Predicated region
    $region6: #{tpu_custom_call.1} parent=1 // pred_check
      _
    $region7: #{tpu_custom_call.1} parent=1 // pred_check_branch
      %36 = sbr.rel (0) target = $region9
    $region8: #{tpu_custom_call.1} parent=1 // pred_region
      _
    $region9: #{tpu_custom_call.1} parent=1 // pred_fallthru
      _
    // Predicated region
    $region10: #{tpu_custom_call.1} parent=1 // pred_check
      _
    $region11: #{tpu_custom_call.1} parent=1 // pred_check_branch
      %38 = sbr.rel (0) target = $region13
    $region12: #{tpu_custom_call.1} parent=1 // pred_region
      %s40 = ssub.s32 128, 128
      %41 = vsyncadd [#allocation3], %s40
      %s43 = sshll.u32 [#allocation2], 4
      %s44 = int_to_ptr.vmem [resolvable:$true] %s43
      %46 = dma.hbm_to_vmem [thread:$0]  %s2, 128, %s44, [#allocation3]
    $region13: #{tpu_custom_call.1} parent=1 // pred_fallthru
      _
    // Predicated region
    $region14: #{tpu_custom_call.1} parent=1 // pred_check
      _
    $region15: #{tpu_custom_call.1} parent=1 // pred_check_branch
      %48 = sbr.rel (0) target = $region17
    $region16: #{tpu_custom_call.1} parent=1 // pred_region
      %s50 = ssub.s32 32, 32
      %51 = vsyncadd [#allocation6], %s50
      %s52 = sshll.u32 [#allocation5], 4
      %s53 = int_to_ptr.vmem [resolvable:$true] %s52
      %58 = dma.hbm_to_vmem [thread:$0]  %s3, 32, %s53, [#allocation6], 16, 16, 1
    $region17: #{tpu_custom_call.1} parent=1 // pred_fallthru
      _
    // Predicated region
    $region18: #{tpu_custom_call.1} parent=1 // pred_check
      _
    $region19: #{tpu_custom_call.1} parent=1 // pred_check_branch
      %60 = sbr.rel (0) target = $region21
    $region20: #{tpu_custom_call.1} parent=1 // pred_region
      %s62 = ssub.s32 32, 32
      %63 = vsyncadd [#allocation6], %s62
      %s64 = sshll.u32 [#allocation7], 4
      %s65 = int_to_ptr.vmem [resolvable:$true] %s64
      %70 = dma.hbm_to_vmem [thread:$0]  %s4, 32, %s65, [#allocation6], 16, 16, 1
    $region21: #{tpu_custom_call.1} parent=1 // pred_fallthru
      _
    // Predicated region
    $region22: #{tpu_custom_call.1} parent=1 // pred_check
      _
    $region23: #{tpu_custom_call.1} parent=1 // pred_check_branch
      %72 = sbr.rel (0) target = $region25
    $region24: #{tpu_custom_call.1} parent=1 // pred_region
      _
    $region25: #{tpu_custom_call.1} parent=1 // pred_fallthru
      _
    // Predicated region
    $region26: #{tpu_custom_call.1} parent=1 // pred_check
      _
    $region27: #{tpu_custom_call.1} parent=1 // pred_check_branch
      %74 = sbr.rel (0) target = $region29
    $region28: #{tpu_custom_call.1} parent=1 // pred_region
      %s76 = ssub.s32 32, 32
      %77 = vsyncadd [#allocation9], %s76
      %s78 = sshll.u32 [#allocation8], 4
      %s79 = int_to_ptr.vmem [resolvable:$true] %s78
      %84 = dma.hbm_to_vmem [thread:$0]  %s6, 32, %s79, [#allocation9], 16, 16, 1
    $region29: #{tpu_custom_call.1} parent=1 // pred_fallthru
      _
    // Predicated region
    $region30: #{tpu_custom_call.1} parent=1 // pred_check
      _
    $region31: #{tpu_custom_call.1} parent=1 // pred_check_branch
      %86 = sbr.rel (0) target = $region33
    $region32: #{tpu_custom_call.1} parent=1 // pred_region
      _
    $region33: #{tpu_custom_call.1} parent=1 // pred_fallthru
      _
    // Predicated region
    $region34: #{tpu_custom_call.1} parent=1 // pred_check
      _
    $region35: #{tpu_custom_call.1} parent=1 // pred_check_branch
      %88 = sbr.rel (0) target = $region37
    $region36: #{tpu_custom_call.1} parent=1 // pred_region
      %s90 = ssub.s32 32, 32
      %91 = vsyncadd [#allocation9], %s90
      %s92 = sshll.u32 [#allocation10], 4
      %s93 = int_to_ptr.vmem [resolvable:$true] %s92
      %98 = dma.hbm_to_vmem [thread:$0]  %s8, 32, %s93, [#allocation9], 16, 16, 1
    $region37: #{tpu_custom_call.1} parent=1 // pred_fallthru
      _
    // Predicated region
    $region38: #{tpu_custom_call.1} parent=1 // pred_check
      _
    $region39: #{tpu_custom_call.1} parent=1 // pred_check_branch
      %100 = sbr.rel (0) target = $region41
    $region40: #{tpu_custom_call.1} parent=1 // pred_region
      _
    $region41: #{tpu_custom_call.1} parent=1 // pred_fallthru
      _
    // Predicated region
    $region42: #{tpu_custom_call.1} parent=1 // pred_check
      _
    $region43: #{tpu_custom_call.1} parent=1 // pred_check_branch
      %102 = sbr.rel (0) target = $region45
    $region44: #{tpu_custom_call.1} parent=1 // pred_region
      %s104 = ssub.s32 32, 32
      %105 = vsyncadd [#allocation12], %s104
      %s106 = sshll.u32 [#allocation11], 4
      %s107 = int_to_ptr.vmem [resolvable:$true] %s106
      %112 = dma.hbm_to_vmem [thread:$0]  %s10, 32, %s107, [#allocation12], 16, 16, 1
    $region45: #{tpu_custom_call.1} parent=1 // pred_fallthru
      _
    // Predicated region
    $region46: #{tpu_custom_call.1} parent=1 // pred_check
      _
    $region47: #{tpu_custom_call.1} parent=1 // pred_check_branch
      %114 = sbr.rel (0) target = $region49
    $region48: #{tpu_custom_call.1} parent=1 // pred_region
      _
    $region49: #{tpu_custom_call.1} parent=1 // pred_fallthru
      _
    // Predicated region
    $region50: #{tpu_custom_call.1} parent=1 // pred_check
      _
    $region51: #{tpu_custom_call.1} parent=1 // pred_check_branch
      %116 = sbr.rel (0) target = $region53
    $region52: #{tpu_custom_call.1} parent=1 // pred_region
      %s118 = ssub.s32 32, 32
      %119 = vsyncadd [#allocation12], %s118
      %s120 = sshll.u32 [#allocation13], 4
      %s121 = int_to_ptr.vmem [resolvable:$true] %s120
      %126 = dma.hbm_to_vmem [thread:$0]  %s12, 32, %s121, [#allocation12], 16, 16, 1
    $region53: #{tpu_custom_call.1} parent=1 // pred_fallthru
      _
    // Predicated region
    $region54: #{tpu_custom_call.1} parent=1 // pred_check
      _
    $region55: #{tpu_custom_call.1} parent=1 // pred_check_branch
      %128 = sbr.rel (0) target = $region57
    $region56: #{tpu_custom_call.1} parent=1 // pred_region
      _
    $region57: #{tpu_custom_call.1} parent=1 // pred_fallthru
      _
    // Predicated region
    $region58: #{tpu_custom_call.1} parent=1 // pred_check
      _
    $region59: #{tpu_custom_call.1} parent=1 // pred_check_branch
      %130 = sbr.rel (0) target = $region61
    $region60: #{tpu_custom_call.1} parent=1 // pred_region
      _
    $region61: #{tpu_custom_call.1} parent=1 // pred_fallthru
      _
    // Predicated region
    $region62: #{tpu_custom_call.1} parent=1 // pred_check
      _
    $region63: #{tpu_custom_call.1} parent=1 // pred_check_branch
      %132 = sbr.rel (0) target = $region65
    $region64: #{tpu_custom_call.1} parent=1 // pred_region
      _
    $region65: #{tpu_custom_call.1} parent=1 // pred_fallthru
      _
    // Predicated region
    $region66: #{tpu_custom_call.1} parent=1 // pred_check
      _
    $region67: #{tpu_custom_call.1} parent=1 // pred_check_branch
      %134 = sbr.rel (0) target = $region69
    $region68: #{tpu_custom_call.1} parent=1 // pred_region
      _
    $region69: #{tpu_custom_call.1} parent=1 // pred_fallthru
      _
    // Predicated region
    $region70: #{tpu_custom_call.1} parent=1 // pred_check
      _
    $region71: #{tpu_custom_call.1} parent=1 // pred_check_branch
      %136 = sbr.rel (0) target = $region73
    $region72: #{tpu_custom_call.1} parent=1 // pred_region
      _
    $region73: #{tpu_custom_call.1} parent=1 // pred_fallthru
      _
    // Predicated region
    $region74: #{tpu_custom_call.1} parent=1 // pred_check
      _
    $region75: #{tpu_custom_call.1} parent=1 // pred_check_branch
      %138 = sbr.rel (0) target = $region77
    $region76: #{tpu_custom_call.1} parent=1 // pred_region
      _
    $region77: #{tpu_custom_call.1} parent=1 // pred_fallthru
      _
    // Predicated region
    $region78: #{tpu_custom_call.1} parent=1 // pred_check
      _
    $region79: #{tpu_custom_call.1} parent=1 // pred_check_branch
      %140 = sbr.rel (0) target = $region81
    $region80: #{tpu_custom_call.1} parent=1 // pred_region
      _
    $region81: #{tpu_custom_call.1} parent=1 // pred_fallthru
      _
    // Predicated region
    $region82: #{tpu_custom_call.1} parent=1 // pred_check
      _
    $region83: #{tpu_custom_call.1} parent=1 // pred_check_branch
      %142 = sbr.rel (0) target = $region85
    $region84: #{tpu_custom_call.1} parent=1 // pred_region
      %143 = dma.done [#allocation3], 128
    $region85: #{tpu_custom_call.1} parent=1 // pred_fallthru
      _
    // Predicated region
    $region86: #{tpu_custom_call.1} parent=1 // pred_check
      _
    $region87: #{tpu_custom_call.1} parent=1 // pred_check_branch
      %145 = sbr.rel (0) target = $region89
    $region88: #{tpu_custom_call.1} parent=1 // pred_region
      %146 = dma.done [#allocation6], 32
    $region89: #{tpu_custom_call.1} parent=1 // pred_fallthru
      _
    // Predicated region
    $region90: #{tpu_custom_call.1} parent=1 // pred_check
      _
    $region91: #{tpu_custom_call.1} parent=1 // pred_check_branch
      %148 = sbr.rel (0) target = $region93
    $region92: #{tpu_custom_call.1} parent=1 // pred_region
      %149 = dma.done [#allocation6], 32
    $region93: #{tpu_custom_call.1} parent=1 // pred_fallthru
      _
    // Predicated region
    $region94: #{tpu_custom_call.1} parent=1 // pred_check
      _
    $region95: #{tpu_custom_call.1} parent=1 // pred_check_branch
      %151 = sbr.rel (0) target = $region97
    $region96: #{tpu_custom_call.1} parent=1 // pred_region
      %152 = dma.done [#allocation9], 32
    $region97: #{tpu_custom_call.1} parent=1 // pred_fallthru
      _
    // Predicated region
    $region98: #{tpu_custom_call.1} parent=1 // pred_check
      _
    $region99: #{tpu_custom_call.1} parent=1 // pred_check_branch
      %154 = sbr.rel (0) target = $region101
    $region100: #{tpu_custom_call.1} parent=1 // pred_region
      %155 = dma.done [#allocation9], 32
    $region101: #{tpu_custom_call.1} parent=1 // pred_fallthru
      _
    // Predicated region
    $region102: #{tpu_custom_call.1} parent=1 // pred_check
      _
    $region103: #{tpu_custom_call.1} parent=1 // pred_check_branch
      %157 = sbr.rel (0) target = $region105
    $region104: #{tpu_custom_call.1} parent=1 // pred_region
      %158 = dma.done [#allocation12], 32
    $region105: #{tpu_custom_call.1} parent=1 // pred_fallthru
      _
    // Predicated region
    $region106: #{tpu_custom_call.1} parent=1 // pred_check
      _
    $region107: #{tpu_custom_call.1} parent=1 // pred_check_branch
      %160 = sbr.rel (0) target = $region109
    $region108: #{tpu_custom_call.1} parent=1 // pred_region
      %161 = dma.done [#allocation12], 32
    $region109: #{tpu_custom_call.1} parent=1 // pred_fallthru
      _
    %v163 = vlaneseq
    %v164 = vand.u32 %v163, 127
    %v165 = vld [vmem:[%s0] sm:$0xff]
    %v166 = vld [vmem:[%s0 + $0x8] sm:$0xff]
    %167 = vset.pattern.permute.xlu0 0
    %168 = vperm.xlu0 %167, %v165
    %v169 = vpop.permute.xlu0 %168
    %170 = vset.pattern.permute.xlu0 0
    %171 = vperm.xlu0 %170, %v166
    %v172 = vpop.permute.xlu0 %171
    %vm173 = vcmp.eq.s32.totalorder %v164, %v169
    %vm174 = vcmp.eq.s32.totalorder %v164, %v172
    %v175 = vsel %vm173, 1, 0
    %v176 = vsel %vm174, 1, 0
    %v177 = vcvt.s32.f32 %v175
    %v178 = vcvt.s32.f32 %v176
    %v179 = vld [vmem:[%s1] sm:$0xff]
    %v180 = vld [vmem:[%s1 + $0x8] sm:$0xff]
    %v181 = vld [vmem:[%s1 + $0x10] sm:$0xff]
    %v182 = vld [vmem:[%s1 + $0x18] sm:$0xff]
    %v183 = vld [vmem:[#allocation2] sm:$0xff]
    %vm184 = vcmask 261120
    %v186 = vsel %vm184, %v177, 0
    %v189 = vsel %vm184, %v178, 0
    %191 = vmatprep.subr.mxu0 0.0
    %192 = vmatpush1.msra.mxu0 %v179
    %193 = vmatprep.subr.mxu0 0.0
    %194 = vmatpush1.msra.mxu0 %v180
    %195 = vmatprep.subr.mxu0 0.0
    %196 = vmatpush1.msra.mxu0 %v181
    %197 = vmatprep.subr.mxu0 0.0
    %198 = vmatpush1.msra.mxu0 %v182
    %199 = vmatprep.subr.mxu0 0.0
    %200 = vmatpush1.msra.mxu0 0.0
    %201 = vmatprep.subr.mxu0 0.0
    %202 = vmatpush1.msra.mxu0 0.0
    %203 = vmatprep.subr.mxu0 0.0
    %204 = vmatpush1.msra.mxu0 0.0
    %205 = vmatprep.subr.mxu0 0.0
    %206 = vmatpush1.msra.mxu0 0.0
    %207 = vmatprep.subr.mxu0 0.0
    %208 = vmatpush1.msra.mxu0 0.0
    %209 = vmatprep.subr.mxu0 0.0
    %210 = vmatpush1.msra.mxu0 0.0
    %211 = vmatprep.subr.mxu0 0.0
    %212 = vmatpush1.msra.mxu0 0.0
    %213 = vmatprep.subr.mxu0 0.0
    %214 = vmatpush1.msra.mxu0 0.0
    %215 = vmatprep.subr.mxu0 0.0
    %216 = vmatpush1.msra.mxu0 0.0
    %217 = vmatprep.subr.mxu0 0.0
    %218 = vmatpush1.msra.mxu0 0.0
    %219 = vmatprep.subr.mxu0 0.0
    %220 = vmatpush1.msra.mxu0 0.0
    %221 = vmatprep.subr.mxu0 0.0
    %222 = vmatpush1.msra.mxu0 0.0
    %223 = vmatprep.subr.mxu0 0.0
    %224 = vmatpush1.msra.mxu0 0.0
    %225 = vmatprep.subr.mxu0 0.0
    %226 = vmatpush1.msra.mxu0 0.0
    %227 = vmatprep.subr.mxu0 0.0
    %228 = vmatpush1.msra.mxu0 0.0
    %229 = vmatprep.subr.mxu0 0.0
    %230 = vmatpush1.msra.mxu0 0.0
    %231 = vmatprep.subr.mxu0 0.0
    %232 = vmatpush1.msra.mxu0 0.0
    %233 = vmatprep.subr.mxu0 0.0
    %234 = vmatpush1.msra.mxu0 0.0
    %235 = vmatprep.subr.mxu0 0.0
    %236 = vmatpush1.msra.mxu0 0.0
    %237 = vmatprep.subr.mxu0 0.0
    %238 = vmatpush1.msra.mxu0 0.0
    %239 = vmatprep.subr.mxu0 0.0
    %240 = vmatpush1.msra.mxu0 0.0
    %241 = vmatprep.subr.mxu0 0.0
    %242 = vmatpush1.msra.mxu0 0.0
    %243 = vmatprep.subr.mxu0 0.0
    %244 = vmatpush1.msra.mxu0 0.0
    %245 = vmatprep.subr.mxu0 0.0
    %246 = vmatpush1.msra.mxu0 0.0
    %247 = vmatprep.subr.mxu0 0.0
    %248 = vmatpush1.msra.mxu0 0.0
    %249 = vmatprep.subr.mxu0 0.0
    %250 = vmatpush1.msra.mxu0 0.0
    %251 = vmatprep.subr.mxu0 0.0
    %252 = vmatpush1.msra.mxu0 0.0
    %253 = vmatprep.subr.mxu0 0.0
    %254 = vmatpush1.msra.mxu0 0.0
    %255 = vmatprep.mubr.f32.mxu0 0.0
    %256 = vmatmul.mubr.f32.gmra.mrb[0].mxu0 %v186
    %v257 = vpop.f32.mrb[0].mxu0
    %v258 = vadd.f32 %v183, %v257
    %v259 = vpop.f32.mrb[0].mxu0
    %260 = vmatprep.mubr.f32.mxu0 0.0
    %261 = vmatmul.mubr.f32.gmra.mrb[0].mxu0 %v189
    %v262 = vpop.f32.mrb[0].mxu0
    %v263 = vadd.f32 %v183, %v262
    %v264 = vpop.f32.mrb[0].mxu0
    %265 = vdwg.mxu0
    %v266 = vlaneseq
    %v267 = vshrl.u32 %v266, 7
    %vm268 = vcmp.le.s32.totalorder %v164, %v267
    %v269 = vsub.s32 %v267, %v164
    %vm270 = vcmp.lt.s32.totalorder %v269, 4
    %vm271 = vmand %vm268, %vm270
    %v272 = vsel %vm271, 0.0, -1e+30
    %v273 = vld [vmem:[#allocation5] sm:$0x1]
    %v274 = vld [vmem:[#allocation7] sm:$0x1]
    %v275 = vsel %vm184, %v258, 0.0
    %276 = vadd.xlane.f32.xlu0 %v275
    %v277 = vpop.xlane.xlu0 %276
    %v278 = vsel %vm184, %v263, 0.0
    %279 = vadd.xlane.f32.xlu0 %v278
    %v280 = vpop.xlane.xlu0 %279
    %v281 = vrcp.pop 32.0
    %v282 = vmul.f32 %v277, %v281
    %v283 = vmul.f32 %v280, %v281
    %v284 = vsub.f32 %v258, %v282
    %v285 = vsub.f32 %v263, %v283
    %v286 = vmul.f32 %v284, %v284
    %v287 = vmul.f32 %v285, %v285
    %v288 = vsel %vm184, %v286, 0.0
    %289 = vadd.xlane.f32.xlu0 %v288
    %v290 = vpop.xlane.xlu0 %289
    %v291 = vsel %vm184, %v287, 0.0
    %292 = vadd.xlane.f32.xlu0 %v291
    %v293 = vpop.xlane.xlu0 %292
    %v294 = vmul.f32 %v290, %v281
    %v295 = vmul.f32 %v293, %v281
    %v296 = vadd.f32 %v294, 1e-05
    %v297 = vadd.f32 %v295, 1e-05
    %v298 = vrsqrt.pop %v296
    %v299 = vrsqrt.pop %v297
    %v300 = vmul.f32 %v284, %v298
    %v301 = vmul.f32 %v285, %v299
    %v303 = vlaneseq
    %v304 = vshrl.u32 %v303, 7
    %v305 = vsub.s32 0, %v304
    %v306 = vrot.slane %v273, %v305
    %v308 = vmul.f32 %v300, %v306
    %v309 = vmul.f32 %v301, %v306
    %v311 = vlaneseq
    %v312 = vshrl.u32 %v311, 7
    %v313 = vsub.s32 0, %v312
    %v314 = vrot.slane %v274, %v313
    %v316 = vadd.f32 %v308, %v314
    %v317 = vadd.f32 %v309, %v314
    %v318 = vpack.c.bf16 %v317, %v316
    %v319 = vld [vmem:[%s5] sm:$0xf]
    %v320 = vld [vmem:[%s5 + $0x4] sm:$0xf]
    %v321 = vld [vmem:[%s5 + $0x8] sm:$0xf]
    %v322 = vld [vmem:[%s5 + $0xc] sm:$0xf]
    %v323 = vld [vmem:[#allocation8] sm:$0x1]
    %v325 = vlaneseq
    %v326 = vshrl.u32 %v325, 7
    %v327 = vsub.s32 0, %v326
    %v328 = vrot.slane %v323, %v327
    %v334 = vunpack.c.l.b16 %v319
    %v335 = vunpack.c.l.b16 %v320
    %v336 = vunpack.c.l.b16 %v321
    %v337 = vunpack.c.l.b16 %v322
    %v338 = vpack.c.b16 %v335, %v334
    %v339 = vpack.c.b16 %v337, %v336
    %v343 = vsel %vm184, %v318, 0
    %345 = vmatprep.subr.bf16.mxu0 0
    %346 = vmatpush1.bf16.msra.mxu0 %v338
    %347 = vmatprep.subr.bf16.mxu0 0
    %348 = vmatpush1.bf16.msra.mxu0 %v339
    %349 = vmatprep.subr.bf16.mxu0 0
    %350 = vmatpush1.bf16.msra.mxu0 0
    %351 = vmatprep.subr.bf16.mxu0 0
    %352 = vmatpush1.bf16.msra.mxu0 0
    %353 = vmatprep.subr.bf16.mxu0 0
    %354 = vmatpush1.bf16.msra.mxu0 0
    %355 = vmatprep.subr.bf16.mxu0 0
    %356 = vmatpush1.bf16.msra.mxu0 0
    %357 = vmatprep.subr.bf16.mxu0 0
    %358 = vmatpush1.bf16.msra.mxu0 0
    %359 = vmatprep.subr.bf16.mxu0 0
    %360 = vmatpush1.bf16.msra.mxu0 0
    %361 = vmatprep.subr.bf16.mxu0 0
    %362 = vmatpush1.bf16.msra.mxu0 0
    %363 = vmatprep.subr.bf16.mxu0 0
    %364 = vmatpush1.bf16.msra.mxu0 0
    %365 = vmatprep.subr.bf16.mxu0 0
    %366 = vmatpush1.bf16.msra.mxu0 0
    %367 = vmatprep.subr.bf16.mxu0 0
    %368 = vmatpush1.bf16.msra.mxu0 0
    %369 = vmatprep.subr.bf16.mxu0 0
    %370 = vmatpush1.bf16.msra.mxu0 0
    %371 = vmatprep.subr.bf16.mxu0 0
    %372 = vmatpush1.bf16.msra.mxu0 0
    %373 = vmatprep.subr.bf16.mxu0 0
    %374 = vmatpush1.bf16.msra.mxu0 0
    %375 = vmatprep.subr.bf16.mxu0 0
    %376 = vmatpush1.bf16.msra.mxu0 0
    %377 = vmatprep.mubr.bf16.mxu0 0
    %378 = vmatmul.mubr.bf16.gmra.mrb[0].mxu0 %v343
    %v379 = vpop.f32.mrb[0].mxu0
    %v380 = vadd.f32 %v328, %v379
    %v381 = vpop.f32.mrb[0].mxu0
    %v382 = vpop.f32.mrb[0].mxu0
    %v383 = vadd.f32 %v328, %v382
    %v384 = vpop.f32.mrb[0].mxu0
    %385 = vdwg.mxu0
    %v386 = vld [vmem:[%s7] sm:$0xf]
    %v387 = vld [vmem:[%s7 + $0x4] sm:$0xf]
    %v388 = vld [vmem:[%s7 + $0x8] sm:$0xf]
    %v389 = vld [vmem:[%s7 + $0xc] sm:$0xf]
    %391 = vrot.lane.b32.xlu0 %v380, 96
    %v392 = vpop.permute.xlu0 %391
    %vm393 = vcmask 64512
    %v394 = vsel %vm393, %v380, 0
    %v396 = vsel %vm393, %v392, 0
    %398 = vmatprep.subr.mxu0 0.0
    %399 = vmatpush1.xpose.msra.mxu0 %v396
    %400 = vmatprep.subr.mxu0 0.0
    %401 = vmatpush1.xpose.msra.mxu0 0.0
    %402 = vmatprep.subr.mxu0 0.0
    %403 = vmatpush1.xpose.msra.mxu0 0.0
    %404 = vmatprep.subr.mxu0 0.0
    %405 = vmatpush1.xpose.msra.mxu0 0.0
    %406 = vmatprep.subr.mxu0 0.0
    %407 = vmatpush1.xpose.msra.mxu0 0.0
    %408 = vmatprep.subr.mxu0 0.0
    %409 = vmatpush1.xpose.msra.mxu0 0.0
    %410 = vmatprep.subr.mxu0 0.0
    %411 = vmatpush1.xpose.msra.mxu0 0.0
    %412 = vmatprep.subr.mxu0 0.0
    %413 = vmatpush1.xpose.msra.mxu0 0.0
    %414 = vmatprep.subr.mxu0 0.0
    %415 = vmatpush1.xpose.msra.mxu0 0.0
    %416 = vmatprep.subr.mxu0 0.0
    %417 = vmatpush1.xpose.msra.mxu0 0.0
    %418 = vmatprep.subr.mxu0 0.0
    %419 = vmatpush1.xpose.msra.mxu0 0.0
    %420 = vmatprep.subr.mxu0 0.0
    %421 = vmatpush1.xpose.msra.mxu0 0.0
    %422 = vmatprep.subr.mxu0 0.0
    %423 = vmatpush1.xpose.msra.mxu0 0.0
    %424 = vmatprep.subr.mxu0 0.0
    %425 = vmatpush1.xpose.msra.mxu0 0.0
    %426 = vmatprep.subr.mxu0 0.0
    %427 = vmatpush1.xpose.msra.mxu0 0.0
    %428 = vmatprep.subr.mxu0 0.0
    %429 = vmatpush1.xpose.msra.mxu0 0.0
    %430 = vmatprep.subr.mxu0 0.0
    %431 = vmatpush1.xpose.msra.mxu0 0.0
    %432 = vmatprep.subr.mxu0 0.0
    %433 = vmatpush1.xpose.msra.mxu0 0.0
    %434 = vmatprep.subr.mxu0 0.0
    %435 = vmatpush1.xpose.msra.mxu0 0.0
    %436 = vmatprep.subr.mxu0 0.0
    %437 = vmatpush1.xpose.msra.mxu0 0.0
    %438 = vmatprep.subr.mxu0 0.0
    %439 = vmatpush1.xpose.msra.mxu0 0.0
    %440 = vmatprep.subr.mxu0 0.0
    %441 = vmatpush1.xpose.msra.mxu0 0.0
    %442 = vmatprep.subr.mxu0 0.0
    %443 = vmatpush1.xpose.msra.mxu0 0.0
    %444 = vmatprep.subr.mxu0 0.0
    %445 = vmatpush1.xpose.msra.mxu0 0.0
    %446 = vmatprep.subr.mxu0 0.0
    %447 = vmatpush1.xpose.msra.mxu0 0.0
    %448 = vmatprep.subr.mxu0 0.0
    %449 = vmatpush1.xpose.msra.mxu0 0.0
    %450 = vmatprep.subr.mxu0 0.0
    %451 = vmatpush1.xpose.msra.mxu0 0.0
    %452 = vmatprep.subr.mxu0 0.0
    %453 = vmatpush1.xpose.msra.mxu0 0.0
    %454 = vmatprep.subr.mxu0 0.0
    %455 = vmatpush1.xpose.msra.mxu0 0.0
    %456 = vmatprep.subr.mxu0 0.0
    %457 = vmatpush1.xpose.msra.mxu0 0.0
    %458 = vmatprep.subr.mxu0 0.0
    %459 = vmatpush1.xpose.msra.mxu0 0.0
    %460 = vmatprep.subr.mxu0 0.0
    %461 = vmatpush1.xpose.msra.mxu0 0.0
    %462 = vmatprep.mubr.f32.mxu0 0.0
    %463 = vmatmul.mubr.f32.gmra.mrb[0].mxu0 %v394
    %v464 = vpop.f32.mrb[0].mxu0
    %v465 = vadd.f32 %v272, %v464
    %v466 = vpop.f32.mrb[0].mxu0
    %467 = vdwg.mxu0
    %v468 = vsel %vm393, %v465, -inf
    %469 = vmax.xlane.f32.xlu0 %v468
    %v470 = vpop.xlane.xlu0 %469
    %v471 = vsub.f32 %v465, %v470
    %v472 = vmul.f32 %v471, 1.442695
    %v473 = vpow.pop %v472
    %v474 = vsel %vm393, %v473, 0.0
    %475 = vadd.xlane.f32.xlu0 %v474
    %v476 = vpop.xlane.xlu0 %475
    %477 = vrot.lane.b32.xlu0 %v380, 64
    %v478 = vpop.permute.xlu0 %477
    %v481 = vsel %vm393, %v473, 0
    %483 = vmatprep.subr.mxu0 0.0
    %484 = vmatpush1.msra.mxu0 %v478
    %485 = vmatprep.subr.mxu0 0.0
    %486 = vmatpush1.msra.mxu0 0.0
    %487 = vmatprep.subr.mxu0 0.0
    %488 = vmatpush1.msra.mxu0 0.0
    %489 = vmatprep.subr.mxu0 0.0
    %490 = vmatpush1.msra.mxu0 0.0
    %491 = vmatprep.subr.mxu0 0.0
    %492 = vmatpush1.msra.mxu0 0.0
    %493 = vmatprep.subr.mxu0 0.0
    %494 = vmatpush1.msra.mxu0 0.0
    %495 = vmatprep.subr.mxu0 0.0
    %496 = vmatpush1.msra.mxu0 0.0
    %497 = vmatprep.subr.mxu0 0.0
    %498 = vmatpush1.msra.mxu0 0.0
    %499 = vmatprep.subr.mxu0 0.0
    %500 = vmatpush1.msra.mxu0 0.0
    %501 = vmatprep.subr.mxu0 0.0
    %502 = vmatpush1.msra.mxu0 0.0
    %503 = vmatprep.subr.mxu0 0.0
    %504 = vmatpush1.msra.mxu0 0.0
    %505 = vmatprep.subr.mxu0 0.0
    %506 = vmatpush1.msra.mxu0 0.0
    %507 = vmatprep.subr.mxu0 0.0
    %508 = vmatpush1.msra.mxu0 0.0
    %509 = vmatprep.subr.mxu0 0.0
    %510 = vmatpush1.msra.mxu0 0.0
    %511 = vmatprep.subr.mxu0 0.0
    %512 = vmatpush1.msra.mxu0 0.0
    %513 = vmatprep.subr.mxu0 0.0
    %514 = vmatpush1.msra.mxu0 0.0
    %515 = vmatprep.subr.mxu0 0.0
    %516 = vmatpush1.msra.mxu0 0.0
    %517 = vmatprep.subr.mxu0 0.0
    %518 = vmatpush1.msra.mxu0 0.0
    %519 = vmatprep.subr.mxu0 0.0
    %520 = vmatpush1.msra.mxu0 0.0
    %521 = vmatprep.subr.mxu0 0.0
    %522 = vmatpush1.msra.mxu0 0.0
    %523 = vmatprep.subr.mxu0 0.0
    %524 = vmatpush1.msra.mxu0 0.0
    %525 = vmatprep.subr.mxu0 0.0
    %526 = vmatpush1.msra.mxu0 0.0
    %527 = vmatprep.subr.mxu0 0.0
    %528 = vmatpush1.msra.mxu0 0.0
    %529 = vmatprep.subr.mxu0 0.0
    %530 = vmatpush1.msra.mxu0 0.0
    %531 = vmatprep.subr.mxu0 0.0
    %532 = vmatpush1.msra.mxu0 0.0
    %533 = vmatprep.subr.mxu0 0.0
    %534 = vmatpush1.msra.mxu0 0.0
    %535 = vmatprep.subr.mxu0 0.0
    %536 = vmatpush1.msra.mxu0 0.0
    %537 = vmatprep.subr.mxu0 0.0
    %538 = vmatpush1.msra.mxu0 0.0
    %539 = vmatprep.subr.mxu0 0.0
    %540 = vmatpush1.msra.mxu0 0.0
    %541 = vmatprep.subr.mxu0 0.0
    %542 = vmatpush1.msra.mxu0 0.0
    %543 = vmatprep.subr.mxu0 0.0
    %544 = vmatpush1.msra.mxu0 0.0
    %545 = vmatprep.subr.mxu0 0.0
    %546 = vmatpush1.msra.mxu0 0.0
    %547 = vmatprep.mubr.f32.mxu0 0.0
    %548 = vmatmul.mubr.f32.gmra.mrb[0].mxu0 %v481
    %v549 = vpop.f32.mrb[0].mxu0
    %v550 = vadd.f32 0.0, %v549
    %v551 = vpop.f32.mrb[0].mxu0
    %552 = vdwg.mxu0
    %v553 = vrcp.pop %v476
    %v554 = vmul.f32 %v550, %v553
    %v555 = vpack.c.bf16 %v554, %v554
    %556 = vrot.lane.b32.xlu0 %v380, 120
    %v557 = vpop.permute.xlu0 %556
    %558 = vrot.lane.b32.xlu0 %v380, 88
    %v559 = vpop.permute.xlu0 %558
    %v560 = vsel %vm393, %v557, 0
    %v562 = vsel %vm393, %v559, 0
    %564 = vmatprep.subr.mxu0 0.0
    %565 = vmatpush1.xpose.msra.mxu0 %v562
    %566 = vmatprep.subr.mxu0 0.0
    %567 = vmatpush1.xpose.msra.mxu0 0.0
    %568 = vmatprep.subr.mxu0 0.0
    %569 = vmatpush1.xpose.msra.mxu0 0.0
    %570 = vmatprep.subr.mxu0 0.0
    %571 = vmatpush1.xpose.msra.mxu0 0.0
    %572 = vmatprep.subr.mxu0 0.0
    %573 = vmatpush1.xpose.msra.mxu0 0.0
    %574 = vmatprep.subr.mxu0 0.0
    %575 = vmatpush1.xpose.msra.mxu0 0.0
    %576 = vmatprep.subr.mxu0 0.0
    %577 = vmatpush1.xpose.msra.mxu0 0.0
    %578 = vmatprep.subr.mxu0 0.0
    %579 = vmatpush1.xpose.msra.mxu0 0.0
    %580 = vmatprep.subr.mxu0 0.0
    %581 = vmatpush1.xpose.msra.mxu0 0.0
    %582 = vmatprep.subr.mxu0 0.0
    %583 = vmatpush1.xpose.msra.mxu0 0.0
    %584 = vmatprep.subr.mxu0 0.0
    %585 = vmatpush1.xpose.msra.mxu0 0.0
    %586 = vmatprep.subr.mxu0 0.0
    %587 = vmatpush1.xpose.msra.mxu0 0.0
    %588 = vmatprep.subr.mxu0 0.0
    %589 = vmatpush1.xpose.msra.mxu0 0.0
    %590 = vmatprep.subr.mxu0 0.0
    %591 = vmatpush1.xpose.msra.mxu0 0.0
    %592 = vmatprep.subr.mxu0 0.0
    %593 = vmatpush1.xpose.msra.mxu0 0.0
    %594 = vmatprep.subr.mxu0 0.0
    %595 = vmatpush1.xpose.msra.mxu0 0.0
    %596 = vmatprep.subr.mxu0 0.0
    %597 = vmatpush1.xpose.msra.mxu0 0.0
    %598 = vmatprep.subr.mxu0 0.0
    %599 = vmatpush1.xpose.msra.mxu0 0.0
    %600 = vmatprep.subr.mxu0 0.0
    %601 = vmatpush1.xpose.msra.mxu0 0.0
    %602 = vmatprep.subr.mxu0 0.0
    %603 = vmatpush1.xpose.msra.mxu0 0.0
    %604 = vmatprep.subr.mxu0 0.0
    %605 = vmatpush1.xpose.msra.mxu0 0.0
    %606 = vmatprep.subr.mxu0 0.0
    %607 = vmatpush1.xpose.msra.mxu0 0.0
    %608 = vmatprep.subr.mxu0 0.0
    %609 = vmatpush1.xpose.msra.mxu0 0.0
    %610 = vmatprep.subr.mxu0 0.0
    %611 = vmatpush1.xpose.msra.mxu0 0.0
    %612 = vmatprep.subr.mxu0 0.0
    %613 = vmatpush1.xpose.msra.mxu0 0.0
    %614 = vmatprep.subr.mxu0 0.0
    %615 = vmatpush1.xpose.msra.mxu0 0.0
    %616 = vmatprep.subr.mxu0 0.0
    %617 = vmatpush1.xpose.msra.mxu0 0.0
    %618 = vmatprep.subr.mxu0 0.0
    %619 = vmatpush1.xpose.msra.mxu0 0.0
    %620 = vmatprep.subr.mxu0 0.0
    %621 = vmatpush1.xpose.msra.mxu0 0.0
    %622 = vmatprep.subr.mxu0 0.0
    %623 = vmatpush1.xpose.msra.mxu0 0.0
    %624 = vmatprep.subr.mxu0 0.0
    %625 = vmatpush1.xpose.msra.mxu0 0.0
    %626 = vmatprep.subr.mxu0 0.0
    %627 = vmatpush1.xpose.msra.mxu0 0.0
    %628 = vmatprep.mubr.f32.mxu0 0.0
    %629 = vmatmul.mubr.f32.gmra.mrb[0].mxu0 %v560
    %v630 = vpop.f32.mrb[0].mxu0
    %v631 = vadd.f32 %v272, %v630
    %v632 = vpop.f32.mrb[0].mxu0
    %633 = vdwg.mxu0
    %v634 = vsel %vm393, %v631, -inf
    %635 = vmax.xlane.f32.xlu0 %v634
    %v636 = vpop.xlane.xlu0 %635
    %v637 = vsub.f32 %v631, %v636
    %v638 = vmul.f32 %v637, 1.442695
    %v639 = vpow.pop %v638
    %v640 = vsel %vm393, %v639, 0.0
    %641 = vadd.xlane.f32.xlu0 %v640
    %v642 = vpop.xlane.xlu0 %641
    %643 = vrot.lane.b32.xlu0 %v380, 56
    %v644 = vpop.permute.xlu0 %643
    %v647 = vsel %vm393, %v639, 0
    %649 = vmatprep.subr.mxu0 0.0
    %650 = vmatpush1.msra.mxu0 %v644
    %651 = vmatprep.subr.mxu0 0.0
    %652 = vmatpush1.msra.mxu0 0.0
    %653 = vmatprep.subr.mxu0 0.0
    %654 = vmatpush1.msra.mxu0 0.0
    %655 = vmatprep.subr.mxu0 0.0
    %656 = vmatpush1.msra.mxu0 0.0
    %657 = vmatprep.subr.mxu0 0.0
    %658 = vmatpush1.msra.mxu0 0.0
    %659 = vmatprep.subr.mxu0 0.0
    %660 = vmatpush1.msra.mxu0 0.0
    %661 = vmatprep.subr.mxu0 0.0
    %662 = vmatpush1.msra.mxu0 0.0
    %663 = vmatprep.subr.mxu0 0.0
    %664 = vmatpush1.msra.mxu0 0.0
    %665 = vmatprep.subr.mxu0 0.0
    %666 = vmatpush1.msra.mxu0 0.0
    %667 = vmatprep.subr.mxu0 0.0
    %668 = vmatpush1.msra.mxu0 0.0
    %669 = vmatprep.subr.mxu0 0.0
    %670 = vmatpush1.msra.mxu0 0.0
    %671 = vmatprep.subr.mxu0 0.0
    %672 = vmatpush1.msra.mxu0 0.0
    %673 = vmatprep.subr.mxu0 0.0
    %674 = vmatpush1.msra.mxu0 0.0
    %675 = vmatprep.subr.mxu0 0.0
    %676 = vmatpush1.msra.mxu0 0.0
    %677 = vmatprep.subr.mxu0 0.0
    %678 = vmatpush1.msra.mxu0 0.0
    %679 = vmatprep.subr.mxu0 0.0
    %680 = vmatpush1.msra.mxu0 0.0
    %681 = vmatprep.subr.mxu0 0.0
    %682 = vmatpush1.msra.mxu0 0.0
    %683 = vmatprep.subr.mxu0 0.0
    %684 = vmatpush1.msra.mxu0 0.0
    %685 = vmatprep.subr.mxu0 0.0
    %686 = vmatpush1.msra.mxu0 0.0
    %687 = vmatprep.subr.mxu0 0.0
    %688 = vmatpush1.msra.mxu0 0.0
    %689 = vmatprep.subr.mxu0 0.0
    %690 = vmatpush1.msra.mxu0 0.0
    %691 = vmatprep.subr.mxu0 0.0
    %692 = vmatpush1.msra.mxu0 0.0
    %693 = vmatprep.subr.mxu0 0.0
    %694 = vmatpush1.msra.mxu0 0.0
    %695 = vmatprep.subr.mxu0 0.0
    %696 = vmatpush1.msra.mxu0 0.0
    %697 = vmatprep.subr.mxu0 0.0
    %698 = vmatpush1.msra.mxu0 0.0
    %699 = vmatprep.subr.mxu0 0.0
    %700 = vmatpush1.msra.mxu0 0.0
    %701 = vmatprep.subr.mxu0 0.0
    %702 = vmatpush1.msra.mxu0 0.0
    %703 = vmatprep.subr.mxu0 0.0
    %704 = vmatpush1.msra.mxu0 0.0
    %705 = vmatprep.subr.mxu0 0.0
    %706 = vmatpush1.msra.mxu0 0.0
    %707 = vmatprep.subr.mxu0 0.0
    %708 = vmatpush1.msra.mxu0 0.0
    %709 = vmatprep.subr.mxu0 0.0
    %710 = vmatpush1.msra.mxu0 0.0
    %711 = vmatprep.subr.mxu0 0.0
    %712 = vmatpush1.msra.mxu0 0.0
    %713 = vmatprep.mubr.f32.mxu0 0.0
    %714 = vmatmul.mubr.f32.gmra.mrb[0].mxu0 %v647
    %v715 = vpop.f32.mrb[0].mxu0
    %v716 = vadd.f32 0.0, %v715
    %v717 = vpop.f32.mrb[0].mxu0
    %718 = vdwg.mxu0
    %v719 = vrcp.pop %v642
    %v720 = vmul.f32 %v716, %v719
    %v721 = vpack.c.bf16 %v720, %v720
    %v723 = vsel %vm393, %v721, 0
    %vm725 = vcmask 1043456
    %v727 = vsel %vm725, %v387, 0
    %729 = vmatprep.subr.bf16.mxu0 0
    %730 = vmatpush1.bf16.msra.mxu0 %v727
    %731 = vmatprep.subr.bf16.mxu0 0
    %732 = vmatpush1.bf16.msra.mxu0 0
    %733 = vmatprep.subr.bf16.mxu0 0
    %734 = vmatpush1.bf16.msra.mxu0 0
    %735 = vmatprep.subr.bf16.mxu0 0
    %736 = vmatpush1.bf16.msra.mxu0 0
    %737 = vmatprep.subr.bf16.mxu0 0
    %738 = vmatpush1.bf16.msra.mxu0 0
    %739 = vmatprep.subr.bf16.mxu0 0
    %740 = vmatpush1.bf16.msra.mxu0 0
    %741 = vmatprep.subr.bf16.mxu0 0
    %742 = vmatpush1.bf16.msra.mxu0 0
    %743 = vmatprep.subr.bf16.mxu0 0
    %744 = vmatpush1.bf16.msra.mxu0 0
    %745 = vmatprep.subr.bf16.mxu0 0
    %746 = vmatpush1.bf16.msra.mxu0 0
    %747 = vmatprep.subr.bf16.mxu0 0
    %748 = vmatpush1.bf16.msra.mxu0 0
    %749 = vmatprep.subr.bf16.mxu0 0
    %750 = vmatpush1.bf16.msra.mxu0 0
    %751 = vmatprep.subr.bf16.mxu0 0
    %752 = vmatpush1.bf16.msra.mxu0 0
    %753 = vmatprep.subr.bf16.mxu0 0
    %754 = vmatpush1.bf16.msra.mxu0 0
    %755 = vmatprep.subr.bf16.mxu0 0
    %756 = vmatpush1.bf16.msra.mxu0 0
    %757 = vmatprep.subr.bf16.mxu0 0
    %758 = vmatpush1.bf16.msra.mxu0 0
    %759 = vmatprep.subr.bf16.mxu0 0
    %760 = vmatpush1.bf16.msra.mxu0 0
    %761 = vmatprep.mubr.bf16.mxu0 0
    %762 = vmatmul.mubr.bf16.gmra.mrb[0].mxu0 %v723
    %v763 = vpop.f32.mrb[0].mxu0
    %v764 = vadd.f32 0.0, %v763
    %v765 = vpop.f32.mrb[0].mxu0
    %v766 = vpop.f32.mrb[0].mxu0
    %v767 = vpop.f32.mrb[0].mxu0
    %768 = vdwg.mxu0
    %v770 = vsel %vm393, %v555, 0
    %v773 = vsel %vm725, %v386, 0
    %775 = vmatprep.subr.bf16.mxu0 0
    %776 = vmatpush1.bf16.msra.mxu0 %v773
    %777 = vmatprep.subr.bf16.mxu0 0
    %778 = vmatpush1.bf16.msra.mxu0 0
    %779 = vmatprep.subr.bf16.mxu0 0
    %780 = vmatpush1.bf16.msra.mxu0 0
    %781 = vmatprep.subr.bf16.mxu0 0
    %782 = vmatpush1.bf16.msra.mxu0 0
    %783 = vmatprep.subr.bf16.mxu0 0
    %784 = vmatpush1.bf16.msra.mxu0 0
    %785 = vmatprep.subr.bf16.mxu0 0
    %786 = vmatpush1.bf16.msra.mxu0 0
    %787 = vmatprep.subr.bf16.mxu0 0
    %788 = vmatpush1.bf16.msra.mxu0 0
    %789 = vmatprep.subr.bf16.mxu0 0
    %790 = vmatpush1.bf16.msra.mxu0 0
    %791 = vmatprep.subr.bf16.mxu0 0
    %792 = vmatpush1.bf16.msra.mxu0 0
    %793 = vmatprep.subr.bf16.mxu0 0
    %794 = vmatpush1.bf16.msra.mxu0 0
    %795 = vmatprep.subr.bf16.mxu0 0
    %796 = vmatpush1.bf16.msra.mxu0 0
    %797 = vmatprep.subr.bf16.mxu0 0
    %798 = vmatpush1.bf16.msra.mxu0 0
    %799 = vmatprep.subr.bf16.mxu0 0
    %800 = vmatpush1.bf16.msra.mxu0 0
    %801 = vmatprep.subr.bf16.mxu0 0
    %802 = vmatpush1.bf16.msra.mxu0 0
    %803 = vmatprep.subr.bf16.mxu0 0
    %804 = vmatpush1.bf16.msra.mxu0 0
    %805 = vmatprep.subr.bf16.mxu0 0
    %806 = vmatpush1.bf16.msra.mxu0 0
    %807 = vmatprep.mubr.bf16.mxu0 0
    %808 = vmatmul.mubr.bf16.gmra.mrb[0].mxu0 %v770
    %v809 = vpop.f32.mrb[0].mxu0
    %v810 = vadd.f32 %v764, %v809
    %v811 = vpop.f32.mrb[0].mxu0
    %v812 = vpop.f32.mrb[0].mxu0
    %v813 = vpop.f32.mrb[0].mxu0
    %814 = vdwg.mxu0
    %815 = vrot.lane.b32.xlu0 %v380, 112
    %v816 = vpop.permute.xlu0 %815
    %817 = vrot.lane.b32.xlu0 %v380, 80
    %v818 = vpop.permute.xlu0 %817
    %v819 = vsel %vm393, %v816, 0
    %v821 = vsel %vm393, %v818, 0
    %823 = vmatprep.subr.mxu0 0.0
    %824 = vmatpush1.xpose.msra.mxu0 %v821
    %825 = vmatprep.subr.mxu0 0.0
    %826 = vmatpush1.xpose.msra.mxu0 0.0
    %827 = vmatprep.subr.mxu0 0.0
    %828 = vmatpush1.xpose.msra.mxu0 0.0
    %829 = vmatprep.subr.mxu0 0.0
    %830 = vmatpush1.xpose.msra.mxu0 0.0
    %831 = vmatprep.subr.mxu0 0.0
    %832 = vmatpush1.xpose.msra.mxu0 0.0
    %833 = vmatprep.subr.mxu0 0.0
    %834 = vmatpush1.xpose.msra.mxu0 0.0
    %835 = vmatprep.subr.mxu0 0.0
    %836 = vmatpush1.xpose.msra.mxu0 0.0
    %837 = vmatprep.subr.mxu0 0.0
    %838 = vmatpush1.xpose.msra.mxu0 0.0
    %839 = vmatprep.subr.mxu0 0.0
    %840 = vmatpush1.xpose.msra.mxu0 0.0
    %841 = vmatprep.subr.mxu0 0.0
    %842 = vmatpush1.xpose.msra.mxu0 0.0
    %843 = vmatprep.subr.mxu0 0.0
    %844 = vmatpush1.xpose.msra.mxu0 0.0
    %845 = vmatprep.subr.mxu0 0.0
    %846 = vmatpush1.xpose.msra.mxu0 0.0
    %847 = vmatprep.subr.mxu0 0.0
    %848 = vmatpush1.xpose.msra.mxu0 0.0
    %849 = vmatprep.subr.mxu0 0.0
    %850 = vmatpush1.xpose.msra.mxu0 0.0
    %851 = vmatprep.subr.mxu0 0.0
    %852 = vmatpush1.xpose.msra.mxu0 0.0
    %853 = vmatprep.subr.mxu0 0.0
    %854 = vmatpush1.xpose.msra.mxu0 0.0
    %855 = vmatprep.subr.mxu0 0.0
    %856 = vmatpush1.xpose.msra.mxu0 0.0
    %857 = vmatprep.subr.mxu0 0.0
    %858 = vmatpush1.xpose.msra.mxu0 0.0
    %859 = vmatprep.subr.mxu0 0.0
    %860 = vmatpush1.xpose.msra.mxu0 0.0
    %861 = vmatprep.subr.mxu0 0.0
    %862 = vmatpush1.xpose.msra.mxu0 0.0
    %863 = vmatprep.subr.mxu0 0.0
    %864 = vmatpush1.xpose.msra.mxu0 0.0
    %865 = vmatprep.subr.mxu0 0.0
    %866 = vmatpush1.xpose.msra.mxu0 0.0
    %867 = vmatprep.subr.mxu0 0.0
    %868 = vmatpush1.xpose.msra.mxu0 0.0
    %869 = vmatprep.subr.mxu0 0.0
    %870 = vmatpush1.xpose.msra.mxu0 0.0
    %871 = vmatprep.subr.mxu0 0.0
    %872 = vmatpush1.xpose.msra.mxu0 0.0
    %873 = vmatprep.subr.mxu0 0.0
    %874 = vmatpush1.xpose.msra.mxu0 0.0
    %875 = vmatprep.subr.mxu0 0.0
    %876 = vmatpush1.xpose.msra.mxu0 0.0
    %877 = vmatprep.subr.mxu0 0.0
    %878 = vmatpush1.xpose.msra.mxu0 0.0
    %879 = vmatprep.subr.mxu0 0.0
    %880 = vmatpush1.xpose.msra.mxu0 0.0
    %881 = vmatprep.subr.mxu0 0.0
    %882 = vmatpush1.xpose.msra.mxu0 0.0
    %883 = vmatprep.subr.mxu0 0.0
    %884 = vmatpush1.xpose.msra.mxu0 0.0
    %885 = vmatprep.subr.mxu0 0.0
    %886 = vmatpush1.xpose.msra.mxu0 0.0
    %887 = vmatprep.mubr.f32.mxu0 0.0
    %888 = vmatmul.mubr.f32.gmra.mrb[0].mxu0 %v819
    %v889 = vpop.f32.mrb[0].mxu0
    %v890 = vadd.f32 %v272, %v889
    %v891 = vpop.f32.mrb[0].mxu0
    %892 = vdwg.mxu0
    %v893 = vsel %vm393, %v890, -inf
    %894 = vmax.xlane.f32.xlu0 %v893
    %v895 = vpop.xlane.xlu0 %894
    %v896 = vsub.f32 %v890, %v895
    %v897 = vmul.f32 %v896, 1.442695
    %v898 = vpow.pop %v897
    %v899 = vsel %vm393, %v898, 0.0
    %900 = vadd.xlane.f32.xlu0 %v899
    %v901 = vpop.xlane.xlu0 %900
    %902 = vrot.lane.b32.xlu0 %v380, 48
    %v903 = vpop.permute.xlu0 %902
    %v906 = vsel %vm393, %v898, 0
    %908 = vmatprep.subr.mxu0 0.0
    %909 = vmatpush1.msra.mxu0 %v903
    %910 = vmatprep.subr.mxu0 0.0
    %911 = vmatpush1.msra.mxu0 0.0
    %912 = vmatprep.subr.mxu0 0.0
    %913 = vmatpush1.msra.mxu0 0.0
    %914 = vmatprep.subr.mxu0 0.0
    %915 = vmatpush1.msra.mxu0 0.0
    %916 = vmatprep.subr.mxu0 0.0
    %917 = vmatpush1.msra.mxu0 0.0
    %918 = vmatprep.subr.mxu0 0.0
    %919 = vmatpush1.msra.mxu0 0.0
    %920 = vmatprep.subr.mxu0 0.0
    %921 = vmatpush1.msra.mxu0 0.0
    %922 = vmatprep.subr.mxu0 0.0
    %923 = vmatpush1.msra.mxu0 0.0
    %924 = vmatprep.subr.mxu0 0.0
    %925 = vmatpush1.msra.mxu0 0.0
    %926 = vmatprep.subr.mxu0 0.0
    %927 = vmatpush1.msra.mxu0 0.0
    %928 = vmatprep.subr.mxu0 0.0
    %929 = vmatpush1.msra.mxu0 0.0
    %930 = vmatprep.subr.mxu0 0.0
    %931 = vmatpush1.msra.mxu0 0.0
    %932 = vmatprep.subr.mxu0 0.0
    %933 = vmatpush1.msra.mxu0 0.0
    %934 = vmatprep.subr.mxu0 0.0
    %935 = vmatpush1.msra.mxu0 0.0
    %936 = vmatprep.subr.mxu0 0.0
    %937 = vmatpush1.msra.mxu0 0.0
    %938 = vmatprep.subr.mxu0 0.0
    %939 = vmatpush1.msra.mxu0 0.0
    %940 = vmatprep.subr.mxu0 0.0
    %941 = vmatpush1.msra.mxu0 0.0
    %942 = vmatprep.subr.mxu0 0.0
    %943 = vmatpush1.msra.mxu0 0.0
    %944 = vmatprep.subr.mxu0 0.0
    %945 = vmatpush1.msra.mxu0 0.0
    %946 = vmatprep.subr.mxu0 0.0
    %947 = vmatpush1.msra.mxu0 0.0
    %948 = vmatprep.subr.mxu0 0.0
    %949 = vmatpush1.msra.mxu0 0.0
    %950 = vmatprep.subr.mxu0 0.0
    %951 = vmatpush1.msra.mxu0 0.0
    %952 = vmatprep.subr.mxu0 0.0
    %953 = vmatpush1.msra.mxu0 0.0
    %954 = vmatprep.subr.mxu0 0.0
    %955 = vmatpush1.msra.mxu0 0.0
    %956 = vmatprep.subr.mxu0 0.0
    %957 = vmatpush1.msra.mxu0 0.0
    %958 = vmatprep.subr.mxu0 0.0
    %959 = vmatpush1.msra.mxu0 0.0
    %960 = vmatprep.subr.mxu0 0.0
    %961 = vmatpush1.msra.mxu0 0.0
    %962 = vmatprep.subr.mxu0 0.0
    %963 = vmatpush1.msra.mxu0 0.0
    %964 = vmatprep.subr.mxu0 0.0
    %965 = vmatpush1.msra.mxu0 0.0
    %966 = vmatprep.subr.mxu0 0.0
    %967 = vmatpush1.msra.mxu0 0.0
    %968 = vmatprep.subr.mxu0 0.0
    %969 = vmatpush1.msra.mxu0 0.0
    %970 = vmatprep.subr.mxu0 0.0
    %971 = vmatpush1.msra.mxu0 0.0
    %972 = vmatprep.mubr.f32.mxu0 0.0
    %973 = vmatmul.mubr.f32.gmra.mrb[0].mxu0 %v906
    %v974 = vpop.f32.mrb[0].mxu0
    %v975 = vadd.f32 0.0, %v974
    %v976 = vpop.f32.mrb[0].mxu0
    %977 = vdwg.mxu0
    %v978 = vrcp.pop %v901
    %v979 = vmul.f32 %v975, %v978
    %v980 = vpack.c.bf16 %v979, %v979
    %v982 = vsel %vm393, %v980, 0
    %v985 = vsel %vm725, %v388, 0
    %987 = vmatprep.subr.bf16.mxu0 0
    %988 = vmatpush1.bf16.msra.mxu0 %v985
    %989 = vmatprep.subr.bf16.mxu0 0
    %990 = vmatpush1.bf16.msra.mxu0 0
    %991 = vmatprep.subr.bf16.mxu0 0
    %992 = vmatpush1.bf16.msra.mxu0 0
    %993 = vmatprep.subr.bf16.mxu0 0
    %994 = vmatpush1.bf16.msra.mxu0 0
    %995 = vmatprep.subr.bf16.mxu0 0
    %996 = vmatpush1.bf16.msra.mxu0 0
    %997 = vmatprep.subr.bf16.mxu0 0
    %998 = vmatpush1.bf16.msra.mxu0 0
    %999 = vmatprep.subr.bf16.mxu0 0
    %1000 = vmatpush1.bf16.msra.mxu0 0
    %1001 = vmatprep.subr.bf16.mxu0 0
    %1002 = vmatpush1.bf16.msra.mxu0 0
    %1003 = vmatprep.subr.bf16.mxu0 0
    %1004 = vmatpush1.bf16.msra.mxu0 0
    %1005 = vmatprep.subr.bf16.mxu0 0
    %1006 = vmatpush1.bf16.msra.mxu0 0
    %1007 = vmatprep.subr.bf16.mxu0 0
    %1008 = vmatpush1.bf16.msra.mxu0 0
    %1009 = vmatprep.subr.bf16.mxu0 0
    %1010 = vmatpush1.bf16.msra.mxu0 0
    %1011 = vmatprep.subr.bf16.mxu0 0
    %1012 = vmatpush1.bf16.msra.mxu0 0
    %1013 = vmatprep.subr.bf16.mxu0 0
    %1014 = vmatpush1.bf16.msra.mxu0 0
    %1015 = vmatprep.subr.bf16.mxu0 0
    %1016 = vmatpush1.bf16.msra.mxu0 0
    %1017 = vmatprep.subr.bf16.mxu0 0
    %1018 = vmatpush1.bf16.msra.mxu0 0
    %1019 = vmatprep.mubr.bf16.mxu0 0
    %1020 = vmatmul.mubr.bf16.gmra.mrb[0].mxu0 %v982
    %v1021 = vpop.f32.mrb[0].mxu0
    %v1022 = vadd.f32 0.0, %v1021
    %v1023 = vpop.f32.mrb[0].mxu0
    %v1024 = vpop.f32.mrb[0].mxu0
    %v1025 = vpop.f32.mrb[0].mxu0
    %1026 = vdwg.mxu0
    %v1027 = vadd.f32 %v810, %v1022
    %1028 = vrot.lane.b32.xlu0 %v380, 104
    %v1029 = vpop.permute.xlu0 %1028
    %1030 = vrot.lane.b32.xlu0 %v380, 72
    %v1031 = vpop.permute.xlu0 %1030
    %v1032 = vsel %vm393, %v1029, 0
    %v1034 = vsel %vm393, %v1031, 0
    %1036 = vmatprep.subr.mxu0 0.0
    %1037 = vmatpush1.xpose.msra.mxu0 %v1034
    %1038 = vmatprep.subr.mxu0 0.0
    %1039 = vmatpush1.xpose.msra.mxu0 0.0
    %1040 = vmatprep.subr.mxu0 0.0
    %1041 = vmatpush1.xpose.msra.mxu0 0.0
    %1042 = vmatprep.subr.mxu0 0.0
    %1043 = vmatpush1.xpose.msra.mxu0 0.0
    %1044 = vmatprep.subr.mxu0 0.0
    %1045 = vmatpush1.xpose.msra.mxu0 0.0
    %1046 = vmatprep.subr.mxu0 0.0
    %1047 = vmatpush1.xpose.msra.mxu0 0.0
    %1048 = vmatprep.subr.mxu0 0.0
    %1049 = vmatpush1.xpose.msra.mxu0 0.0
    %1050 = vmatprep.subr.mxu0 0.0
    %1051 = vmatpush1.xpose.msra.mxu0 0.0
    %1052 = vmatprep.subr.mxu0 0.0
    %1053 = vmatpush1.xpose.msra.mxu0 0.0
    %1054 = vmatprep.subr.mxu0 0.0
    %1055 = vmatpush1.xpose.msra.mxu0 0.0
    %1056 = vmatprep.subr.mxu0 0.0
    %1057 = vmatpush1.xpose.msra.mxu0 0.0
    %1058 = vmatprep.subr.mxu0 0.0
    %1059 = vmatpush1.xpose.msra.mxu0 0.0
    %1060 = vmatprep.subr.mxu0 0.0
    %1061 = vmatpush1.xpose.msra.mxu0 0.0
    %1062 = vmatprep.subr.mxu0 0.0
    %1063 = vmatpush1.xpose.msra.mxu0 0.0
    %1064 = vmatprep.subr.mxu0 0.0
    %1065 = vmatpush1.xpose.msra.mxu0 0.0
    %1066 = vmatprep.subr.mxu0 0.0
    %1067 = vmatpush1.xpose.msra.mxu0 0.0
    %1068 = vmatprep.subr.mxu0 0.0
    %1069 = vmatpush1.xpose.msra.mxu0 0.0
    %1070 = vmatprep.subr.mxu0 0.0
    %1071 = vmatpush1.xpose.msra.mxu0 0.0
    %1072 = vmatprep.subr.mxu0 0.0
    %1073 = vmatpush1.xpose.msra.mxu0 0.0
    %1074 = vmatprep.subr.mxu0 0.0
    %1075 = vmatpush1.xpose.msra.mxu0 0.0
    %1076 = vmatprep.subr.mxu0 0.0
    %1077 = vmatpush1.xpose.msra.mxu0 0.0
    %1078 = vmatprep.subr.mxu0 0.0
    %1079 = vmatpush1.xpose.msra.mxu0 0.0
    %1080 = vmatprep.subr.mxu0 0.0
    %1081 = vmatpush1.xpose.msra.mxu0 0.0
    %1082 = vmatprep.subr.mxu0 0.0
    %1083 = vmatpush1.xpose.msra.mxu0 0.0
    %1084 = vmatprep.subr.mxu0 0.0
    %1085 = vmatpush1.xpose.msra.mxu0 0.0
    %1086 = vmatprep.subr.mxu0 0.0
    %1087 = vmatpush1.xpose.msra.mxu0 0.0
    %1088 = vmatprep.subr.mxu0 0.0
    %1089 = vmatpush1.xpose.msra.mxu0 0.0
    %1090 = vmatprep.subr.mxu0 0.0
    %1091 = vmatpush1.xpose.msra.mxu0 0.0
    %1092 = vmatprep.subr.mxu0 0.0
    %1093 = vmatpush1.xpose.msra.mxu0 0.0
    %1094 = vmatprep.subr.mxu0 0.0
    %1095 = vmatpush1.xpose.msra.mxu0 0.0
    %1096 = vmatprep.subr.mxu0 0.0
    %1097 = vmatpush1.xpose.msra.mxu0 0.0
    %1098 = vmatprep.subr.mxu0 0.0
    %1099 = vmatpush1.xpose.msra.mxu0 0.0
    %1100 = vmatprep.mubr.f32.mxu0 0.0
    %1101 = vmatmul.mubr.f32.gmra.mrb[0].mxu0 %v1032
    %v1102 = vpop.f32.mrb[0].mxu0
    %v1103 = vadd.f32 %v272, %v1102
    %v1104 = vpop.f32.mrb[0].mxu0
    %1105 = vdwg.mxu0
    %v1106 = vsel %vm393, %v1103, -inf
    %1107 = vmax.xlane.f32.xlu0 %v1106
    %v1108 = vpop.xlane.xlu0 %1107
    %v1109 = vsub.f32 %v1103, %v1108
    %v1110 = vmul.f32 %v1109, 1.442695
    %v1111 = vpow.pop %v1110
    %v1112 = vsel %vm393, %v1111, 0.0
    %1113 = vadd.xlane.f32.xlu0 %v1112
    %v1114 = vpop.xlane.xlu0 %1113
    %1115 = vrot.lane.b32.xlu0 %v380, 40
    %v1116 = vpop.permute.xlu0 %1115
    %v1119 = vsel %vm393, %v1111, 0
    %1121 = vmatprep.subr.mxu0 0.0
    %1122 = vmatpush1.msra.mxu0 %v1116
    %1123 = vmatprep.subr.mxu0 0.0
    %1124 = vmatpush1.msra.mxu0 0.0
    %1125 = vmatprep.subr.mxu0 0.0
    %1126 = vmatpush1.msra.mxu0 0.0
    %1127 = vmatprep.subr.mxu0 0.0
    %1128 = vmatpush1.msra.mxu0 0.0
    %1129 = vmatprep.subr.mxu0 0.0
    %1130 = vmatpush1.msra.mxu0 0.0
    %1131 = vmatprep.subr.mxu0 0.0
    %1132 = vmatpush1.msra.mxu0 0.0
    %1133 = vmatprep.subr.mxu0 0.0
    %1134 = vmatpush1.msra.mxu0 0.0
    %1135 = vmatprep.subr.mxu0 0.0
    %1136 = vmatpush1.msra.mxu0 0.0
    %1137 = vmatprep.subr.mxu0 0.0
    %1138 = vmatpush1.msra.mxu0 0.0
    %1139 = vmatprep.subr.mxu0 0.0
    %1140 = vmatpush1.msra.mxu0 0.0
    %1141 = vmatprep.subr.mxu0 0.0
    %1142 = vmatpush1.msra.mxu0 0.0
    %1143 = vmatprep.subr.mxu0 0.0
    %1144 = vmatpush1.msra.mxu0 0.0
    %1145 = vmatprep.subr.mxu0 0.0
    %1146 = vmatpush1.msra.mxu0 0.0
    %1147 = vmatprep.subr.mxu0 0.0
    %1148 = vmatpush1.msra.mxu0 0.0
    %1149 = vmatprep.subr.mxu0 0.0
    %1150 = vmatpush1.msra.mxu0 0.0
    %1151 = vmatprep.subr.mxu0 0.0
    %1152 = vmatpush1.msra.mxu0 0.0
    %1153 = vmatprep.subr.mxu0 0.0
    %1154 = vmatpush1.msra.mxu0 0.0
    %1155 = vmatprep.subr.mxu0 0.0
    %1156 = vmatpush1.msra.mxu0 0.0
    %1157 = vmatprep.subr.mxu0 0.0
    %1158 = vmatpush1.msra.mxu0 0.0
    %1159 = vmatprep.subr.mxu0 0.0
    %1160 = vmatpush1.msra.mxu0 0.0
    %1161 = vmatprep.subr.mxu0 0.0
    %1162 = vmatpush1.msra.mxu0 0.0
    %1163 = vmatprep.subr.mxu0 0.0
    %1164 = vmatpush1.msra.mxu0 0.0
    %1165 = vmatprep.subr.mxu0 0.0
    %1166 = vmatpush1.msra.mxu0 0.0
    %1167 = vmatprep.subr.mxu0 0.0
    %1168 = vmatpush1.msra.mxu0 0.0
    %1169 = vmatprep.subr.mxu0 0.0
    %1170 = vmatpush1.msra.mxu0 0.0
    %1171 = vmatprep.subr.mxu0 0.0
    %1172 = vmatpush1.msra.mxu0 0.0
    %1173 = vmatprep.subr.mxu0 0.0
    %1174 = vmatpush1.msra.mxu0 0.0
    %1175 = vmatprep.subr.mxu0 0.0
    %1176 = vmatpush1.msra.mxu0 0.0
    %1177 = vmatprep.subr.mxu0 0.0
    %1178 = vmatpush1.msra.mxu0 0.0
    %1179 = vmatprep.subr.mxu0 0.0
    %1180 = vmatpush1.msra.mxu0 0.0
    %1181 = vmatprep.subr.mxu0 0.0
    %1182 = vmatpush1.msra.mxu0 0.0
    %1183 = vmatprep.subr.mxu0 0.0
    %1184 = vmatpush1.msra.mxu0 0.0
    %1185 = vmatprep.mubr.f32.mxu0 0.0
    %1186 = vmatmul.mubr.f32.gmra.mrb[0].mxu0 %v1119
    %v1187 = vpop.f32.mrb[0].mxu0
    %v1188 = vadd.f32 0.0, %v1187
    %v1189 = vpop.f32.mrb[0].mxu0
    %1190 = vdwg.mxu0
    %v1191 = vrcp.pop %v1114
    %v1192 = vmul.f32 %v1188, %v1191
    %v1193 = vpack.c.bf16 %v1192, %v1192
    %v1195 = vsel %vm393, %v1193, 0
    %v1198 = vsel %vm725, %v389, 0
    %1200 = vmatprep.subr.bf16.mxu0 0
    %1201 = vmatpush1.bf16.msra.mxu0 %v1198
    %1202 = vmatprep.subr.bf16.mxu0 0
    %1203 = vmatpush1.bf16.msra.mxu0 0
    %1204 = vmatprep.subr.bf16.mxu0 0
    %1205 = vmatpush1.bf16.msra.mxu0 0
    %1206 = vmatprep.subr.bf16.mxu0 0
    %1207 = vmatpush1.bf16.msra.mxu0 0
    %1208 = vmatprep.subr.bf16.mxu0 0
    %1209 = vmatpush1.bf16.msra.mxu0 0
    %1210 = vmatprep.subr.bf16.mxu0 0
    %1211 = vmatpush1.bf16.msra.mxu0 0
    %1212 = vmatprep.subr.bf16.mxu0 0
    %1213 = vmatpush1.bf16.msra.mxu0 0
    %1214 = vmatprep.subr.bf16.mxu0 0
    %1215 = vmatpush1.bf16.msra.mxu0 0
    %1216 = vmatprep.subr.bf16.mxu0 0
    %1217 = vmatpush1.bf16.msra.mxu0 0
    %1218 = vmatprep.subr.bf16.mxu0 0
    %1219 = vmatpush1.bf16.msra.mxu0 0
    %1220 = vmatprep.subr.bf16.mxu0 0
    %1221 = vmatpush1.bf16.msra.mxu0 0
    %1222 = vmatprep.subr.bf16.mxu0 0
    %1223 = vmatpush1.bf16.msra.mxu0 0
    %1224 = vmatprep.subr.bf16.mxu0 0
    %1225 = vmatpush1.bf16.msra.mxu0 0
    %1226 = vmatprep.subr.bf16.mxu0 0
    %1227 = vmatpush1.bf16.msra.mxu0 0
    %1228 = vmatprep.subr.bf16.mxu0 0
    %1229 = vmatpush1.bf16.msra.mxu0 0
    %1230 = vmatprep.subr.bf16.mxu0 0
    %1231 = vmatpush1.bf16.msra.mxu0 0
    %1232 = vmatprep.mubr.bf16.mxu0 0
    %1233 = vmatmul.mubr.bf16.gmra.mrb[0].mxu0 %v1195
    %v1234 = vpop.f32.mrb[0].mxu0
    %v1235 = vadd.f32 0.0, %v1234
    %v1236 = vpop.f32.mrb[0].mxu0
    %v1237 = vpop.f32.mrb[0].mxu0
    %v1238 = vpop.f32.mrb[0].mxu0
    %1239 = vdwg.mxu0
    %v1240 = vadd.f32 %v1027, %v1235
    %1242 = vrot.lane.b32.xlu0 %v383, 96
    %v1243 = vpop.permute.xlu0 %1242
    %v1244 = vsel %vm393, %v383, 0
    %v1246 = vsel %vm393, %v1243, 0
    %1248 = vmatprep.subr.mxu0 0.0
    %1249 = vmatpush1.xpose.msra.mxu0 %v1246
    %1250 = vmatprep.subr.mxu0 0.0
    %1251 = vmatpush1.xpose.msra.mxu0 0.0
    %1252 = vmatprep.subr.mxu0 0.0
    %1253 = vmatpush1.xpose.msra.mxu0 0.0
    %1254 = vmatprep.subr.mxu0 0.0
    %1255 = vmatpush1.xpose.msra.mxu0 0.0
    %1256 = vmatprep.subr.mxu0 0.0
    %1257 = vmatpush1.xpose.msra.mxu0 0.0
    %1258 = vmatprep.subr.mxu0 0.0
    %1259 = vmatpush1.xpose.msra.mxu0 0.0
    %1260 = vmatprep.subr.mxu0 0.0
    %1261 = vmatpush1.xpose.msra.mxu0 0.0
    %1262 = vmatprep.subr.mxu0 0.0
    %1263 = vmatpush1.xpose.msra.mxu0 0.0
    %1264 = vmatprep.subr.mxu0 0.0
    %1265 = vmatpush1.xpose.msra.mxu0 0.0
    %1266 = vmatprep.subr.mxu0 0.0
    %1267 = vmatpush1.xpose.msra.mxu0 0.0
    %1268 = vmatprep.subr.mxu0 0.0
    %1269 = vmatpush1.xpose.msra.mxu0 0.0
    %1270 = vmatprep.subr.mxu0 0.0
    %1271 = vmatpush1.xpose.msra.mxu0 0.0
    %1272 = vmatprep.subr.mxu0 0.0
    %1273 = vmatpush1.xpose.msra.mxu0 0.0
    %1274 = vmatprep.subr.mxu0 0.0
    %1275 = vmatpush1.xpose.msra.mxu0 0.0
    %1276 = vmatprep.subr.mxu0 0.0
    %1277 = vmatpush1.xpose.msra.mxu0 0.0
    %1278 = vmatprep.subr.mxu0 0.0
    %1279 = vmatpush1.xpose.msra.mxu0 0.0
    %1280 = vmatprep.subr.mxu0 0.0
    %1281 = vmatpush1.xpose.msra.mxu0 0.0
    %1282 = vmatprep.subr.mxu0 0.0
    %1283 = vmatpush1.xpose.msra.mxu0 0.0
    %1284 = vmatprep.subr.mxu0 0.0
    %1285 = vmatpush1.xpose.msra.mxu0 0.0
    %1286 = vmatprep.subr.mxu0 0.0
    %1287 = vmatpush1.xpose.msra.mxu0 0.0
    %1288 = vmatprep.subr.mxu0 0.0
    %1289 = vmatpush1.xpose.msra.mxu0 0.0
    %1290 = vmatprep.subr.mxu0 0.0
    %1291 = vmatpush1.xpose.msra.mxu0 0.0
    %1292 = vmatprep.subr.mxu0 0.0
    %1293 = vmatpush1.xpose.msra.mxu0 0.0
    %1294 = vmatprep.subr.mxu0 0.0
    %1295 = vmatpush1.xpose.msra.mxu0 0.0
    %1296 = vmatprep.subr.mxu0 0.0
    %1297 = vmatpush1.xpose.msra.mxu0 0.0
    %1298 = vmatprep.subr.mxu0 0.0
    %1299 = vmatpush1.xpose.msra.mxu0 0.0
    %1300 = vmatprep.subr.mxu0 0.0
    %1301 = vmatpush1.xpose.msra.mxu0 0.0
    %1302 = vmatprep.subr.mxu0 0.0
    %1303 = vmatpush1.xpose.msra.mxu0 0.0
    %1304 = vmatprep.subr.mxu0 0.0
    %1305 = vmatpush1.xpose.msra.mxu0 0.0
    %1306 = vmatprep.subr.mxu0 0.0
    %1307 = vmatpush1.xpose.msra.mxu0 0.0
    %1308 = vmatprep.subr.mxu0 0.0
    %1309 = vmatpush1.xpose.msra.mxu0 0.0
    %1310 = vmatprep.subr.mxu0 0.0
    %1311 = vmatpush1.xpose.msra.mxu0 0.0
    %1312 = vmatprep.mubr.f32.mxu0 0.0
    %1313 = vmatmul.mubr.f32.gmra.mrb[0].mxu0 %v1244
    %v1314 = vpop.f32.mrb[0].mxu0
    %v1315 = vadd.f32 %v272, %v1314
    %v1316 = vpop.f32.mrb[0].mxu0
    %1317 = vdwg.mxu0
    %v1318 = vsel %vm393, %v1315, -inf
    %1319 = vmax.xlane.f32.xlu0 %v1318
    %v1320 = vpop.xlane.xlu0 %1319
    %v1321 = vsub.f32 %v1315, %v1320
    %v1322 = vmul.f32 %v1321, 1.442695
    %v1323 = vpow.pop %v1322
    %v1324 = vsel %vm393, %v1323, 0.0
    %1325 = vadd.xlane.f32.xlu0 %v1324
    %v1326 = vpop.xlane.xlu0 %1325
    %1327 = vrot.lane.b32.xlu0 %v383, 64
    %v1328 = vpop.permute.xlu0 %1327
    %v1331 = vsel %vm393, %v1323, 0
    %1333 = vmatprep.subr.mxu0 0.0
    %1334 = vmatpush1.msra.mxu0 %v1328
    %1335 = vmatprep.subr.mxu0 0.0
    %1336 = vmatpush1.msra.mxu0 0.0
    %1337 = vmatprep.subr.mxu0 0.0
    %1338 = vmatpush1.msra.mxu0 0.0
    %1339 = vmatprep.subr.mxu0 0.0
    %1340 = vmatpush1.msra.mxu0 0.0
    %1341 = vmatprep.subr.mxu0 0.0
    %1342 = vmatpush1.msra.mxu0 0.0
    %1343 = vmatprep.subr.mxu0 0.0
    %1344 = vmatpush1.msra.mxu0 0.0
    %1345 = vmatprep.subr.mxu0 0.0
    %1346 = vmatpush1.msra.mxu0 0.0
    %1347 = vmatprep.subr.mxu0 0.0
    %1348 = vmatpush1.msra.mxu0 0.0
    %1349 = vmatprep.subr.mxu0 0.0
    %1350 = vmatpush1.msra.mxu0 0.0
    %1351 = vmatprep.subr.mxu0 0.0
    %1352 = vmatpush1.msra.mxu0 0.0
    %1353 = vmatprep.subr.mxu0 0.0
    %1354 = vmatpush1.msra.mxu0 0.0
    %1355 = vmatprep.subr.mxu0 0.0
    %1356 = vmatpush1.msra.mxu0 0.0
    %1357 = vmatprep.subr.mxu0 0.0
    %1358 = vmatpush1.msra.mxu0 0.0
    %1359 = vmatprep.subr.mxu0 0.0
    %1360 = vmatpush1.msra.mxu0 0.0
    %1361 = vmatprep.subr.mxu0 0.0
    %1362 = vmatpush1.msra.mxu0 0.0
    %1363 = vmatprep.subr.mxu0 0.0
    %1364 = vmatpush1.msra.mxu0 0.0
    %1365 = vmatprep.subr.mxu0 0.0
    %1366 = vmatpush1.msra.mxu0 0.0
    %1367 = vmatprep.subr.mxu0 0.0
    %1368 = vmatpush1.msra.mxu0 0.0
    %1369 = vmatprep.subr.mxu0 0.0
    %1370 = vmatpush1.msra.mxu0 0.0
    %1371 = vmatprep.subr.mxu0 0.0
    %1372 = vmatpush1.msra.mxu0 0.0
    %1373 = vmatprep.subr.mxu0 0.0
    %1374 = vmatpush1.msra.mxu0 0.0
    %1375 = vmatprep.subr.mxu0 0.0
    %1376 = vmatpush1.msra.mxu0 0.0
    %1377 = vmatprep.subr.mxu0 0.0
    %1378 = vmatpush1.msra.mxu0 0.0
    %1379 = vmatprep.subr.mxu0 0.0
    %1380 = vmatpush1.msra.mxu0 0.0
    %1381 = vmatprep.subr.mxu0 0.0
    %1382 = vmatpush1.msra.mxu0 0.0
    %1383 = vmatprep.subr.mxu0 0.0
    %1384 = vmatpush1.msra.mxu0 0.0
    %1385 = vmatprep.subr.mxu0 0.0
    %1386 = vmatpush1.msra.mxu0 0.0
    %1387 = vmatprep.subr.mxu0 0.0
    %1388 = vmatpush1.msra.mxu0 0.0
    %1389 = vmatprep.subr.mxu0 0.0
    %1390 = vmatpush1.msra.mxu0 0.0
    %1391 = vmatprep.subr.mxu0 0.0
    %1392 = vmatpush1.msra.mxu0 0.0
    %1393 = vmatprep.subr.mxu0 0.0
    %1394 = vmatpush1.msra.mxu0 0.0
    %1395 = vmatprep.subr.mxu0 0.0
    %1396 = vmatpush1.msra.mxu0 0.0
    %1397 = vmatprep.mubr.f32.mxu0 0.0
    %1398 = vmatmul.mubr.f32.gmra.mrb[0].mxu0 %v1331
    %v1399 = vpop.f32.mrb[0].mxu0
    %v1400 = vadd.f32 0.0, %v1399
    %v1401 = vpop.f32.mrb[0].mxu0
    %1402 = vdwg.mxu0
    %v1403 = vrcp.pop %v1326
    %v1404 = vmul.f32 %v1400, %v1403
    %v1405 = vpack.c.bf16 %v1404, %v1404
    %1406 = vrot.lane.b32.xlu0 %v383, 120
    %v1407 = vpop.permute.xlu0 %1406
    %1408 = vrot.lane.b32.xlu0 %v383, 88
    %v1409 = vpop.permute.xlu0 %1408
    %v1410 = vsel %vm393, %v1407, 0
    %v1412 = vsel %vm393, %v1409, 0
    %1414 = vmatprep.subr.mxu0 0.0
    %1415 = vmatpush1.xpose.msra.mxu0 %v1412
    %1416 = vmatprep.subr.mxu0 0.0
    %1417 = vmatpush1.xpose.msra.mxu0 0.0
    %1418 = vmatprep.subr.mxu0 0.0
    %1419 = vmatpush1.xpose.msra.mxu0 0.0
    %1420 = vmatprep.subr.mxu0 0.0
    %1421 = vmatpush1.xpose.msra.mxu0 0.0
    %1422 = vmatprep.subr.mxu0 0.0
    %1423 = vmatpush1.xpose.msra.mxu0 0.0
    %1424 = vmatprep.subr.mxu0 0.0
    %1425 = vmatpush1.xpose.msra.mxu0 0.0
    %1426 = vmatprep.subr.mxu0 0.0
    %1427 = vmatpush1.xpose.msra.mxu0 0.0
    %1428 = vmatprep.subr.mxu0 0.0
    %1429 = vmatpush1.xpose.msra.mxu0 0.0
    %1430 = vmatprep.subr.mxu0 0.0
    %1431 = vmatpush1.xpose.msra.mxu0 0.0
    %1432 = vmatprep.subr.mxu0 0.0
    %1433 = vmatpush1.xpose.msra.mxu0 0.0
    %1434 = vmatprep.subr.mxu0 0.0
    %1435 = vmatpush1.xpose.msra.mxu0 0.0
    %1436 = vmatprep.subr.mxu0 0.0
    %1437 = vmatpush1.xpose.msra.mxu0 0.0
    %1438 = vmatprep.subr.mxu0 0.0
    %1439 = vmatpush1.xpose.msra.mxu0 0.0
    %1440 = vmatprep.subr.mxu0 0.0
    %1441 = vmatpush1.xpose.msra.mxu0 0.0
    %1442 = vmatprep.subr.mxu0 0.0
    %1443 = vmatpush1.xpose.msra.mxu0 0.0
    %1444 = vmatprep.subr.mxu0 0.0
    %1445 = vmatpush1.xpose.msra.mxu0 0.0
    %1446 = vmatprep.subr.mxu0 0.0
    %1447 = vmatpush1.xpose.msra.mxu0 0.0
    %1448 = vmatprep.subr.mxu0 0.0
    %1449 = vmatpush1.xpose.msra.mxu0 0.0
    %1450 = vmatprep.subr.mxu0 0.0
    %1451 = vmatpush1.xpose.msra.mxu0 0.0
    %1452 = vmatprep.subr.mxu0 0.0
    %1453 = vmatpush1.xpose.msra.mxu0 0.0
    %1454 = vmatprep.subr.mxu0 0.0
    %1455 = vmatpush1.xpose.msra.mxu0 0.0
    %1456 = vmatprep.subr.mxu0 0.0
    %1457 = vmatpush1.xpose.msra.mxu0 0.0
    %1458 = vmatprep.subr.mxu0 0.0
    %1459 = vmatpush1.xpose.msra.mxu0 0.0
    %1460 = vmatprep.subr.mxu0 0.0
    %1461 = vmatpush1.xpose.msra.mxu0 0.0
    %1462 = vmatprep.subr.mxu0 0.0
    %1463 = vmatpush1.xpose.msra.mxu0 0.0
    %1464 = vmatprep.subr.mxu0 0.0
    %1465 = vmatpush1.xpose.msra.mxu0 0.0
    %1466 = vmatprep.subr.mxu0 0.0
    %1467 = vmatpush1.xpose.msra.mxu0 0.0
    %1468 = vmatprep.subr.mxu0 0.0
    %1469 = vmatpush1.xpose.msra.mxu0 0.0
    %1470 = vmatprep.subr.mxu0 0.0
    %1471 = vmatpush1.xpose.msra.mxu0 0.0
    %1472 = vmatprep.subr.mxu0 0.0
    %1473 = vmatpush1.xpose.msra.mxu0 0.0
    %1474 = vmatprep.subr.mxu0 0.0
    %1475 = vmatpush1.xpose.msra.mxu0 0.0
    %1476 = vmatprep.subr.mxu0 0.0
    %1477 = vmatpush1.xpose.msra.mxu0 0.0
    %1478 = vmatprep.mubr.f32.mxu0 0.0
    %1479 = vmatmul.mubr.f32.gmra.mrb[0].mxu0 %v1410
    %v1480 = vpop.f32.mrb[0].mxu0
    %v1481 = vadd.f32 %v272, %v1480
    %v1482 = vpop.f32.mrb[0].mxu0
    %1483 = vdwg.mxu0
    %v1484 = vsel %vm393, %v1481, -inf
    %1485 = vmax.xlane.f32.xlu0 %v1484
    %v1486 = vpop.xlane.xlu0 %1485
    %v1487 = vsub.f32 %v1481, %v1486
    %v1488 = vmul.f32 %v1487, 1.442695
    %v1489 = vpow.pop %v1488
    %v1490 = vsel %vm393, %v1489, 0.0
    %1491 = vadd.xlane.f32.xlu0 %v1490
    %v1492 = vpop.xlane.xlu0 %1491
    %1493 = vrot.lane.b32.xlu0 %v383, 56
    %v1494 = vpop.permute.xlu0 %1493
    %v1497 = vsel %vm393, %v1489, 0
    %1499 = vmatprep.subr.mxu0 0.0
    %1500 = vmatpush1.msra.mxu0 %v1494
    %1501 = vmatprep.subr.mxu0 0.0
    %1502 = vmatpush1.msra.mxu0 0.0
    %1503 = vmatprep.subr.mxu0 0.0
    %1504 = vmatpush1.msra.mxu0 0.0
    %1505 = vmatprep.subr.mxu0 0.0
    %1506 = vmatpush1.msra.mxu0 0.0
    %1507 = vmatprep.subr.mxu0 0.0
    %1508 = vmatpush1.msra.mxu0 0.0
    %1509 = vmatprep.subr.mxu0 0.0
    %1510 = vmatpush1.msra.mxu0 0.0
    %1511 = vmatprep.subr.mxu0 0.0
    %1512 = vmatpush1.msra.mxu0 0.0
    %1513 = vmatprep.subr.mxu0 0.0
    %1514 = vmatpush1.msra.mxu0 0.0
    %1515 = vmatprep.subr.mxu0 0.0
    %1516 = vmatpush1.msra.mxu0 0.0
    %1517 = vmatprep.subr.mxu0 0.0
    %1518 = vmatpush1.msra.mxu0 0.0
    %1519 = vmatprep.subr.mxu0 0.0
    %1520 = vmatpush1.msra.mxu0 0.0
    %1521 = vmatprep.subr.mxu0 0.0
    %1522 = vmatpush1.msra.mxu0 0.0
    %1523 = vmatprep.subr.mxu0 0.0
    %1524 = vmatpush1.msra.mxu0 0.0
    %1525 = vmatprep.subr.mxu0 0.0
    %1526 = vmatpush1.msra.mxu0 0.0
    %1527 = vmatprep.subr.mxu0 0.0
    %1528 = vmatpush1.msra.mxu0 0.0
    %1529 = vmatprep.subr.mxu0 0.0
    %1530 = vmatpush1.msra.mxu0 0.0
    %1531 = vmatprep.subr.mxu0 0.0
    %1532 = vmatpush1.msra.mxu0 0.0
    %1533 = vmatprep.subr.mxu0 0.0
    %1534 = vmatpush1.msra.mxu0 0.0
    %1535 = vmatprep.subr.mxu0 0.0
    %1536 = vmatpush1.msra.mxu0 0.0
    %1537 = vmatprep.subr.mxu0 0.0
    %1538 = vmatpush1.msra.mxu0 0.0
    %1539 = vmatprep.subr.mxu0 0.0
    %1540 = vmatpush1.msra.mxu0 0.0
    %1541 = vmatprep.subr.mxu0 0.0
    %1542 = vmatpush1.msra.mxu0 0.0
    %1543 = vmatprep.subr.mxu0 0.0
    %1544 = vmatpush1.msra.mxu0 0.0
    %1545 = vmatprep.subr.mxu0 0.0
    %1546 = vmatpush1.msra.mxu0 0.0
    %1547 = vmatprep.subr.mxu0 0.0
    %1548 = vmatpush1.msra.mxu0 0.0
    %1549 = vmatprep.subr.mxu0 0.0
    %1550 = vmatpush1.msra.mxu0 0.0
    %1551 = vmatprep.subr.mxu0 0.0
    %1552 = vmatpush1.msra.mxu0 0.0
    %1553 = vmatprep.subr.mxu0 0.0
    %1554 = vmatpush1.msra.mxu0 0.0
    %1555 = vmatprep.subr.mxu0 0.0
    %1556 = vmatpush1.msra.mxu0 0.0
    %1557 = vmatprep.subr.mxu0 0.0
    %1558 = vmatpush1.msra.mxu0 0.0
    %1559 = vmatprep.subr.mxu0 0.0
    %1560 = vmatpush1.msra.mxu0 0.0
    %1561 = vmatprep.subr.mxu0 0.0
    %1562 = vmatpush1.msra.mxu0 0.0
    %1563 = vmatprep.mubr.f32.mxu0 0.0
    %1564 = vmatmul.mubr.f32.gmra.mrb[0].mxu0 %v1497
    %v1565 = vpop.f32.mrb[0].mxu0
    %v1566 = vadd.f32 0.0, %v1565
    %v1567 = vpop.f32.mrb[0].mxu0
    %1568 = vdwg.mxu0
    %v1569 = vrcp.pop %v1492
    %v1570 = vmul.f32 %v1566, %v1569
    %v1571 = vpack.c.bf16 %v1570, %v1570
    %v1573 = vsel %vm393, %v1571, 0
    %1575 = vmatprep.subr.bf16.mxu0 0
    %1576 = vmatpush1.bf16.msra.mxu0 %v727
    %1577 = vmatprep.subr.bf16.mxu0 0
    %1578 = vmatpush1.bf16.msra.mxu0 0
    %1579 = vmatprep.subr.bf16.mxu0 0
    %1580 = vmatpush1.bf16.msra.mxu0 0
    %1581 = vmatprep.subr.bf16.mxu0 0
    %1582 = vmatpush1.bf16.msra.mxu0 0
    %1583 = vmatprep.subr.bf16.mxu0 0
    %1584 = vmatpush1.bf16.msra.mxu0 0
    %1585 = vmatprep.subr.bf16.mxu0 0
    %1586 = vmatpush1.bf16.msra.mxu0 0
    %1587 = vmatprep.subr.bf16.mxu0 0
    %1588 = vmatpush1.bf16.msra.mxu0 0
    %1589 = vmatprep.subr.bf16.mxu0 0
    %1590 = vmatpush1.bf16.msra.mxu0 0
    %1591 = vmatprep.subr.bf16.mxu0 0
    %1592 = vmatpush1.bf16.msra.mxu0 0
    %1593 = vmatprep.subr.bf16.mxu0 0
    %1594 = vmatpush1.bf16.msra.mxu0 0
    %1595 = vmatprep.subr.bf16.mxu0 0
    %1596 = vmatpush1.bf16.msra.mxu0 0
    %1597 = vmatprep.subr.bf16.mxu0 0
    %1598 = vmatpush1.bf16.msra.mxu0 0
    %1599 = vmatprep.subr.bf16.mxu0 0
    %1600 = vmatpush1.bf16.msra.mxu0 0
    %1601 = vmatprep.subr.bf16.mxu0 0
    %1602 = vmatpush1.bf16.msra.mxu0 0
    %1603 = vmatprep.subr.bf16.mxu0 0
    %1604 = vmatpush1.bf16.msra.mxu0 0
    %1605 = vmatprep.subr.bf16.mxu0 0
    %1606 = vmatpush1.bf16.msra.mxu0 0
    %1607 = vmatprep.mubr.bf16.mxu0 0
    %1608 = vmatmul.mubr.bf16.gmra.mrb[0].mxu0 %v1573
    %v1609 = vpop.f32.mrb[0].mxu0
    %v1610 = vadd.f32 0.0, %v1609
    %v1611 = vpop.f32.mrb[0].mxu0
    %v1612 = vpop.f32.mrb[0].mxu0
    %v1613 = vpop.f32.mrb[0].mxu0
    %1614 = vdwg.mxu0
    %v1616 = vsel %vm393, %v1405, 0
    %1618 = vmatprep.subr.bf16.mxu0 0
    %1619 = vmatpush1.bf16.msra.mxu0 %v773
    %1620 = vmatprep.subr.bf16.mxu0 0
    %1621 = vmatpush1.bf16.msra.mxu0 0
    %1622 = vmatprep.subr.bf16.mxu0 0
    %1623 = vmatpush1.bf16.msra.mxu0 0
    %1624 = vmatprep.subr.bf16.mxu0 0
    %1625 = vmatpush1.bf16.msra.mxu0 0
    %1626 = vmatprep.subr.bf16.mxu0 0
    %1627 = vmatpush1.bf16.msra.mxu0 0
    %1628 = vmatprep.subr.bf16.mxu0 0
    %1629 = vmatpush1.bf16.msra.mxu0 0
    %1630 = vmatprep.subr.bf16.mxu0 0
    %1631 = vmatpush1.bf16.msra.mxu0 0
    %1632 = vmatprep.subr.bf16.mxu0 0
    %1633 = vmatpush1.bf16.msra.mxu0 0
    %1634 = vmatprep.subr.bf16.mxu0 0
    %1635 = vmatpush1.bf16.msra.mxu0 0
    %1636 = vmatprep.subr.bf16.mxu0 0
    %1637 = vmatpush1.bf16.msra.mxu0 0
    %1638 = vmatprep.subr.bf16.mxu0 0
    %1639 = vmatpush1.bf16.msra.mxu0 0
    %1640 = vmatprep.subr.bf16.mxu0 0
    %1641 = vmatpush1.bf16.msra.mxu0 0
    %1642 = vmatprep.subr.bf16.mxu0 0
    %1643 = vmatpush1.bf16.msra.mxu0 0
    %1644 = vmatprep.subr.bf16.mxu0 0
    %1645 = vmatpush1.bf16.msra.mxu0 0
    %1646 = vmatprep.subr.bf16.mxu0 0
    %1647 = vmatpush1.bf16.msra.mxu0 0
    %1648 = vmatprep.subr.bf16.mxu0 0
    %1649 = vmatpush1.bf16.msra.mxu0 0
    %1650 = vmatprep.mubr.bf16.mxu0 0
    %1651 = vmatmul.mubr.bf16.gmra.mrb[0].mxu0 %v1616
    %v1652 = vpop.f32.mrb[0].mxu0
    %v1653 = vadd.f32 %v1610, %v1652
    %v1654 = vpop.f32.mrb[0].mxu0
    %v1655 = vpop.f32.mrb[0].mxu0
    %v1656 = vpop.f32.mrb[0].mxu0
    %1657 = vdwg.mxu0
    %1658 = vrot.lane.b32.xlu0 %v383, 112
    %v1659 = vpop.permute.xlu0 %1658
    %1660 = vrot.lane.b32.xlu0 %v383, 80
    %v1661 = vpop.permute.xlu0 %1660
    %v1662 = vsel %vm393, %v1659, 0
    %v1664 = vsel %vm393, %v1661, 0
    %1666 = vmatprep.subr.mxu0 0.0
    %1667 = vmatpush1.xpose.msra.mxu0 %v1664
    %1668 = vmatprep.subr.mxu0 0.0
    %1669 = vmatpush1.xpose.msra.mxu0 0.0
    %1670 = vmatprep.subr.mxu0 0.0
    %1671 = vmatpush1.xpose.msra.mxu0 0.0
    %1672 = vmatprep.subr.mxu0 0.0
    %1673 = vmatpush1.xpose.msra.mxu0 0.0
    %1674 = vmatprep.subr.mxu0 0.0
    %1675 = vmatpush1.xpose.msra.mxu0 0.0
    %1676 = vmatprep.subr.mxu0 0.0
    %1677 = vmatpush1.xpose.msra.mxu0 0.0
    %1678 = vmatprep.subr.mxu0 0.0
    %1679 = vmatpush1.xpose.msra.mxu0 0.0
    %1680 = vmatprep.subr.mxu0 0.0
    %1681 = vmatpush1.xpose.msra.mxu0 0.0
    %1682 = vmatprep.subr.mxu0 0.0
    %1683 = vmatpush1.xpose.msra.mxu0 0.0
    %1684 = vmatprep.subr.mxu0 0.0
    %1685 = vmatpush1.xpose.msra.mxu0 0.0
    %1686 = vmatprep.subr.mxu0 0.0
    %1687 = vmatpush1.xpose.msra.mxu0 0.0
    %1688 = vmatprep.subr.mxu0 0.0
    %1689 = vmatpush1.xpose.msra.mxu0 0.0
    %1690 = vmatprep.subr.mxu0 0.0
    %1691 = vmatpush1.xpose.msra.mxu0 0.0
    %1692 = vmatprep.subr.mxu0 0.0
    %1693 = vmatpush1.xpose.msra.mxu0 0.0
    %1694 = vmatprep.subr.mxu0 0.0
    %1695 = vmatpush1.xpose.msra.mxu0 0.0
    %1696 = vmatprep.subr.mxu0 0.0
    %1697 = vmatpush1.xpose.msra.mxu0 0.0
    %1698 = vmatprep.subr.mxu0 0.0
    %1699 = vmatpush1.xpose.msra.mxu0 0.0
    %1700 = vmatprep.subr.mxu0 0.0
    %1701 = vmatpush1.xpose.msra.mxu0 0.0
    %1702 = vmatprep.subr.mxu0 0.0
    %1703 = vmatpush1.xpose.msra.mxu0 0.0
    %1704 = vmatprep.subr.mxu0 0.0
    %1705 = vmatpush1.xpose.msra.mxu0 0.0
    %1706 = vmatprep.subr.mxu0 0.0
    %1707 = vmatpush1.xpose.msra.mxu0 0.0
    %1708 = vmatprep.subr.mxu0 0.0
    %1709 = vmatpush1.xpose.msra.mxu0 0.0
    %1710 = vmatprep.subr.mxu0 0.0
    %1711 = vmatpush1.xpose.msra.mxu0 0.0
    %1712 = vmatprep.subr.mxu0 0.0
    %1713 = vmatpush1.xpose.msra.mxu0 0.0
    %1714 = vmatprep.subr.mxu0 0.0
    %1715 = vmatpush1.xpose.msra.mxu0 0.0
    %1716 = vmatprep.subr.mxu0 0.0
    %1717 = vmatpush1.xpose.msra.mxu0 0.0
    %1718 = vmatprep.subr.mxu0 0.0
    %1719 = vmatpush1.xpose.msra.mxu0 0.0
    %1720 = vmatprep.subr.mxu0 0.0
    %1721 = vmatpush1.xpose.msra.mxu0 0.0
    %1722 = vmatprep.subr.mxu0 0.0
    %1723 = vmatpush1.xpose.msra.mxu0 0.0
    %1724 = vmatprep.subr.mxu0 0.0
    %1725 = vmatpush1.xpose.msra.mxu0 0.0
    %1726 = vmatprep.subr.mxu0 0.0
    %1727 = vmatpush1.xpose.msra.mxu0 0.0
    %1728 = vmatprep.subr.mxu0 0.0
    %1729 = vmatpush1.xpose.msra.mxu0 0.0
    %1730 = vmatprep.mubr.f32.mxu0 0.0
    %1731 = vmatmul.mubr.f32.gmra.mrb[0].mxu0 %v1662
    %v1732 = vpop.f32.mrb[0].mxu0
    %v1733 = vadd.f32 %v272, %v1732
    %v1734 = vpop.f32.mrb[0].mxu0
    %1735 = vdwg.mxu0
    %v1736 = vsel %vm393, %v1733, -inf
    %1737 = vmax.xlane.f32.xlu0 %v1736
    %v1738 = vpop.xlane.xlu0 %1737
    %v1739 = vsub.f32 %v1733, %v1738
    %v1740 = vmul.f32 %v1739, 1.442695
    %v1741 = vpow.pop %v1740
    %v1742 = vsel %vm393, %v1741, 0.0
    %1743 = vadd.xlane.f32.xlu0 %v1742
    %v1744 = vpop.xlane.xlu0 %1743
    %1745 = vrot.lane.b32.xlu0 %v383, 48
    %v1746 = vpop.permute.xlu0 %1745
    %v1749 = vsel %vm393, %v1741, 0
    %1751 = vmatprep.subr.mxu0 0.0
    %1752 = vmatpush1.msra.mxu0 %v1746
    %1753 = vmatprep.subr.mxu0 0.0
    %1754 = vmatpush1.msra.mxu0 0.0
    %1755 = vmatprep.subr.mxu0 0.0
    %1756 = vmatpush1.msra.mxu0 0.0
    %1757 = vmatprep.subr.mxu0 0.0
    %1758 = vmatpush1.msra.mxu0 0.0
    %1759 = vmatprep.subr.mxu0 0.0
    %1760 = vmatpush1.msra.mxu0 0.0
    %1761 = vmatprep.subr.mxu0 0.0
    %1762 = vmatpush1.msra.mxu0 0.0
    %1763 = vmatprep.subr.mxu0 0.0
    %1764 = vmatpush1.msra.mxu0 0.0
    %1765 = vmatprep.subr.mxu0 0.0
    %1766 = vmatpush1.msra.mxu0 0.0
    %1767 = vmatprep.subr.mxu0 0.0
    %1768 = vmatpush1.msra.mxu0 0.0
    %1769 = vmatprep.subr.mxu0 0.0
    %1770 = vmatpush1.msra.mxu0 0.0
    %1771 = vmatprep.subr.mxu0 0.0
    %1772 = vmatpush1.msra.mxu0 0.0
    %1773 = vmatprep.subr.mxu0 0.0
    %1774 = vmatpush1.msra.mxu0 0.0
    %1775 = vmatprep.subr.mxu0 0.0
    %1776 = vmatpush1.msra.mxu0 0.0
    %1777 = vmatprep.subr.mxu0 0.0
    %1778 = vmatpush1.msra.mxu0 0.0
    %1779 = vmatprep.subr.mxu0 0.0
    %1780 = vmatpush1.msra.mxu0 0.0
    %1781 = vmatprep.subr.mxu0 0.0
    %1782 = vmatpush1.msra.mxu0 0.0
    %1783 = vmatprep.subr.mxu0 0.0
    %1784 = vmatpush1.msra.mxu0 0.0
    %1785 = vmatprep.subr.mxu0 0.0
    %1786 = vmatpush1.msra.mxu0 0.0
    %1787 = vmatprep.subr.mxu0 0.0
    %1788 = vmatpush1.msra.mxu0 0.0
    %1789 = vmatprep.subr.mxu0 0.0
    %1790 = vmatpush1.msra.mxu0 0.0
    %1791 = vmatprep.subr.mxu0 0.0
    %1792 = vmatpush1.msra.mxu0 0.0
    %1793 = vmatprep.subr.mxu0 0.0
    %1794 = vmatpush1.msra.mxu0 0.0
    %1795 = vmatprep.subr.mxu0 0.0
    %1796 = vmatpush1.msra.mxu0 0.0
    %1797 = vmatprep.subr.mxu0 0.0
    %1798 = vmatpush1.msra.mxu0 0.0
    %1799 = vmatprep.subr.mxu0 0.0
    %1800 = vmatpush1.msra.mxu0 0.0
    %1801 = vmatprep.subr.mxu0 0.0
    %1802 = vmatpush1.msra.mxu0 0.0
    %1803 = vmatprep.subr.mxu0 0.0
    %1804 = vmatpush1.msra.mxu0 0.0
    %1805 = vmatprep.subr.mxu0 0.0
    %1806 = vmatpush1.msra.mxu0 0.0
    %1807 = vmatprep.subr.mxu0 0.0
    %1808 = vmatpush1.msra.mxu0 0.0
    %1809 = vmatprep.subr.mxu0 0.0
    %1810 = vmatpush1.msra.mxu0 0.0
    %1811 = vmatprep.subr.mxu0 0.0
    %1812 = vmatpush1.msra.mxu0 0.0
    %1813 = vmatprep.subr.mxu0 0.0
    %1814 = vmatpush1.msra.mxu0 0.0
    %1815 = vmatprep.mubr.f32.mxu0 0.0
    %1816 = vmatmul.mubr.f32.gmra.mrb[0].mxu0 %v1749
    %v1817 = vpop.f32.mrb[0].mxu0
    %v1818 = vadd.f32 0.0, %v1817
    %v1819 = vpop.f32.mrb[0].mxu0
    %1820 = vdwg.mxu0
    %v1821 = vrcp.pop %v1744
    %v1822 = vmul.f32 %v1818, %v1821
    %v1823 = vpack.c.bf16 %v1822, %v1822
    %v1825 = vsel %vm393, %v1823, 0
    %1827 = vmatprep.subr.bf16.mxu0 0
    %1828 = vmatpush1.bf16.msra.mxu0 %v985
    %1829 = vmatprep.subr.bf16.mxu0 0
    %1830 = vmatpush1.bf16.msra.mxu0 0
    %1831 = vmatprep.subr.bf16.mxu0 0
    %1832 = vmatpush1.bf16.msra.mxu0 0
    %1833 = vmatprep.subr.bf16.mxu0 0
    %1834 = vmatpush1.bf16.msra.mxu0 0
    %1835 = vmatprep.subr.bf16.mxu0 0
    %1836 = vmatpush1.bf16.msra.mxu0 0
    %1837 = vmatprep.subr.bf16.mxu0 0
    %1838 = vmatpush1.bf16.msra.mxu0 0
    %1839 = vmatprep.subr.bf16.mxu0 0
    %1840 = vmatpush1.bf16.msra.mxu0 0
    %1841 = vmatprep.subr.bf16.mxu0 0
    %1842 = vmatpush1.bf16.msra.mxu0 0
    %1843 = vmatprep.subr.bf16.mxu0 0
    %1844 = vmatpush1.bf16.msra.mxu0 0
    %1845 = vmatprep.subr.bf16.mxu0 0
    %1846 = vmatpush1.bf16.msra.mxu0 0
    %1847 = vmatprep.subr.bf16.mxu0 0
    %1848 = vmatpush1.bf16.msra.mxu0 0
    %1849 = vmatprep.subr.bf16.mxu0 0
    %1850 = vmatpush1.bf16.msra.mxu0 0
    %1851 = vmatprep.subr.bf16.mxu0 0
    %1852 = vmatpush1.bf16.msra.mxu0 0
    %1853 = vmatprep.subr.bf16.mxu0 0
    %1854 = vmatpush1.bf16.msra.mxu0 0
    %1855 = vmatprep.subr.bf16.mxu0 0
    %1856 = vmatpush1.bf16.msra.mxu0 0
    %1857 = vmatprep.subr.bf16.mxu0 0
    %1858 = vmatpush1.bf16.msra.mxu0 0
    %1859 = vmatprep.mubr.bf16.mxu0 0
    %1860 = vmatmul.mubr.bf16.gmra.mrb[0].mxu0 %v1825
    %v1861 = vpop.f32.mrb[0].mxu0
    %v1862 = vadd.f32 0.0, %v1861
    %v1863 = vpop.f32.mrb[0].mxu0
    %v1864 = vpop.f32.mrb[0].mxu0
    %v1865 = vpop.f32.mrb[0].mxu0
    %1866 = vdwg.mxu0
    %v1867 = vadd.f32 %v1653, %v1862
    %1868 = vrot.lane.b32.xlu0 %v383, 104
    %v1869 = vpop.permute.xlu0 %1868
    %1870 = vrot.lane.b32.xlu0 %v383, 72
    %v1871 = vpop.permute.xlu0 %1870
    %v1872 = vsel %vm393, %v1869, 0
    %v1874 = vsel %vm393, %v1871, 0
    %1876 = vmatprep.subr.mxu0 0.0
    %1877 = vmatpush1.xpose.msra.mxu0 %v1874
    %1878 = vmatprep.subr.mxu0 0.0
    %1879 = vmatpush1.xpose.msra.mxu0 0.0
    %1880 = vmatprep.subr.mxu0 0.0
    %1881 = vmatpush1.xpose.msra.mxu0 0.0
    %1882 = vmatprep.subr.mxu0 0.0
    %1883 = vmatpush1.xpose.msra.mxu0 0.0
    %1884 = vmatprep.subr.mxu0 0.0
    %1885 = vmatpush1.xpose.msra.mxu0 0.0
    %1886 = vmatprep.subr.mxu0 0.0
    %1887 = vmatpush1.xpose.msra.mxu0 0.0
    %1888 = vmatprep.subr.mxu0 0.0
    %1889 = vmatpush1.xpose.msra.mxu0 0.0
    %1890 = vmatprep.subr.mxu0 0.0
    %1891 = vmatpush1.xpose.msra.mxu0 0.0
    %1892 = vmatprep.subr.mxu0 0.0
    %1893 = vmatpush1.xpose.msra.mxu0 0.0
    %1894 = vmatprep.subr.mxu0 0.0
    %1895 = vmatpush1.xpose.msra.mxu0 0.0
    %1896 = vmatprep.subr.mxu0 0.0
    %1897 = vmatpush1.xpose.msra.mxu0 0.0
    %1898 = vmatprep.subr.mxu0 0.0
    %1899 = vmatpush1.xpose.msra.mxu0 0.0
    %1900 = vmatprep.subr.mxu0 0.0
    %1901 = vmatpush1.xpose.msra.mxu0 0.0
    %1902 = vmatprep.subr.mxu0 0.0
    %1903 = vmatpush1.xpose.msra.mxu0 0.0
    %1904 = vmatprep.subr.mxu0 0.0
    %1905 = vmatpush1.xpose.msra.mxu0 0.0
    %1906 = vmatprep.subr.mxu0 0.0
    %1907 = vmatpush1.xpose.msra.mxu0 0.0
    %1908 = vmatprep.subr.mxu0 0.0
    %1909 = vmatpush1.xpose.msra.mxu0 0.0
    %1910 = vmatprep.subr.mxu0 0.0
    %1911 = vmatpush1.xpose.msra.mxu0 0.0
    %1912 = vmatprep.subr.mxu0 0.0
    %1913 = vmatpush1.xpose.msra.mxu0 0.0
    %1914 = vmatprep.subr.mxu0 0.0
    %1915 = vmatpush1.xpose.msra.mxu0 0.0
    %1916 = vmatprep.subr.mxu0 0.0
    %1917 = vmatpush1.xpose.msra.mxu0 0.0
    %1918 = vmatprep.subr.mxu0 0.0
    %1919 = vmatpush1.xpose.msra.mxu0 0.0
    %1920 = vmatprep.subr.mxu0 0.0
    %1921 = vmatpush1.xpose.msra.mxu0 0.0
    %1922 = vmatprep.subr.mxu0 0.0
    %1923 = vmatpush1.xpose.msra.mxu0 0.0
    %1924 = vmatprep.subr.mxu0 0.0
    %1925 = vmatpush1.xpose.msra.mxu0 0.0
    %1926 = vmatprep.subr.mxu0 0.0
    %1927 = vmatpush1.xpose.msra.mxu0 0.0
    %1928 = vmatprep.subr.mxu0 0.0
    %1929 = vmatpush1.xpose.msra.mxu0 0.0
    %1930 = vmatprep.subr.mxu0 0.0
    %1931 = vmatpush1.xpose.msra.mxu0 0.0
    %1932 = vmatprep.subr.mxu0 0.0
    %1933 = vmatpush1.xpose.msra.mxu0 0.0
    %1934 = vmatprep.subr.mxu0 0.0
    %1935 = vmatpush1.xpose.msra.mxu0 0.0
    %1936 = vmatprep.subr.mxu0 0.0
    %1937 = vmatpush1.xpose.msra.mxu0 0.0
    %1938 = vmatprep.subr.mxu0 0.0
    %1939 = vmatpush1.xpose.msra.mxu0 0.0
    %1940 = vmatprep.mubr.f32.mxu0 0.0
    %1941 = vmatmul.mubr.f32.gmra.mrb[0].mxu0 %v1872
    %v1942 = vpop.f32.mrb[0].mxu0
    %v1943 = vadd.f32 %v272, %v1942
    %v1944 = vpop.f32.mrb[0].mxu0
    %1945 = vdwg.mxu0
    %v1946 = vsel %vm393, %v1943, -inf
    %1947 = vmax.xlane.f32.xlu0 %v1946
    %v1948 = vpop.xlane.xlu0 %1947
    %v1949 = vsub.f32 %v1943, %v1948
    %v1950 = vmul.f32 %v1949, 1.442695
    %v1951 = vpow.pop %v1950
    %v1952 = vsel %vm393, %v1951, 0.0
    %1953 = vadd.xlane.f32.xlu0 %v1952
    %v1954 = vpop.xlane.xlu0 %1953
    %1955 = vrot.lane.b32.xlu0 %v383, 40
    %v1956 = vpop.permute.xlu0 %1955
    %v1959 = vsel %vm393, %v1951, 0
    %1961 = vmatprep.subr.mxu0 0.0
    %1962 = vmatpush1.msra.mxu0 %v1956
    %1963 = vmatprep.subr.mxu0 0.0
    %1964 = vmatpush1.msra.mxu0 0.0
    %1965 = vmatprep.subr.mxu0 0.0
    %1966 = vmatpush1.msra.mxu0 0.0
    %1967 = vmatprep.subr.mxu0 0.0
    %1968 = vmatpush1.msra.mxu0 0.0
    %1969 = vmatprep.subr.mxu0 0.0
    %1970 = vmatpush1.msra.mxu0 0.0
    %1971 = vmatprep.subr.mxu0 0.0
    %1972 = vmatpush1.msra.mxu0 0.0
    %1973 = vmatprep.subr.mxu0 0.0
    %1974 = vmatpush1.msra.mxu0 0.0
    %1975 = vmatprep.subr.mxu0 0.0
    %1976 = vmatpush1.msra.mxu0 0.0
    %1977 = vmatprep.subr.mxu0 0.0
    %1978 = vmatpush1.msra.mxu0 0.0
    %1979 = vmatprep.subr.mxu0 0.0
    %1980 = vmatpush1.msra.mxu0 0.0
    %1981 = vmatprep.subr.mxu0 0.0
    %1982 = vmatpush1.msra.mxu0 0.0
    %1983 = vmatprep.subr.mxu0 0.0
    %1984 = vmatpush1.msra.mxu0 0.0
    %1985 = vmatprep.subr.mxu0 0.0
    %1986 = vmatpush1.msra.mxu0 0.0
    %1987 = vmatprep.subr.mxu0 0.0
    %1988 = vmatpush1.msra.mxu0 0.0
    %1989 = vmatprep.subr.mxu0 0.0
    %1990 = vmatpush1.msra.mxu0 0.0
    %1991 = vmatprep.subr.mxu0 0.0
    %1992 = vmatpush1.msra.mxu0 0.0
    %1993 = vmatprep.subr.mxu0 0.0
    %1994 = vmatpush1.msra.mxu0 0.0
    %1995 = vmatprep.subr.mxu0 0.0
    %1996 = vmatpush1.msra.mxu0 0.0
    %1997 = vmatprep.subr.mxu0 0.0
    %1998 = vmatpush1.msra.mxu0 0.0
    %1999 = vmatprep.subr.mxu0 0.0
    %2000 = vmatpush1.msra.mxu0 0.0
    %2001 = vmatprep.subr.mxu0 0.0
    %2002 = vmatpush1.msra.mxu0 0.0
    %2003 = vmatprep.subr.mxu0 0.0
    %2004 = vmatpush1.msra.mxu0 0.0
    %2005 = vmatprep.subr.mxu0 0.0
    %2006 = vmatpush1.msra.mxu0 0.0
    %2007 = vmatprep.subr.mxu0 0.0
    %2008 = vmatpush1.msra.mxu0 0.0
    %2009 = vmatprep.subr.mxu0 0.0
    %2010 = vmatpush1.msra.mxu0 0.0
    %2011 = vmatprep.subr.mxu0 0.0
    %2012 = vmatpush1.msra.mxu0 0.0
    %2013 = vmatprep.subr.mxu0 0.0
    %2014 = vmatpush1.msra.mxu0 0.0
    %2015 = vmatprep.subr.mxu0 0.0
    %2016 = vmatpush1.msra.mxu0 0.0
    %2017 = vmatprep.subr.mxu0 0.0
    %2018 = vmatpush1.msra.mxu0 0.0
    %2019 = vmatprep.subr.mxu0 0.0
    %2020 = vmatpush1.msra.mxu0 0.0
    %2021 = vmatprep.subr.mxu0 0.0
    %2022 = vmatpush1.msra.mxu0 0.0
    %2023 = vmatprep.subr.mxu0 0.0
    %2024 = vmatpush1.msra.mxu0 0.0
    %2025 = vmatprep.mubr.f32.mxu0 0.0
    %2026 = vmatmul.mubr.f32.gmra.mrb[0].mxu0 %v1959
    %v2027 = vpop.f32.mrb[0].mxu0
    %v2028 = vadd.f32 0.0, %v2027
    %v2029 = vpop.f32.mrb[0].mxu0
    %2030 = vdwg.mxu0
    %v2031 = vrcp.pop %v1954
    %v2032 = vmul.f32 %v2028, %v2031
    %v2033 = vpack.c.bf16 %v2032, %v2032
    %v2035 = vsel %vm393, %v2033, 0
    %2037 = vmatprep.subr.bf16.mxu0 0
    %2038 = vmatpush1.bf16.msra.mxu0 %v1198
    %2039 = vmatprep.subr.bf16.mxu0 0
    %2040 = vmatpush1.bf16.msra.mxu0 0
    %2041 = vmatprep.subr.bf16.mxu0 0
    %2042 = vmatpush1.bf16.msra.mxu0 0
    %2043 = vmatprep.subr.bf16.mxu0 0
    %2044 = vmatpush1.bf16.msra.mxu0 0
    %2045 = vmatprep.subr.bf16.mxu0 0
    %2046 = vmatpush1.bf16.msra.mxu0 0
    %2047 = vmatprep.subr.bf16.mxu0 0
    %2048 = vmatpush1.bf16.msra.mxu0 0
    %2049 = vmatprep.subr.bf16.mxu0 0
    %2050 = vmatpush1.bf16.msra.mxu0 0
    %2051 = vmatprep.subr.bf16.mxu0 0
    %2052 = vmatpush1.bf16.msra.mxu0 0
    %2053 = vmatprep.subr.bf16.mxu0 0
    %2054 = vmatpush1.bf16.msra.mxu0 0
    %2055 = vmatprep.subr.bf16.mxu0 0
    %2056 = vmatpush1.bf16.msra.mxu0 0
    %2057 = vmatprep.subr.bf16.mxu0 0
    %2058 = vmatpush1.bf16.msra.mxu0 0
    %2059 = vmatprep.subr.bf16.mxu0 0
    %2060 = vmatpush1.bf16.msra.mxu0 0
    %2061 = vmatprep.subr.bf16.mxu0 0
    %2062 = vmatpush1.bf16.msra.mxu0 0
    %2063 = vmatprep.subr.bf16.mxu0 0
    %2064 = vmatpush1.bf16.msra.mxu0 0
    %2065 = vmatprep.subr.bf16.mxu0 0
    %2066 = vmatpush1.bf16.msra.mxu0 0
    %2067 = vmatprep.subr.bf16.mxu0 0
    %2068 = vmatpush1.bf16.msra.mxu0 0
    %2069 = vmatprep.mubr.bf16.mxu0 0
    %2070 = vmatmul.mubr.bf16.gmra.mrb[0].mxu0 %v2035
    %v2071 = vpop.f32.mrb[0].mxu0
    %v2072 = vadd.f32 0.0, %v2071
    %v2073 = vpop.f32.mrb[0].mxu0
    %v2074 = vpop.f32.mrb[0].mxu0
    %v2075 = vpop.f32.mrb[0].mxu0
    %2076 = vdwg.mxu0
    %v2077 = vadd.f32 %v1867, %v2072
    %v2078 = vadd.f32 %v258, %v1240
    %v2079 = vadd.f32 %v263, %v2077
    %v2080 = vld [vmem:[#allocation10] sm:$0x1]
    %v2082 = vlaneseq
    %v2083 = vshrl.u32 %v2082, 7
    %v2084 = vsub.s32 0, %v2083
    %v2085 = vrot.slane %v2080, %v2084
    %v2087 = vadd.f32 %v2078, %v2085
    %v2088 = vadd.f32 %v2079, %v2085
    %v2089 = vld [vmem:[%s9] sm:$0x1]
    %v2090 = vld [vmem:[#allocation11] sm:$0x1]
    %v2091 = vsel %vm184, %v2087, 0.0
    %2092 = vadd.xlane.f32.xlu0 %v2091
    %v2093 = vpop.xlane.xlu0 %2092
    %v2094 = vsel %vm184, %v2088, 0.0
    %2095 = vadd.xlane.f32.xlu0 %v2094
    %v2096 = vpop.xlane.xlu0 %2095
    %v2097 = vmul.f32 %v2093, %v281
    %v2098 = vmul.f32 %v2096, %v281
    %v2099 = vsub.f32 %v2087, %v2097
    %v2100 = vsub.f32 %v2088, %v2098
    %v2101 = vmul.f32 %v2099, %v2099
    %v2102 = vmul.f32 %v2100, %v2100
    %v2103 = vsel %vm184, %v2101, 0.0
    %2104 = vadd.xlane.f32.xlu0 %v2103
    %v2105 = vpop.xlane.xlu0 %2104
    %v2106 = vsel %vm184, %v2102, 0.0
    %2107 = vadd.xlane.f32.xlu0 %v2106
    %v2108 = vpop.xlane.xlu0 %2107
    %v2109 = vmul.f32 %v2105, %v281
    %v2110 = vmul.f32 %v2108, %v281
    %v2111 = vadd.f32 %v2109, 1e-05
    %v2112 = vadd.f32 %v2110, 1e-05
    %v2113 = vrsqrt.pop %v2111
    %v2114 = vrsqrt.pop %v2112
    %v2115 = vmul.f32 %v2099, %v2113
    %v2116 = vmul.f32 %v2100, %v2114
    %v2118 = vlaneseq
    %v2119 = vshrl.u32 %v2118, 7
    %v2120 = vsub.s32 0, %v2119
    %v2121 = vrot.slane %v2089, %v2120
    %v2123 = vmul.f32 %v2115, %v2121
    %v2124 = vmul.f32 %v2116, %v2121
    %v2126 = vlaneseq
    %v2127 = vshrl.u32 %v2126, 7
    %v2128 = vsub.s32 0, %v2127
    %v2129 = vrot.slane %v2090, %v2128
    %v2131 = vadd.f32 %v2123, %v2129
    %v2132 = vadd.f32 %v2124, %v2129
    %v2133 = vpack.c.bf16 %v2132, %v2131
    %v2134 = vld [vmem:[%s11] sm:$0xf]
    %v2135 = vld [vmem:[%s11 + $0x4] sm:$0xf]
    %v2136 = vld [vmem:[%s11 + $0x8] sm:$0xf]
    %v2137 = vld [vmem:[%s11 + $0xc] sm:$0xf]
    %v2138 = vld [vmem:[#allocation13] sm:$0x1]
    %v2140 = vlaneseq
    %v2141 = vshrl.u32 %v2140, 7
    %v2142 = vsub.s32 0, %v2141
    %v2143 = vrot.slane %v2138, %v2142
    %v2149 = vunpack.c.l.b16 %v2134
    %v2150 = vunpack.c.l.b16 %v2135
    %v2151 = vunpack.c.l.b16 %v2136
    %v2152 = vunpack.c.l.b16 %v2137
    %v2153 = vpack.c.b16 %v2150, %v2149
    %v2154 = vpack.c.b16 %v2152, %v2151
    %v2158 = vsel %vm184, %v2133, 0
    %2160 = vmatprep.subr.bf16.mxu0 0
    %2161 = vmatpush1.bf16.msra.mxu0 %v2153
    %2162 = vmatprep.subr.bf16.mxu0 0
    %2163 = vmatpush1.bf16.msra.mxu0 %v2154
    %2164 = vmatprep.subr.bf16.mxu0 0
    %2165 = vmatpush1.bf16.msra.mxu0 0
    %2166 = vmatprep.subr.bf16.mxu0 0
    %2167 = vmatpush1.bf16.msra.mxu0 0
    %2168 = vmatprep.subr.bf16.mxu0 0
    %2169 = vmatpush1.bf16.msra.mxu0 0
    %2170 = vmatprep.subr.bf16.mxu0 0
    %2171 = vmatpush1.bf16.msra.mxu0 0
    %2172 = vmatprep.subr.bf16.mxu0 0
    %2173 = vmatpush1.bf16.msra.mxu0 0
    %2174 = vmatprep.subr.bf16.mxu0 0
    %2175 = vmatpush1.bf16.msra.mxu0 0
    %2176 = vmatprep.subr.bf16.mxu0 0
    %2177 = vmatpush1.bf16.msra.mxu0 0
    %2178 = vmatprep.subr.bf16.mxu0 0
    %2179 = vmatpush1.bf16.msra.mxu0 0
    %2180 = vmatprep.subr.bf16.mxu0 0
    %2181 = vmatpush1.bf16.msra.mxu0 0
    %2182 = vmatprep.subr.bf16.mxu0 0
    %2183 = vmatpush1.bf16.msra.mxu0 0
    %2184 = vmatprep.subr.bf16.mxu0 0
    %2185 = vmatpush1.bf16.msra.mxu0 0
    %2186 = vmatprep.subr.bf16.mxu0 0
    %2187 = vmatpush1.bf16.msra.mxu0 0
    %2188 = vmatprep.subr.bf16.mxu0 0
    %2189 = vmatpush1.bf16.msra.mxu0 0
    %2190 = vmatprep.subr.bf16.mxu0 0
    %2191 = vmatpush1.bf16.msra.mxu0 0
    %2192 = vmatprep.mubr.bf16.mxu0 0
    %2193 = vmatmul.mubr.bf16.gmra.mrb[0].mxu0 %v2158
    %v2194 = vpop.f32.mrb[0].mxu0
    %v2195 = vadd.f32 %v2143, %v2194
    %v2196 = vpop.f32.mrb[0].mxu0
    %v2197 = vpop.f32.mrb[0].mxu0
    %v2198 = vadd.f32 %v2143, %v2197
    %v2199 = vpop.f32.mrb[0].mxu0
    %2200 = vdwg.mxu0
    %v2201 = vmax.f32 %v2195, 0.0
    %v2202 = vmax.f32 %v2198, 0.0
    %v2203 = vpack.c.bf16 %v2202, %v2201
    %v2204 = vld [vmem:[%s13] sm:$0xf]
    %v2205 = vld [vmem:[%s13 + $0x4] sm:$0xf]
    %v2206 = vld [vmem:[%s13 + $0x8] sm:$0xf]
    %v2207 = vld [vmem:[%s13 + $0xc] sm:$0xf]
    %v2208 = vld [vmem:[%s13 + $0x10] sm:$0xf]
    %v2209 = vld [vmem:[%s13 + $0x14] sm:$0xf]
    %v2210 = vld [vmem:[%s13 + $0x18] sm:$0xf]
    %v2211 = vld [vmem:[%s13 + $0x1c] sm:$0xf]
    %v2212 = vld [vmem:[%s14] sm:$0x1]
    %v2214 = vlaneseq
    %v2215 = vshrl.u32 %v2214, 7
    %v2216 = vsub.s32 0, %v2215
    %v2217 = vrot.slane %v2212, %v2216
    %v2227 = vunpack.c.l.b16 %v2204
    %v2228 = vunpack.c.l.b16 %v2205
    %v2229 = vunpack.c.l.b16 %v2206
    %v2230 = vunpack.c.l.b16 %v2207
    %v2231 = vunpack.c.l.b16 %v2208
    %v2232 = vunpack.c.l.b16 %v2209
    %v2233 = vunpack.c.l.b16 %v2210
    %v2234 = vunpack.c.l.b16 %v2211
    %v2235 = vpack.c.b16 %v2228, %v2227
    %v2236 = vpack.c.b16 %v2230, %v2229
    %v2237 = vpack.c.b16 %v2232, %v2231
    %v2238 = vpack.c.b16 %v2234, %v2233
    %vm2243 = vcmask 523264
    %v2245 = vsel %vm2243, %v2203, 0
    %2247 = vmatprep.subr.bf16.mxu0 0
    %2248 = vmatpush1.bf16.msra.mxu0 %v2235
    %2249 = vmatprep.subr.bf16.mxu0 0
    %2250 = vmatpush1.bf16.msra.mxu0 %v2236
    %2251 = vmatprep.subr.bf16.mxu0 0
    %2252 = vmatpush1.bf16.msra.mxu0 %v2237
    %2253 = vmatprep.subr.bf16.mxu0 0
    %2254 = vmatpush1.bf16.msra.mxu0 %v2238
    %2255 = vmatprep.subr.bf16.mxu0 0
    %2256 = vmatpush1.bf16.msra.mxu0 0
    %2257 = vmatprep.subr.bf16.mxu0 0
    %2258 = vmatpush1.bf16.msra.mxu0 0
    %2259 = vmatprep.subr.bf16.mxu0 0
    %2260 = vmatpush1.bf16.msra.mxu0 0
    %2261 = vmatprep.subr.bf16.mxu0 0
    %2262 = vmatpush1.bf16.msra.mxu0 0
    %2263 = vmatprep.subr.bf16.mxu0 0
    %2264 = vmatpush1.bf16.msra.mxu0 0
    %2265 = vmatprep.subr.bf16.mxu0 0
    %2266 = vmatpush1.bf16.msra.mxu0 0
    %2267 = vmatprep.subr.bf16.mxu0 0
    %2268 = vmatpush1.bf16.msra.mxu0 0
    %2269 = vmatprep.subr.bf16.mxu0 0
    %2270 = vmatpush1.bf16.msra.mxu0 0
    %2271 = vmatprep.subr.bf16.mxu0 0
    %2272 = vmatpush1.bf16.msra.mxu0 0
    %2273 = vmatprep.subr.bf16.mxu0 0
    %2274 = vmatpush1.bf16.msra.mxu0 0
    %2275 = vmatprep.subr.bf16.mxu0 0
    %2276 = vmatpush1.bf16.msra.mxu0 0
    %2277 = vmatprep.subr.bf16.mxu0 0
    %2278 = vmatpush1.bf16.msra.mxu0 0
    %2279 = vmatprep.mubr.bf16.mxu0 0
    %2280 = vmatmul.mubr.bf16.gmra.mrb[0].mxu0 %v2245
    %v2281 = vpop.f32.mrb[0].mxu0
    %v2282 = vadd.f32 %v2217, %v2281
    %v2283 = vpop.f32.mrb[0].mxu0
    %v2284 = vpop.f32.mrb[0].mxu0
    %v2285 = vadd.f32 %v2217, %v2284
    %v2286 = vpop.f32.mrb[0].mxu0
    %2287 = vdwg.mxu0
    %v2288 = vadd.f32 %v2087, %v2282
    %v2289 = vadd.f32 %v2088, %v2285
    %s2290 = scalar_lea.vmem [#allocation5], 1
    %v2291 = vld [vmem:[%s2290] sm:$0x1]
    %s2292 = scalar_lea.vmem [#allocation7], 1
    %v2293 = vld [vmem:[%s2292] sm:$0x1]
    %v2294 = vsel %vm184, %v2288, 0.0
    %2295 = vadd.xlane.f32.xlu0 %v2294
    %v2296 = vpop.xlane.xlu0 %2295
    %v2297 = vsel %vm184, %v2289, 0.0
    %2298 = vadd.xlane.f32.xlu0 %v2297
    %v2299 = vpop.xlane.xlu0 %2298
    %v2300 = vmul.f32 %v2296, %v281
    %v2301 = vmul.f32 %v2299, %v281
    %v2302 = vsub.f32 %v2288, %v2300
    %v2303 = vsub.f32 %v2289, %v2301
    %v2304 = vmul.f32 %v2302, %v2302
    %v2305 = vmul.f32 %v2303, %v2303
    %v2306 = vsel %vm184, %v2304, 0.0
    %2307 = vadd.xlane.f32.xlu0 %v2306
    %v2308 = vpop.xlane.xlu0 %2307
    %v2309 = vsel %vm184, %v2305, 0.0
    %2310 = vadd.xlane.f32.xlu0 %v2309
    %v2311 = vpop.xlane.xlu0 %2310
    %v2312 = vmul.f32 %v2308, %v281
    %v2313 = vmul.f32 %v2311, %v281
    %v2314 = vadd.f32 %v2312, 1e-05
    %v2315 = vadd.f32 %v2313, 1e-05
    %v2316 = vrsqrt.pop %v2314
    %v2317 = vrsqrt.pop %v2315
    %v2318 = vmul.f32 %v2302, %v2316
    %v2319 = vmul.f32 %v2303, %v2317
    %v2321 = vlaneseq
    %v2322 = vshrl.u32 %v2321, 7
    %v2323 = vsub.s32 0, %v2322
    %v2324 = vrot.slane %v2291, %v2323
    %v2326 = vmul.f32 %v2318, %v2324
    %v2327 = vmul.f32 %v2319, %v2324
    %v2329 = vlaneseq
    %v2330 = vshrl.u32 %v2329, 7
    %v2331 = vsub.s32 0, %v2330
    %v2332 = vrot.slane %v2293, %v2331
    %v2334 = vadd.f32 %v2326, %v2332
    %v2335 = vadd.f32 %v2327, %v2332
    %v2336 = vpack.c.bf16 %v2335, %v2334
    %s2337 = scalar_lea.vmem %s5, 16
    %v2338 = vld [vmem:[%s2337] sm:$0xf]
    %v2339 = vld [vmem:[%s2337 + $0x4] sm:$0xf]
    %v2340 = vld [vmem:[%s2337 + $0x8] sm:$0xf]
    %v2341 = vld [vmem:[%s2337 + $0xc] sm:$0xf]
    %s2342 = scalar_lea.vmem [#allocation8], 1
    %v2343 = vld [vmem:[%s2342] sm:$0x1]
    %v2345 = vlaneseq
    %v2346 = vshrl.u32 %v2345, 7
    %v2347 = vsub.s32 0, %v2346
    %v2348 = vrot.slane %v2343, %v2347
    %v2354 = vunpack.c.l.b16 %v2338
    %v2355 = vunpack.c.l.b16 %v2339
    %v2356 = vunpack.c.l.b16 %v2340
    %v2357 = vunpack.c.l.b16 %v2341
    %v2358 = vpack.c.b16 %v2355, %v2354
    %v2359 = vpack.c.b16 %v2357, %v2356
    %v2363 = vsel %vm184, %v2336, 0
    %2365 = vmatprep.subr.bf16.mxu0 0
    %2366 = vmatpush1.bf16.msra.mxu0 %v2358
    %2367 = vmatprep.subr.bf16.mxu0 0
    %2368 = vmatpush1.bf16.msra.mxu0 %v2359
    %2369 = vmatprep.subr.bf16.mxu0 0
    %2370 = vmatpush1.bf16.msra.mxu0 0
    %2371 = vmatprep.subr.bf16.mxu0 0
    %2372 = vmatpush1.bf16.msra.mxu0 0
    %2373 = vmatprep.subr.bf16.mxu0 0
    %2374 = vmatpush1.bf16.msra.mxu0 0
    %2375 = vmatprep.subr.bf16.mxu0 0
    %2376 = vmatpush1.bf16.msra.mxu0 0
    %2377 = vmatprep.subr.bf16.mxu0 0
    %2378 = vmatpush1.bf16.msra.mxu0 0
    %2379 = vmatprep.subr.bf16.mxu0 0
    %2380 = vmatpush1.bf16.msra.mxu0 0
    %2381 = vmatprep.subr.bf16.mxu0 0
    %2382 = vmatpush1.bf16.msra.mxu0 0
    %2383 = vmatprep.subr.bf16.mxu0 0
    %2384 = vmatpush1.bf16.msra.mxu0 0
    %2385 = vmatprep.subr.bf16.mxu0 0
    %2386 = vmatpush1.bf16.msra.mxu0 0
    %2387 = vmatprep.subr.bf16.mxu0 0
    %2388 = vmatpush1.bf16.msra.mxu0 0
    %2389 = vmatprep.subr.bf16.mxu0 0
    %2390 = vmatpush1.bf16.msra.mxu0 0
    %2391 = vmatprep.subr.bf16.mxu0 0
    %2392 = vmatpush1.bf16.msra.mxu0 0
    %2393 = vmatprep.subr.bf16.mxu0 0
    %2394 = vmatpush1.bf16.msra.mxu0 0
    %2395 = vmatprep.subr.bf16.mxu0 0
    %2396 = vmatpush1.bf16.msra.mxu0 0
    %2397 = vmatprep.mubr.bf16.mxu0 0
    %2398 = vmatmul.mubr.bf16.gmra.mrb[0].mxu0 %v2363
    %v2399 = vpop.f32.mrb[0].mxu0
    %v2400 = vadd.f32 %v2348, %v2399
    %v2401 = vpop.f32.mrb[0].mxu0
    %v2402 = vpop.f32.mrb[0].mxu0
    %v2403 = vadd.f32 %v2348, %v2402
    %v2404 = vpop.f32.mrb[0].mxu0
    %2405 = vdwg.mxu0
    %s2406 = scalar_lea.vmem %s7, 16
    %v2407 = vld [vmem:[%s2406] sm:$0xf]
    %v2408 = vld [vmem:[%s2406 + $0x4] sm:$0xf]
    %v2409 = vld [vmem:[%s2406 + $0x8] sm:$0xf]
    %v2410 = vld [vmem:[%s2406 + $0xc] sm:$0xf]
    %2412 = vrot.lane.b32.xlu0 %v2400, 96
    %v2413 = vpop.permute.xlu0 %2412
    %v2414 = vsel %vm393, %v2400, 0
    %v2416 = vsel %vm393, %v2413, 0
    %2418 = vmatprep.subr.mxu0 0.0
    %2419 = vmatpush1.xpose.msra.mxu0 %v2416
    %2420 = vmatprep.subr.mxu0 0.0
    %2421 = vmatpush1.xpose.msra.mxu0 0.0
    %2422 = vmatprep.subr.mxu0 0.0
    %2423 = vmatpush1.xpose.msra.mxu0 0.0
    %2424 = vmatprep.subr.mxu0 0.0
    %2425 = vmatpush1.xpose.msra.mxu0 0.0
    %2426 = vmatprep.subr.mxu0 0.0
    %2427 = vmatpush1.xpose.msra.mxu0 0.0
    %2428 = vmatprep.subr.mxu0 0.0
    %2429 = vmatpush1.xpose.msra.mxu0 0.0
    %2430 = vmatprep.subr.mxu0 0.0
    %2431 = vmatpush1.xpose.msra.mxu0 0.0
    %2432 = vmatprep.subr.mxu0 0.0
    %2433 = vmatpush1.xpose.msra.mxu0 0.0
    %2434 = vmatprep.subr.mxu0 0.0
    %2435 = vmatpush1.xpose.msra.mxu0 0.0
    %2436 = vmatprep.subr.mxu0 0.0
    %2437 = vmatpush1.xpose.msra.mxu0 0.0
    %2438 = vmatprep.subr.mxu0 0.0
    %2439 = vmatpush1.xpose.msra.mxu0 0.0
    %2440 = vmatprep.subr.mxu0 0.0
    %2441 = vmatpush1.xpose.msra.mxu0 0.0
    %2442 = vmatprep.subr.mxu0 0.0
    %2443 = vmatpush1.xpose.msra.mxu0 0.0
    %2444 = vmatprep.subr.mxu0 0.0
    %2445 = vmatpush1.xpose.msra.mxu0 0.0
    %2446 = vmatprep.subr.mxu0 0.0
    %2447 = vmatpush1.xpose.msra.mxu0 0.0
    %2448 = vmatprep.subr.mxu0 0.0
    %2449 = vmatpush1.xpose.msra.mxu0 0.0
    %2450 = vmatprep.subr.mxu0 0.0
    %2451 = vmatpush1.xpose.msra.mxu0 0.0
    %2452 = vmatprep.subr.mxu0 0.0
    %2453 = vmatpush1.xpose.msra.mxu0 0.0
    %2454 = vmatprep.subr.mxu0 0.0
    %2455 = vmatpush1.xpose.msra.mxu0 0.0
    %2456 = vmatprep.subr.mxu0 0.0
    %2457 = vmatpush1.xpose.msra.mxu0 0.0
    %2458 = vmatprep.subr.mxu0 0.0
    %2459 = vmatpush1.xpose.msra.mxu0 0.0
    %2460 = vmatprep.subr.mxu0 0.0
    %2461 = vmatpush1.xpose.msra.mxu0 0.0
    %2462 = vmatprep.subr.mxu0 0.0
    %2463 = vmatpush1.xpose.msra.mxu0 0.0
    %2464 = vmatprep.subr.mxu0 0.0
    %2465 = vmatpush1.xpose.msra.mxu0 0.0
    %2466 = vmatprep.subr.mxu0 0.0
    %2467 = vmatpush1.xpose.msra.mxu0 0.0
    %2468 = vmatprep.subr.mxu0 0.0
    %2469 = vmatpush1.xpose.msra.mxu0 0.0
    %2470 = vmatprep.subr.mxu0 0.0
    %2471 = vmatpush1.xpose.msra.mxu0 0.0
    %2472 = vmatprep.subr.mxu0 0.0
    %2473 = vmatpush1.xpose.msra.mxu0 0.0
    %2474 = vmatprep.subr.mxu0 0.0
    %2475 = vmatpush1.xpose.msra.mxu0 0.0
    %2476 = vmatprep.subr.mxu0 0.0
    %2477 = vmatpush1.xpose.msra.mxu0 0.0
    %2478 = vmatprep.subr.mxu0 0.0
    %2479 = vmatpush1.xpose.msra.mxu0 0.0
    %2480 = vmatprep.subr.mxu0 0.0
    %2481 = vmatpush1.xpose.msra.mxu0 0.0
    %2482 = vmatprep.mubr.f32.mxu0 0.0
    %2483 = vmatmul.mubr.f32.gmra.mrb[0].mxu0 %v2414
    %v2484 = vpop.f32.mrb[0].mxu0
    %v2485 = vadd.f32 %v272, %v2484
    %v2486 = vpop.f32.mrb[0].mxu0
    %2487 = vdwg.mxu0
    %v2488 = vsel %vm393, %v2485, -inf
    %2489 = vmax.xlane.f32.xlu0 %v2488
    %v2490 = vpop.xlane.xlu0 %2489
    %v2491 = vsub.f32 %v2485, %v2490
    %v2492 = vmul.f32 %v2491, 1.442695
    %v2493 = vpow.pop %v2492
    %v2494 = vsel %vm393, %v2493, 0.0
    %2495 = vadd.xlane.f32.xlu0 %v2494
    %v2496 = vpop.xlane.xlu0 %2495
    %2497 = vrot.lane.b32.xlu0 %v2400, 64
    %v2498 = vpop.permute.xlu0 %2497
    %v2501 = vsel %vm393, %v2493, 0
    %2503 = vmatprep.subr.mxu0 0.0
    %2504 = vmatpush1.msra.mxu0 %v2498
    %2505 = vmatprep.subr.mxu0 0.0
    %2506 = vmatpush1.msra.mxu0 0.0
    %2507 = vmatprep.subr.mxu0 0.0
    %2508 = vmatpush1.msra.mxu0 0.0
    %2509 = vmatprep.subr.mxu0 0.0
    %2510 = vmatpush1.msra.mxu0 0.0
    %2511 = vmatprep.subr.mxu0 0.0
    %2512 = vmatpush1.msra.mxu0 0.0
    %2513 = vmatprep.subr.mxu0 0.0
    %2514 = vmatpush1.msra.mxu0 0.0
    %2515 = vmatprep.subr.mxu0 0.0
    %2516 = vmatpush1.msra.mxu0 0.0
    %2517 = vmatprep.subr.mxu0 0.0
    %2518 = vmatpush1.msra.mxu0 0.0
    %2519 = vmatprep.subr.mxu0 0.0
    %2520 = vmatpush1.msra.mxu0 0.0
    %2521 = vmatprep.subr.mxu0 0.0
    %2522 = vmatpush1.msra.mxu0 0.0
    %2523 = vmatprep.subr.mxu0 0.0
    %2524 = vmatpush1.msra.mxu0 0.0
    %2525 = vmatprep.subr.mxu0 0.0
    %2526 = vmatpush1.msra.mxu0 0.0
    %2527 = vmatprep.subr.mxu0 0.0
    %2528 = vmatpush1.msra.mxu0 0.0
    %2529 = vmatprep.subr.mxu0 0.0
    %2530 = vmatpush1.msra.mxu0 0.0
    %2531 = vmatprep.subr.mxu0 0.0
    %2532 = vmatpush1.msra.mxu0 0.0
    %2533 = vmatprep.subr.mxu0 0.0
    %2534 = vmatpush1.msra.mxu0 0.0
    %2535 = vmatprep.subr.mxu0 0.0
    %2536 = vmatpush1.msra.mxu0 0.0
    %2537 = vmatprep.subr.mxu0 0.0
    %2538 = vmatpush1.msra.mxu0 0.0
    %2539 = vmatprep.subr.mxu0 0.0
    %2540 = vmatpush1.msra.mxu0 0.0
    %2541 = vmatprep.subr.mxu0 0.0
    %2542 = vmatpush1.msra.mxu0 0.0
    %2543 = vmatprep.subr.mxu0 0.0
    %2544 = vmatpush1.msra.mxu0 0.0
    %2545 = vmatprep.subr.mxu0 0.0
    %2546 = vmatpush1.msra.mxu0 0.0
    %2547 = vmatprep.subr.mxu0 0.0
    %2548 = vmatpush1.msra.mxu0 0.0
    %2549 = vmatprep.subr.mxu0 0.0
    %2550 = vmatpush1.msra.mxu0 0.0
    %2551 = vmatprep.subr.mxu0 0.0
    %2552 = vmatpush1.msra.mxu0 0.0
    %2553 = vmatprep.subr.mxu0 0.0
    %2554 = vmatpush1.msra.mxu0 0.0
    %2555 = vmatprep.subr.mxu0 0.0
    %2556 = vmatpush1.msra.mxu0 0.0
    %2557 = vmatprep.subr.mxu0 0.0
    %2558 = vmatpush1.msra.mxu0 0.0
    %2559 = vmatprep.subr.mxu0 0.0
    %2560 = vmatpush1.msra.mxu0 0.0
    %2561 = vmatprep.subr.mxu0 0.0
    %2562 = vmatpush1.msra.mxu0 0.0
    %2563 = vmatprep.subr.mxu0 0.0
    %2564 = vmatpush1.msra.mxu0 0.0
    %2565 = vmatprep.subr.mxu0 0.0
    %2566 = vmatpush1.msra.mxu0 0.0
    %2567 = vmatprep.mubr.f32.mxu0 0.0
    %2568 = vmatmul.mubr.f32.gmra.mrb[0].mxu0 %v2501
    %v2569 = vpop.f32.mrb[0].mxu0
    %v2570 = vadd.f32 0.0, %v2569
    %v2571 = vpop.f32.mrb[0].mxu0
    %2572 = vdwg.mxu0
    %v2573 = vrcp.pop %v2496
    %v2574 = vmul.f32 %v2570, %v2573
    %v2575 = vpack.c.bf16 %v2574, %v2574
    %2576 = vrot.lane.b32.xlu0 %v2400, 120
    %v2577 = vpop.permute.xlu0 %2576
    %2578 = vrot.lane.b32.xlu0 %v2400, 88
    %v2579 = vpop.permute.xlu0 %2578
    %v2580 = vsel %vm393, %v2577, 0
    %v2582 = vsel %vm393, %v2579, 0
    %2584 = vmatprep.subr.mxu0 0.0
    %2585 = vmatpush1.xpose.msra.mxu0 %v2582
    %2586 = vmatprep.subr.mxu0 0.0
    %2587 = vmatpush1.xpose.msra.mxu0 0.0
    %2588 = vmatprep.subr.mxu0 0.0
    %2589 = vmatpush1.xpose.msra.mxu0 0.0
    %2590 = vmatprep.subr.mxu0 0.0
    %2591 = vmatpush1.xpose.msra.mxu0 0.0
    %2592 = vmatprep.subr.mxu0 0.0
    %2593 = vmatpush1.xpose.msra.mxu0 0.0
    %2594 = vmatprep.subr.mxu0 0.0
    %2595 = vmatpush1.xpose.msra.mxu0 0.0
    %2596 = vmatprep.subr.mxu0 0.0
    %2597 = vmatpush1.xpose.msra.mxu0 0.0
    %2598 = vmatprep.subr.mxu0 0.0
    %2599 = vmatpush1.xpose.msra.mxu0 0.0
    %2600 = vmatprep.subr.mxu0 0.0
    %2601 = vmatpush1.xpose.msra.mxu0 0.0
    %2602 = vmatprep.subr.mxu0 0.0
    %2603 = vmatpush1.xpose.msra.mxu0 0.0
    %2604 = vmatprep.subr.mxu0 0.0
    %2605 = vmatpush1.xpose.msra.mxu0 0.0
    %2606 = vmatprep.subr.mxu0 0.0
    %2607 = vmatpush1.xpose.msra.mxu0 0.0
    %2608 = vmatprep.subr.mxu0 0.0
    %2609 = vmatpush1.xpose.msra.mxu0 0.0
    %2610 = vmatprep.subr.mxu0 0.0
    %2611 = vmatpush1.xpose.msra.mxu0 0.0
    %2612 = vmatprep.subr.mxu0 0.0
    %2613 = vmatpush1.xpose.msra.mxu0 0.0
    %2614 = vmatprep.subr.mxu0 0.0
    %2615 = vmatpush1.xpose.msra.mxu0 0.0
    %2616 = vmatprep.subr.mxu0 0.0
    %2617 = vmatpush1.xpose.msra.mxu0 0.0
    %2618 = vmatprep.subr.mxu0 0.0
    %2619 = vmatpush1.xpose.msra.mxu0 0.0
    %2620 = vmatprep.subr.mxu0 0.0
    %2621 = vmatpush1.xpose.msra.mxu0 0.0
    %2622 = vmatprep.subr.mxu0 0.0
    %2623 = vmatpush1.xpose.msra.mxu0 0.0
    %2624 = vmatprep.subr.mxu0 0.0
    %2625 = vmatpush1.xpose.msra.mxu0 0.0
    %2626 = vmatprep.subr.mxu0 0.0
    %2627 = vmatpush1.xpose.msra.mxu0 0.0
    %2628 = vmatprep.subr.mxu0 0.0
    %2629 = vmatpush1.xpose.msra.mxu0 0.0
    %2630 = vmatprep.subr.mxu0 0.0
    %2631 = vmatpush1.xpose.msra.mxu0 0.0
    %2632 = vmatprep.subr.mxu0 0.0
    %2633 = vmatpush1.xpose.msra.mxu0 0.0
    %2634 = vmatprep.subr.mxu0 0.0
    %2635 = vmatpush1.xpose.msra.mxu0 0.0
    %2636 = vmatprep.subr.mxu0 0.0
    %2637 = vmatpush1.xpose.msra.mxu0 0.0
    %2638 = vmatprep.subr.mxu0 0.0
    %2639 = vmatpush1.xpose.msra.mxu0 0.0
    %2640 = vmatprep.subr.mxu0 0.0
    %2641 = vmatpush1.xpose.msra.mxu0 0.0
    %2642 = vmatprep.subr.mxu0 0.0
    %2643 = vmatpush1.xpose.msra.mxu0 0.0
    %2644 = vmatprep.subr.mxu0 0.0
    %2645 = vmatpush1.xpose.msra.mxu0 0.0
    %2646 = vmatprep.subr.mxu0 0.0
    %2647 = vmatpush1.xpose.msra.mxu0 0.0
    %2648 = vmatprep.mubr.f32.mxu0 0.0
    %2649 = vmatmul.mubr.f32.gmra.mrb[0].mxu0 %v2580
    %v2650 = vpop.f32.mrb[0].mxu0
    %v2651 = vadd.f32 %v272, %v2650
    %v2652 = vpop.f32.mrb[0].mxu0
    %2653 = vdwg.mxu0
    %v2654 = vsel %vm393, %v2651, -inf
    %2655 = vmax.xlane.f32.xlu0 %v2654
    %v2656 = vpop.xlane.xlu0 %2655
    %v2657 = vsub.f32 %v2651, %v2656
    %v2658 = vmul.f32 %v2657, 1.442695
    %v2659 = vpow.pop %v2658
    %v2660 = vsel %vm393, %v2659, 0.0
    %2661 = vadd.xlane.f32.xlu0 %v2660
    %v2662 = vpop.xlane.xlu0 %2661
    %2663 = vrot.lane.b32.xlu0 %v2400, 56
    %v2664 = vpop.permute.xlu0 %2663
    %v2667 = vsel %vm393, %v2659, 0
    %2669 = vmatprep.subr.mxu0 0.0
    %2670 = vmatpush1.msra.mxu0 %v2664
    %2671 = vmatprep.subr.mxu0 0.0
    %2672 = vmatpush1.msra.mxu0 0.0
    %2673 = vmatprep.subr.mxu0 0.0
    %2674 = vmatpush1.msra.mxu0 0.0
    %2675 = vmatprep.subr.mxu0 0.0
    %2676 = vmatpush1.msra.mxu0 0.0
    %2677 = vmatprep.subr.mxu0 0.0
    %2678 = vmatpush1.msra.mxu0 0.0
    %2679 = vmatprep.subr.mxu0 0.0
    %2680 = vmatpush1.msra.mxu0 0.0
    %2681 = vmatprep.subr.mxu0 0.0
    %2682 = vmatpush1.msra.mxu0 0.0
    %2683 = vmatprep.subr.mxu0 0.0
    %2684 = vmatpush1.msra.mxu0 0.0
    %2685 = vmatprep.subr.mxu0 0.0
    %2686 = vmatpush1.msra.mxu0 0.0
    %2687 = vmatprep.subr.mxu0 0.0
    %2688 = vmatpush1.msra.mxu0 0.0
    %2689 = vmatprep.subr.mxu0 0.0
    %2690 = vmatpush1.msra.mxu0 0.0
    %2691 = vmatprep.subr.mxu0 0.0
    %2692 = vmatpush1.msra.mxu0 0.0
    %2693 = vmatprep.subr.mxu0 0.0
    %2694 = vmatpush1.msra.mxu0 0.0
    %2695 = vmatprep.subr.mxu0 0.0
    %2696 = vmatpush1.msra.mxu0 0.0
    %2697 = vmatprep.subr.mxu0 0.0
    %2698 = vmatpush1.msra.mxu0 0.0
    %2699 = vmatprep.subr.mxu0 0.0
    %2700 = vmatpush1.msra.mxu0 0.0
    %2701 = vmatprep.subr.mxu0 0.0
    %2702 = vmatpush1.msra.mxu0 0.0
    %2703 = vmatprep.subr.mxu0 0.0
    %2704 = vmatpush1.msra.mxu0 0.0
    %2705 = vmatprep.subr.mxu0 0.0
    %2706 = vmatpush1.msra.mxu0 0.0
    %2707 = vmatprep.subr.mxu0 0.0
    %2708 = vmatpush1.msra.mxu0 0.0
    %2709 = vmatprep.subr.mxu0 0.0
    %2710 = vmatpush1.msra.mxu0 0.0
    %2711 = vmatprep.subr.mxu0 0.0
    %2712 = vmatpush1.msra.mxu0 0.0
    %2713 = vmatprep.subr.mxu0 0.0
    %2714 = vmatpush1.msra.mxu0 0.0
    %2715 = vmatprep.subr.mxu0 0.0
    %2716 = vmatpush1.msra.mxu0 0.0
    %2717 = vmatprep.subr.mxu0 0.0
    %2718 = vmatpush1.msra.mxu0 0.0
    %2719 = vmatprep.subr.mxu0 0.0
    %2720 = vmatpush1.msra.mxu0 0.0
    %2721 = vmatprep.subr.mxu0 0.0
    %2722 = vmatpush1.msra.mxu0 0.0
    %2723 = vmatprep.subr.mxu0 0.0
    %2724 = vmatpush1.msra.mxu0 0.0
    %2725 = vmatprep.subr.mxu0 0.0
    %2726 = vmatpush1.msra.mxu0 0.0
    %2727 = vmatprep.subr.mxu0 0.0
    %2728 = vmatpush1.msra.mxu0 0.0
    %2729 = vmatprep.subr.mxu0 0.0
    %2730 = vmatpush1.msra.mxu0 0.0
    %2731 = vmatprep.subr.mxu0 0.0
    %2732 = vmatpush1.msra.mxu0 0.0
    %2733 = vmatprep.mubr.f32.mxu0 0.0
    %2734 = vmatmul.mubr.f32.gmra.mrb[0].mxu0 %v2667
    %v2735 = vpop.f32.mrb[0].mxu0
    %v2736 = vadd.f32 0.0, %v2735
    %v2737 = vpop.f32.mrb[0].mxu0
    %2738 = vdwg.mxu0
    %v2739 = vrcp.pop %v2662
    %v2740 = vmul.f32 %v2736, %v2739
    %v2741 = vpack.c.bf16 %v2740, %v2740
    %v2743 = vsel %vm393, %v2741, 0
    %v2746 = vsel %vm725, %v2408, 0
    %2748 = vmatprep.subr.bf16.mxu0 0
    %2749 = vmatpush1.bf16.msra.mxu0 %v2746
    %2750 = vmatprep.subr.bf16.mxu0 0
    %2751 = vmatpush1.bf16.msra.mxu0 0
    %2752 = vmatprep.subr.bf16.mxu0 0
    %2753 = vmatpush1.bf16.msra.mxu0 0
    %2754 = vmatprep.subr.bf16.mxu0 0
    %2755 = vmatpush1.bf16.msra.mxu0 0
    %2756 = vmatprep.subr.bf16.mxu0 0
    %2757 = vmatpush1.bf16.msra.mxu0 0
    %2758 = vmatprep.subr.bf16.mxu0 0
    %2759 = vmatpush1.bf16.msra.mxu0 0
    %2760 = vmatprep.subr.bf16.mxu0 0
    %2761 = vmatpush1.bf16.msra.mxu0 0
    %2762 = vmatprep.subr.bf16.mxu0 0
    %2763 = vmatpush1.bf16.msra.mxu0 0
    %2764 = vmatprep.subr.bf16.mxu0 0
    %2765 = vmatpush1.bf16.msra.mxu0 0
    %2766 = vmatprep.subr.bf16.mxu0 0
    %2767 = vmatpush1.bf16.msra.mxu0 0
    %2768 = vmatprep.subr.bf16.mxu0 0
    %2769 = vmatpush1.bf16.msra.mxu0 0
    %2770 = vmatprep.subr.bf16.mxu0 0
    %2771 = vmatpush1.bf16.msra.mxu0 0
    %2772 = vmatprep.subr.bf16.mxu0 0
    %2773 = vmatpush1.bf16.msra.mxu0 0
    %2774 = vmatprep.subr.bf16.mxu0 0
    %2775 = vmatpush1.bf16.msra.mxu0 0
    %2776 = vmatprep.subr.bf16.mxu0 0
    %2777 = vmatpush1.bf16.msra.mxu0 0
    %2778 = vmatprep.subr.bf16.mxu0 0
    %2779 = vmatpush1.bf16.msra.mxu0 0
    %2780 = vmatprep.mubr.bf16.mxu0 0
    %2781 = vmatmul.mubr.bf16.gmra.mrb[0].mxu0 %v2743
    %v2782 = vpop.f32.mrb[0].mxu0
    %v2783 = vadd.f32 0.0, %v2782
    %v2784 = vpop.f32.mrb[0].mxu0
    %v2785 = vpop.f32.mrb[0].mxu0
    %v2786 = vpop.f32.mrb[0].mxu0
    %2787 = vdwg.mxu0
    %v2789 = vsel %vm393, %v2575, 0
    %v2792 = vsel %vm725, %v2407, 0
    %2794 = vmatprep.subr.bf16.mxu0 0
    %2795 = vmatpush1.bf16.msra.mxu0 %v2792
    %2796 = vmatprep.subr.bf16.mxu0 0
    %2797 = vmatpush1.bf16.msra.mxu0 0
    %2798 = vmatprep.subr.bf16.mxu0 0
    %2799 = vmatpush1.bf16.msra.mxu0 0
    %2800 = vmatprep.subr.bf16.mxu0 0
    %2801 = vmatpush1.bf16.msra.mxu0 0
    %2802 = vmatprep.subr.bf16.mxu0 0
    %2803 = vmatpush1.bf16.msra.mxu0 0
    %2804 = vmatprep.subr.bf16.mxu0 0
    %2805 = vmatpush1.bf16.msra.mxu0 0
    %2806 = vmatprep.subr.bf16.mxu0 0
    %2807 = vmatpush1.bf16.msra.mxu0 0
    %2808 = vmatprep.subr.bf16.mxu0 0
    %2809 = vmatpush1.bf16.msra.mxu0 0
    %2810 = vmatprep.subr.bf16.mxu0 0
    %2811 = vmatpush1.bf16.msra.mxu0 0
    %2812 = vmatprep.subr.bf16.mxu0 0
    %2813 = vmatpush1.bf16.msra.mxu0 0
    %2814 = vmatprep.subr.bf16.mxu0 0
    %2815 = vmatpush1.bf16.msra.mxu0 0
    %2816 = vmatprep.subr.bf16.mxu0 0
    %2817 = vmatpush1.bf16.msra.mxu0 0
    %2818 = vmatprep.subr.bf16.mxu0 0
    %2819 = vmatpush1.bf16.msra.mxu0 0
    %2820 = vmatprep.subr.bf16.mxu0 0
    %2821 = vmatpush1.bf16.msra.mxu0 0
    %2822 = vmatprep.subr.bf16.mxu0 0
    %2823 = vmatpush1.bf16.msra.mxu0 0
    %2824 = vmatprep.subr.bf16.mxu0 0
    %2825 = vmatpush1.bf16.msra.mxu0 0
    %2826 = vmatprep.mubr.bf16.mxu0 0
    %2827 = vmatmul.mubr.bf16.gmra.mrb[0].mxu0 %v2789
    %v2828 = vpop.f32.mrb[0].mxu0
    %v2829 = vadd.f32 %v2783, %v2828
    %v2830 = vpop.f32.mrb[0].mxu0
    %v2831 = vpop.f32.mrb[0].mxu0
    %v2832 = vpop.f32.mrb[0].mxu0
    %2833 = vdwg.mxu0
    %2834 = vrot.lane.b32.xlu0 %v2400, 112
    %v2835 = vpop.permute.xlu0 %2834
    %2836 = vrot.lane.b32.xlu0 %v2400, 80
    %v2837 = vpop.permute.xlu0 %2836
    %v2838 = vsel %vm393, %v2835, 0
    %v2840 = vsel %vm393, %v2837, 0
    %2842 = vmatprep.subr.mxu0 0.0
    %2843 = vmatpush1.xpose.msra.mxu0 %v2840
    %2844 = vmatprep.subr.mxu0 0.0
    %2845 = vmatpush1.xpose.msra.mxu0 0.0
    %2846 = vmatprep.subr.mxu0 0.0
    %2847 = vmatpush1.xpose.msra.mxu0 0.0
    %2848 = vmatprep.subr.mxu0 0.0
    %2849 = vmatpush1.xpose.msra.mxu0 0.0
    %2850 = vmatprep.subr.mxu0 0.0
    %2851 = vmatpush1.xpose.msra.mxu0 0.0
    %2852 = vmatprep.subr.mxu0 0.0
    %2853 = vmatpush1.xpose.msra.mxu0 0.0
    %2854 = vmatprep.subr.mxu0 0.0
    %2855 = vmatpush1.xpose.msra.mxu0 0.0
    %2856 = vmatprep.subr.mxu0 0.0
    %2857 = vmatpush1.xpose.msra.mxu0 0.0
    %2858 = vmatprep.subr.mxu0 0.0
    %2859 = vmatpush1.xpose.msra.mxu0 0.0
    %2860 = vmatprep.subr.mxu0 0.0
    %2861 = vmatpush1.xpose.msra.mxu0 0.0
    %2862 = vmatprep.subr.mxu0 0.0
    %2863 = vmatpush1.xpose.msra.mxu0 0.0
    %2864 = vmatprep.subr.mxu0 0.0
    %2865 = vmatpush1.xpose.msra.mxu0 0.0
    %2866 = vmatprep.subr.mxu0 0.0
    %2867 = vmatpush1.xpose.msra.mxu0 0.0
    %2868 = vmatprep.subr.mxu0 0.0
    %2869 = vmatpush1.xpose.msra.mxu0 0.0
    %2870 = vmatprep.subr.mxu0 0.0
    %2871 = vmatpush1.xpose.msra.mxu0 0.0
    %2872 = vmatprep.subr.mxu0 0.0
    %2873 = vmatpush1.xpose.msra.mxu0 0.0
    %2874 = vmatprep.subr.mxu0 0.0
    %2875 = vmatpush1.xpose.msra.mxu0 0.0
    %2876 = vmatprep.subr.mxu0 0.0
    %2877 = vmatpush1.xpose.msra.mxu0 0.0
    %2878 = vmatprep.subr.mxu0 0.0
    %2879 = vmatpush1.xpose.msra.mxu0 0.0
    %2880 = vmatprep.subr.mxu0 0.0
    %2881 = vmatpush1.xpose.msra.mxu0 0.0
    %2882 = vmatprep.subr.mxu0 0.0
    %2883 = vmatpush1.xpose.msra.mxu0 0.0
    %2884 = vmatprep.subr.mxu0 0.0
    %2885 = vmatpush1.xpose.msra.mxu0 0.0
    %2886 = vmatprep.subr.mxu0 0.0
    %2887 = vmatpush1.xpose.msra.mxu0 0.0
    %2888 = vmatprep.subr.mxu0 0.0
    %2889 = vmatpush1.xpose.msra.mxu0 0.0
    %2890 = vmatprep.subr.mxu0 0.0
    %2891 = vmatpush1.xpose.msra.mxu0 0.0
    %2892 = vmatprep.subr.mxu0 0.0
    %2893 = vmatpush1.xpose.msra.mxu0 0.0
    %2894 = vmatprep.subr.mxu0 0.0
    %2895 = vmatpush1.xpose.msra.mxu0 0.0
    %2896 = vmatprep.subr.mxu0 0.0
    %2897 = vmatpush1.xpose.msra.mxu0 0.0
    %2898 = vmatprep.subr.mxu0 0.0
    %2899 = vmatpush1.xpose.msra.mxu0 0.0
    %2900 = vmatprep.subr.mxu0 0.0
    %2901 = vmatpush1.xpose.msra.mxu0 0.0
    %2902 = vmatprep.subr.mxu0 0.0
    %2903 = vmatpush1.xpose.msra.mxu0 0.0
    %2904 = vmatprep.subr.mxu0 0.0
    %2905 = vmatpush1.xpose.msra.mxu0 0.0
    %2906 = vmatprep.mubr.f32.mxu0 0.0
    %2907 = vmatmul.mubr.f32.gmra.mrb[0].mxu0 %v2838
    %v2908 = vpop.f32.mrb[0].mxu0
    %v2909 = vadd.f32 %v272, %v2908
    %v2910 = vpop.f32.mrb[0].mxu0
    %2911 = vdwg.mxu0
    %v2912 = vsel %vm393, %v2909, -inf
    %2913 = vmax.xlane.f32.xlu0 %v2912
    %v2914 = vpop.xlane.xlu0 %2913
    %v2915 = vsub.f32 %v2909, %v2914
    %v2916 = vmul.f32 %v2915, 1.442695
    %v2917 = vpow.pop %v2916
    %v2918 = vsel %vm393, %v2917, 0.0
    %2919 = vadd.xlane.f32.xlu0 %v2918
    %v2920 = vpop.xlane.xlu0 %2919
    %2921 = vrot.lane.b32.xlu0 %v2400, 48
    %v2922 = vpop.permute.xlu0 %2921
    %v2925 = vsel %vm393, %v2917, 0
    %2927 = vmatprep.subr.mxu0 0.0
    %2928 = vmatpush1.msra.mxu0 %v2922
    %2929 = vmatprep.subr.mxu0 0.0
    %2930 = vmatpush1.msra.mxu0 0.0
    %2931 = vmatprep.subr.mxu0 0.0
    %2932 = vmatpush1.msra.mxu0 0.0
    %2933 = vmatprep.subr.mxu0 0.0
    %2934 = vmatpush1.msra.mxu0 0.0
    %2935 = vmatprep.subr.mxu0 0.0
    %2936 = vmatpush1.msra.mxu0 0.0
    %2937 = vmatprep.subr.mxu0 0.0
    %2938 = vmatpush1.msra.mxu0 0.0
    %2939 = vmatprep.subr.mxu0 0.0
    %2940 = vmatpush1.msra.mxu0 0.0
    %2941 = vmatprep.subr.mxu0 0.0
    %2942 = vmatpush1.msra.mxu0 0.0
    %2943 = vmatprep.subr.mxu0 0.0
    %2944 = vmatpush1.msra.mxu0 0.0
    %2945 = vmatprep.subr.mxu0 0.0
    %2946 = vmatpush1.msra.mxu0 0.0
    %2947 = vmatprep.subr.mxu0 0.0
    %2948 = vmatpush1.msra.mxu0 0.0
    %2949 = vmatprep.subr.mxu0 0.0
    %2950 = vmatpush1.msra.mxu0 0.0
    %2951 = vmatprep.subr.mxu0 0.0
    %2952 = vmatpush1.msra.mxu0 0.0
    %2953 = vmatprep.subr.mxu0 0.0
    %2954 = vmatpush1.msra.mxu0 0.0
    %2955 = vmatprep.subr.mxu0 0.0
    %2956 = vmatpush1.msra.mxu0 0.0
    %2957 = vmatprep.subr.mxu0 0.0
    %2958 = vmatpush1.msra.mxu0 0.0
    %2959 = vmatprep.subr.mxu0 0.0
    %2960 = vmatpush1.msra.mxu0 0.0
    %2961 = vmatprep.subr.mxu0 0.0
    %2962 = vmatpush1.msra.mxu0 0.0
    %2963 = vmatprep.subr.mxu0 0.0
    %2964 = vmatpush1.msra.mxu0 0.0
    %2965 = vmatprep.subr.mxu0 0.0
    %2966 = vmatpush1.msra.mxu0 0.0
    %2967 = vmatprep.subr.mxu0 0.0
    %2968 = vmatpush1.msra.mxu0 0.0
    %2969 = vmatprep.subr.mxu0 0.0
    %2970 = vmatpush1.msra.mxu0 0.0
    %2971 = vmatprep.subr.mxu0 0.0
    %2972 = vmatpush1.msra.mxu0 0.0
    %2973 = vmatprep.subr.mxu0 0.0
    %2974 = vmatpush1.msra.mxu0 0.0
    %2975 = vmatprep.subr.mxu0 0.0
    %2976 = vmatpush1.msra.mxu0 0.0
    %2977 = vmatprep.subr.mxu0 0.0
    %2978 = vmatpush1.msra.mxu0 0.0
    %2979 = vmatprep.subr.mxu0 0.0
    %2980 = vmatpush1.msra.mxu0 0.0
    %2981 = vmatprep.subr.mxu0 0.0
    %2982 = vmatpush1.msra.mxu0 0.0
    %2983 = vmatprep.subr.mxu0 0.0
    %2984 = vmatpush1.msra.mxu0 0.0
    %2985 = vmatprep.subr.mxu0 0.0
    %2986 = vmatpush1.msra.mxu0 0.0
    %2987 = vmatprep.subr.mxu0 0.0
    %2988 = vmatpush1.msra.mxu0 0.0
    %2989 = vmatprep.subr.mxu0 0.0
    %2990 = vmatpush1.msra.mxu0 0.0
    %2991 = vmatprep.mubr.f32.mxu0 0.0
    %2992 = vmatmul.mubr.f32.gmra.mrb[0].mxu0 %v2925
    %v2993 = vpop.f32.mrb[0].mxu0
    %v2994 = vadd.f32 0.0, %v2993
    %v2995 = vpop.f32.mrb[0].mxu0
    %2996 = vdwg.mxu0
    %v2997 = vrcp.pop %v2920
    %v2998 = vmul.f32 %v2994, %v2997
    %v2999 = vpack.c.bf16 %v2998, %v2998
    %v3001 = vsel %vm393, %v2999, 0
    %v3004 = vsel %vm725, %v2409, 0
    %3006 = vmatprep.subr.bf16.mxu0 0
    %3007 = vmatpush1.bf16.msra.mxu0 %v3004
    %3008 = vmatprep.subr.bf16.mxu0 0
    %3009 = vmatpush1.bf16.msra.mxu0 0
    %3010 = vmatprep.subr.bf16.mxu0 0
    %3011 = vmatpush1.bf16.msra.mxu0 0
    %3012 = vmatprep.subr.bf16.mxu0 0
    %3013 = vmatpush1.bf16.msra.mxu0 0
    %3014 = vmatprep.subr.bf16.mxu0 0
    %3015 = vmatpush1.bf16.msra.mxu0 0
    %3016 = vmatprep.subr.bf16.mxu0 0
    %3017 = vmatpush1.bf16.msra.mxu0 0
    %3018 = vmatprep.subr.bf16.mxu0 0
    %3019 = vmatpush1.bf16.msra.mxu0 0
    %3020 = vmatprep.subr.bf16.mxu0 0
    %3021 = vmatpush1.bf16.msra.mxu0 0
    %3022 = vmatprep.subr.bf16.mxu0 0
    %3023 = vmatpush1.bf16.msra.mxu0 0
    %3024 = vmatprep.subr.bf16.mxu0 0
    %3025 = vmatpush1.bf16.msra.mxu0 0
    %3026 = vmatprep.subr.bf16.mxu0 0
    %3027 = vmatpush1.bf16.msra.mxu0 0
    %3028 = vmatprep.subr.bf16.mxu0 0
    %3029 = vmatpush1.bf16.msra.mxu0 0
    %3030 = vmatprep.subr.bf16.mxu0 0
    %3031 = vmatpush1.bf16.msra.mxu0 0
    %3032 = vmatprep.subr.bf16.mxu0 0
    %3033 = vmatpush1.bf16.msra.mxu0 0
    %3034 = vmatprep.subr.bf16.mxu0 0
    %3035 = vmatpush1.bf16.msra.mxu0 0
    %3036 = vmatprep.subr.bf16.mxu0 0
    %3037 = vmatpush1.bf16.msra.mxu0 0
    %3038 = vmatprep.mubr.bf16.mxu0 0
    %3039 = vmatmul.mubr.bf16.gmra.mrb[0].mxu0 %v3001
    %v3040 = vpop.f32.mrb[0].mxu0
    %v3041 = vadd.f32 0.0, %v3040
    %v3042 = vpop.f32.mrb[0].mxu0
    %v3043 = vpop.f32.mrb[0].mxu0
    %v3044 = vpop.f32.mrb[0].mxu0
    %3045 = vdwg.mxu0
    %v3046 = vadd.f32 %v2829, %v3041
    %3047 = vrot.lane.b32.xlu0 %v2400, 104
    %v3048 = vpop.permute.xlu0 %3047
    %3049 = vrot.lane.b32.xlu0 %v2400, 72
    %v3050 = vpop.permute.xlu0 %3049
    %v3051 = vsel %vm393, %v3048, 0
    %v3053 = vsel %vm393, %v3050, 0
    %3055 = vmatprep.subr.mxu0 0.0
    %3056 = vmatpush1.xpose.msra.mxu0 %v3053
    %3057 = vmatprep.subr.mxu0 0.0
    %3058 = vmatpush1.xpose.msra.mxu0 0.0
    %3059 = vmatprep.subr.mxu0 0.0
    %3060 = vmatpush1.xpose.msra.mxu0 0.0
    %3061 = vmatprep.subr.mxu0 0.0
    %3062 = vmatpush1.xpose.msra.mxu0 0.0
    %3063 = vmatprep.subr.mxu0 0.0
    %3064 = vmatpush1.xpose.msra.mxu0 0.0
    %3065 = vmatprep.subr.mxu0 0.0
    %3066 = vmatpush1.xpose.msra.mxu0 0.0
    %3067 = vmatprep.subr.mxu0 0.0
    %3068 = vmatpush1.xpose.msra.mxu0 0.0
    %3069 = vmatprep.subr.mxu0 0.0
    %3070 = vmatpush1.xpose.msra.mxu0 0.0
    %3071 = vmatprep.subr.mxu0 0.0
    %3072 = vmatpush1.xpose.msra.mxu0 0.0
    %3073 = vmatprep.subr.mxu0 0.0
    %3074 = vmatpush1.xpose.msra.mxu0 0.0
    %3075 = vmatprep.subr.mxu0 0.0
    %3076 = vmatpush1.xpose.msra.mxu0 0.0
    %3077 = vmatprep.subr.mxu0 0.0
    %3078 = vmatpush1.xpose.msra.mxu0 0.0
    %3079 = vmatprep.subr.mxu0 0.0
    %3080 = vmatpush1.xpose.msra.mxu0 0.0
    %3081 = vmatprep.subr.mxu0 0.0
    %3082 = vmatpush1.xpose.msra.mxu0 0.0
    %3083 = vmatprep.subr.mxu0 0.0
    %3084 = vmatpush1.xpose.msra.mxu0 0.0
    %3085 = vmatprep.subr.mxu0 0.0
    %3086 = vmatpush1.xpose.msra.mxu0 0.0
    %3087 = vmatprep.subr.mxu0 0.0
    %3088 = vmatpush1.xpose.msra.mxu0 0.0
    %3089 = vmatprep.subr.mxu0 0.0
    %3090 = vmatpush1.xpose.msra.mxu0 0.0
    %3091 = vmatprep.subr.mxu0 0.0
    %3092 = vmatpush1.xpose.msra.mxu0 0.0
    %3093 = vmatprep.subr.mxu0 0.0
    %3094 = vmatpush1.xpose.msra.mxu0 0.0
    %3095 = vmatprep.subr.mxu0 0.0
    %3096 = vmatpush1.xpose.msra.mxu0 0.0
    %3097 = vmatprep.subr.mxu0 0.0
    %3098 = vmatpush1.xpose.msra.mxu0 0.0
    %3099 = vmatprep.subr.mxu0 0.0
    %3100 = vmatpush1.xpose.msra.mxu0 0.0
    %3101 = vmatprep.subr.mxu0 0.0
    %3102 = vmatpush1.xpose.msra.mxu0 0.0
    %3103 = vmatprep.subr.mxu0 0.0
    %3104 = vmatpush1.xpose.msra.mxu0 0.0
    %3105 = vmatprep.subr.mxu0 0.0
    %3106 = vmatpush1.xpose.msra.mxu0 0.0
    %3107 = vmatprep.subr.mxu0 0.0
    %3108 = vmatpush1.xpose.msra.mxu0 0.0
    %3109 = vmatprep.subr.mxu0 0.0
    %3110 = vmatpush1.xpose.msra.mxu0 0.0
    %3111 = vmatprep.subr.mxu0 0.0
    %3112 = vmatpush1.xpose.msra.mxu0 0.0
    %3113 = vmatprep.subr.mxu0 0.0
    %3114 = vmatpush1.xpose.msra.mxu0 0.0
    %3115 = vmatprep.subr.mxu0 0.0
    %3116 = vmatpush1.xpose.msra.mxu0 0.0
    %3117 = vmatprep.subr.mxu0 0.0
    %3118 = vmatpush1.xpose.msra.mxu0 0.0
    %3119 = vmatprep.mubr.f32.mxu0 0.0
    %3120 = vmatmul.mubr.f32.gmra.mrb[0].mxu0 %v3051
    %v3121 = vpop.f32.mrb[0].mxu0
    %v3122 = vadd.f32 %v272, %v3121
    %v3123 = vpop.f32.mrb[0].mxu0
    %3124 = vdwg.mxu0
    %v3125 = vsel %vm393, %v3122, -inf
    %3126 = vmax.xlane.f32.xlu0 %v3125
    %v3127 = vpop.xlane.xlu0 %3126
    %v3128 = vsub.f32 %v3122, %v3127
    %v3129 = vmul.f32 %v3128, 1.442695
    %v3130 = vpow.pop %v3129
    %v3131 = vsel %vm393, %v3130, 0.0
    %3132 = vadd.xlane.f32.xlu0 %v3131
    %v3133 = vpop.xlane.xlu0 %3132
    %3134 = vrot.lane.b32.xlu0 %v2400, 40
    %v3135 = vpop.permute.xlu0 %3134
    %v3138 = vsel %vm393, %v3130, 0
    %3140 = vmatprep.subr.mxu0 0.0
    %3141 = vmatpush1.msra.mxu0 %v3135
    %3142 = vmatprep.subr.mxu0 0.0
    %3143 = vmatpush1.msra.mxu0 0.0
    %3144 = vmatprep.subr.mxu0 0.0
    %3145 = vmatpush1.msra.mxu0 0.0
    %3146 = vmatprep.subr.mxu0 0.0
    %3147 = vmatpush1.msra.mxu0 0.0
    %3148 = vmatprep.subr.mxu0 0.0
    %3149 = vmatpush1.msra.mxu0 0.0
    %3150 = vmatprep.subr.mxu0 0.0
    %3151 = vmatpush1.msra.mxu0 0.0
    %3152 = vmatprep.subr.mxu0 0.0
    %3153 = vmatpush1.msra.mxu0 0.0
    %3154 = vmatprep.subr.mxu0 0.0
    %3155 = vmatpush1.msra.mxu0 0.0
    %3156 = vmatprep.subr.mxu0 0.0
    %3157 = vmatpush1.msra.mxu0 0.0
    %3158 = vmatprep.subr.mxu0 0.0
    %3159 = vmatpush1.msra.mxu0 0.0
    %3160 = vmatprep.subr.mxu0 0.0
    %3161 = vmatpush1.msra.mxu0 0.0
    %3162 = vmatprep.subr.mxu0 0.0
    %3163 = vmatpush1.msra.mxu0 0.0
    %3164 = vmatprep.subr.mxu0 0.0
    %3165 = vmatpush1.msra.mxu0 0.0
    %3166 = vmatprep.subr.mxu0 0.0
    %3167 = vmatpush1.msra.mxu0 0.0
    %3168 = vmatprep.subr.mxu0 0.0
    %3169 = vmatpush1.msra.mxu0 0.0
    %3170 = vmatprep.subr.mxu0 0.0
    %3171 = vmatpush1.msra.mxu0 0.0
    %3172 = vmatprep.subr.mxu0 0.0
    %3173 = vmatpush1.msra.mxu0 0.0
    %3174 = vmatprep.subr.mxu0 0.0
    %3175 = vmatpush1.msra.mxu0 0.0
    %3176 = vmatprep.subr.mxu0 0.0
    %3177 = vmatpush1.msra.mxu0 0.0
    %3178 = vmatprep.subr.mxu0 0.0
    %3179 = vmatpush1.msra.mxu0 0.0
    %3180 = vmatprep.subr.mxu0 0.0
    %3181 = vmatpush1.msra.mxu0 0.0
    %3182 = vmatprep.subr.mxu0 0.0
    %3183 = vmatpush1.msra.mxu0 0.0
    %3184 = vmatprep.subr.mxu0 0.0
    %3185 = vmatpush1.msra.mxu0 0.0
    %3186 = vmatprep.subr.mxu0 0.0
    %3187 = vmatpush1.msra.mxu0 0.0
    %3188 = vmatprep.subr.mxu0 0.0
    %3189 = vmatpush1.msra.mxu0 0.0
    %3190 = vmatprep.subr.mxu0 0.0
    %3191 = vmatpush1.msra.mxu0 0.0
    %3192 = vmatprep.subr.mxu0 0.0
    %3193 = vmatpush1.msra.mxu0 0.0
    %3194 = vmatprep.subr.mxu0 0.0
    %3195 = vmatpush1.msra.mxu0 0.0
    %3196 = vmatprep.subr.mxu0 0.0
    %3197 = vmatpush1.msra.mxu0 0.0
    %3198 = vmatprep.subr.mxu0 0.0
    %3199 = vmatpush1.msra.mxu0 0.0
    %3200 = vmatprep.subr.mxu0 0.0
    %3201 = vmatpush1.msra.mxu0 0.0
    %3202 = vmatprep.subr.mxu0 0.0
    %3203 = vmatpush1.msra.mxu0 0.0
    %3204 = vmatprep.mubr.f32.mxu0 0.0
    %3205 = vmatmul.mubr.f32.gmra.mrb[0].mxu0 %v3138
    %v3206 = vpop.f32.mrb[0].mxu0
    %v3207 = vadd.f32 0.0, %v3206
    %v3208 = vpop.f32.mrb[0].mxu0
    %3209 = vdwg.mxu0
    %v3210 = vrcp.pop %v3133
    %v3211 = vmul.f32 %v3207, %v3210
    %v3212 = vpack.c.bf16 %v3211, %v3211
    %v3214 = vsel %vm393, %v3212, 0
    %v3217 = vsel %vm725, %v2410, 0
    %3219 = vmatprep.subr.bf16.mxu0 0
    %3220 = vmatpush1.bf16.msra.mxu0 %v3217
    %3221 = vmatprep.subr.bf16.mxu0 0
    %3222 = vmatpush1.bf16.msra.mxu0 0
    %3223 = vmatprep.subr.bf16.mxu0 0
    %3224 = vmatpush1.bf16.msra.mxu0 0
    %3225 = vmatprep.subr.bf16.mxu0 0
    %3226 = vmatpush1.bf16.msra.mxu0 0
    %3227 = vmatprep.subr.bf16.mxu0 0
    %3228 = vmatpush1.bf16.msra.mxu0 0
    %3229 = vmatprep.subr.bf16.mxu0 0
    %3230 = vmatpush1.bf16.msra.mxu0 0
    %3231 = vmatprep.subr.bf16.mxu0 0
    %3232 = vmatpush1.bf16.msra.mxu0 0
    %3233 = vmatprep.subr.bf16.mxu0 0
    %3234 = vmatpush1.bf16.msra.mxu0 0
    %3235 = vmatprep.subr.bf16.mxu0 0
    %3236 = vmatpush1.bf16.msra.mxu0 0
    %3237 = vmatprep.subr.bf16.mxu0 0
    %3238 = vmatpush1.bf16.msra.mxu0 0
    %3239 = vmatprep.subr.bf16.mxu0 0
    %3240 = vmatpush1.bf16.msra.mxu0 0
    %3241 = vmatprep.subr.bf16.mxu0 0
    %3242 = vmatpush1.bf16.msra.mxu0 0
    %3243 = vmatprep.subr.bf16.mxu0 0
    %3244 = vmatpush1.bf16.msra.mxu0 0
    %3245 = vmatprep.subr.bf16.mxu0 0
    %3246 = vmatpush1.bf16.msra.mxu0 0
    %3247 = vmatprep.subr.bf16.mxu0 0
    %3248 = vmatpush1.bf16.msra.mxu0 0
    %3249 = vmatprep.subr.bf16.mxu0 0
    %3250 = vmatpush1.bf16.msra.mxu0 0
    %3251 = vmatprep.mubr.bf16.mxu0 0
    %3252 = vmatmul.mubr.bf16.gmra.mrb[0].mxu0 %v3214
    %v3253 = vpop.f32.mrb[0].mxu0
    %v3254 = vadd.f32 0.0, %v3253
    %v3255 = vpop.f32.mrb[0].mxu0
    %v3256 = vpop.f32.mrb[0].mxu0
    %v3257 = vpop.f32.mrb[0].mxu0
    %3258 = vdwg.mxu0
    %v3259 = vadd.f32 %v3046, %v3254
    %3261 = vrot.lane.b32.xlu0 %v2403, 96
    %v3262 = vpop.permute.xlu0 %3261
    %v3263 = vsel %vm393, %v2403, 0
    %v3265 = vsel %vm393, %v3262, 0
    %3267 = vmatprep.subr.mxu0 0.0
    %3268 = vmatpush1.xpose.msra.mxu0 %v3265
    %3269 = vmatprep.subr.mxu0 0.0
    %3270 = vmatpush1.xpose.msra.mxu0 0.0
    %3271 = vmatprep.subr.mxu0 0.0
    %3272 = vmatpush1.xpose.msra.mxu0 0.0
    %3273 = vmatprep.subr.mxu0 0.0
    %3274 = vmatpush1.xpose.msra.mxu0 0.0
    %3275 = vmatprep.subr.mxu0 0.0
    %3276 = vmatpush1.xpose.msra.mxu0 0.0
    %3277 = vmatprep.subr.mxu0 0.0
    %3278 = vmatpush1.xpose.msra.mxu0 0.0
    %3279 = vmatprep.subr.mxu0 0.0
    %3280 = vmatpush1.xpose.msra.mxu0 0.0
    %3281 = vmatprep.subr.mxu0 0.0
    %3282 = vmatpush1.xpose.msra.mxu0 0.0
    %3283 = vmatprep.subr.mxu0 0.0
    %3284 = vmatpush1.xpose.msra.mxu0 0.0
    %3285 = vmatprep.subr.mxu0 0.0
    %3286 = vmatpush1.xpose.msra.mxu0 0.0
    %3287 = vmatprep.subr.mxu0 0.0
    %3288 = vmatpush1.xpose.msra.mxu0 0.0
    %3289 = vmatprep.subr.mxu0 0.0
    %3290 = vmatpush1.xpose.msra.mxu0 0.0
    %3291 = vmatprep.subr.mxu0 0.0
    %3292 = vmatpush1.xpose.msra.mxu0 0.0
    %3293 = vmatprep.subr.mxu0 0.0
    %3294 = vmatpush1.xpose.msra.mxu0 0.0
    %3295 = vmatprep.subr.mxu0 0.0
    %3296 = vmatpush1.xpose.msra.mxu0 0.0
    %3297 = vmatprep.subr.mxu0 0.0
    %3298 = vmatpush1.xpose.msra.mxu0 0.0
    %3299 = vmatprep.subr.mxu0 0.0
    %3300 = vmatpush1.xpose.msra.mxu0 0.0
    %3301 = vmatprep.subr.mxu0 0.0
    %3302 = vmatpush1.xpose.msra.mxu0 0.0
    %3303 = vmatprep.subr.mxu0 0.0
    %3304 = vmatpush1.xpose.msra.mxu0 0.0
    %3305 = vmatprep.subr.mxu0 0.0
    %3306 = vmatpush1.xpose.msra.mxu0 0.0
    %3307 = vmatprep.subr.mxu0 0.0
    %3308 = vmatpush1.xpose.msra.mxu0 0.0
    %3309 = vmatprep.subr.mxu0 0.0
    %3310 = vmatpush1.xpose.msra.mxu0 0.0
    %3311 = vmatprep.subr.mxu0 0.0
    %3312 = vmatpush1.xpose.msra.mxu0 0.0
    %3313 = vmatprep.subr.mxu0 0.0
    %3314 = vmatpush1.xpose.msra.mxu0 0.0
    %3315 = vmatprep.subr.mxu0 0.0
    %3316 = vmatpush1.xpose.msra.mxu0 0.0
    %3317 = vmatprep.subr.mxu0 0.0
    %3318 = vmatpush1.xpose.msra.mxu0 0.0
    %3319 = vmatprep.subr.mxu0 0.0
    %3320 = vmatpush1.xpose.msra.mxu0 0.0
    %3321 = vmatprep.subr.mxu0 0.0
    %3322 = vmatpush1.xpose.msra.mxu0 0.0
    %3323 = vmatprep.subr.mxu0 0.0
    %3324 = vmatpush1.xpose.msra.mxu0 0.0
    %3325 = vmatprep.subr.mxu0 0.0
    %3326 = vmatpush1.xpose.msra.mxu0 0.0
    %3327 = vmatprep.subr.mxu0 0.0
    %3328 = vmatpush1.xpose.msra.mxu0 0.0
    %3329 = vmatprep.subr.mxu0 0.0
    %3330 = vmatpush1.xpose.msra.mxu0 0.0
    %3331 = vmatprep.mubr.f32.mxu0 0.0
    %3332 = vmatmul.mubr.f32.gmra.mrb[0].mxu0 %v3263
    %v3333 = vpop.f32.mrb[0].mxu0
    %v3334 = vadd.f32 %v272, %v3333
    %v3335 = vpop.f32.mrb[0].mxu0
    %3336 = vdwg.mxu0
    %v3337 = vsel %vm393, %v3334, -inf
    %3338 = vmax.xlane.f32.xlu0 %v3337
    %v3339 = vpop.xlane.xlu0 %3338
    %v3340 = vsub.f32 %v3334, %v3339
    %v3341 = vmul.f32 %v3340, 1.442695
    %v3342 = vpow.pop %v3341
    %v3343 = vsel %vm393, %v3342, 0.0
    %3344 = vadd.xlane.f32.xlu0 %v3343
    %v3345 = vpop.xlane.xlu0 %3344
    %3346 = vrot.lane.b32.xlu0 %v2403, 64
    %v3347 = vpop.permute.xlu0 %3346
    %v3350 = vsel %vm393, %v3342, 0
    %3352 = vmatprep.subr.mxu0 0.0
    %3353 = vmatpush1.msra.mxu0 %v3347
    %3354 = vmatprep.subr.mxu0 0.0
    %3355 = vmatpush1.msra.mxu0 0.0
    %3356 = vmatprep.subr.mxu0 0.0
    %3357 = vmatpush1.msra.mxu0 0.0
    %3358 = vmatprep.subr.mxu0 0.0
    %3359 = vmatpush1.msra.mxu0 0.0
    %3360 = vmatprep.subr.mxu0 0.0
    %3361 = vmatpush1.msra.mxu0 0.0
    %3362 = vmatprep.subr.mxu0 0.0
    %3363 = vmatpush1.msra.mxu0 0.0
    %3364 = vmatprep.subr.mxu0 0.0
    %3365 = vmatpush1.msra.mxu0 0.0
    %3366 = vmatprep.subr.mxu0 0.0
    %3367 = vmatpush1.msra.mxu0 0.0
    %3368 = vmatprep.subr.mxu0 0.0
    %3369 = vmatpush1.msra.mxu0 0.0
    %3370 = vmatprep.subr.mxu0 0.0
    %3371 = vmatpush1.msra.mxu0 0.0
    %3372 = vmatprep.subr.mxu0 0.0
    %3373 = vmatpush1.msra.mxu0 0.0
    %3374 = vmatprep.subr.mxu0 0.0
    %3375 = vmatpush1.msra.mxu0 0.0
    %3376 = vmatprep.subr.mxu0 0.0
    %3377 = vmatpush1.msra.mxu0 0.0
    %3378 = vmatprep.subr.mxu0 0.0
    %3379 = vmatpush1.msra.mxu0 0.0
    %3380 = vmatprep.subr.mxu0 0.0
    %3381 = vmatpush1.msra.mxu0 0.0
    %3382 = vmatprep.subr.mxu0 0.0
    %3383 = vmatpush1.msra.mxu0 0.0
    %3384 = vmatprep.subr.mxu0 0.0
    %3385 = vmatpush1.msra.mxu0 0.0
    %3386 = vmatprep.subr.mxu0 0.0
    %3387 = vmatpush1.msra.mxu0 0.0
    %3388 = vmatprep.subr.mxu0 0.0
    %3389 = vmatpush1.msra.mxu0 0.0
    %3390 = vmatprep.subr.mxu0 0.0
    %3391 = vmatpush1.msra.mxu0 0.0
    %3392 = vmatprep.subr.mxu0 0.0
    %3393 = vmatpush1.msra.mxu0 0.0
    %3394 = vmatprep.subr.mxu0 0.0
    %3395 = vmatpush1.msra.mxu0 0.0
    %3396 = vmatprep.subr.mxu0 0.0
    %3397 = vmatpush1.msra.mxu0 0.0
    %3398 = vmatprep.subr.mxu0 0.0
    %3399 = vmatpush1.msra.mxu0 0.0
    %3400 = vmatprep.subr.mxu0 0.0
    %3401 = vmatpush1.msra.mxu0 0.0
    %3402 = vmatprep.subr.mxu0 0.0
    %3403 = vmatpush1.msra.mxu0 0.0
    %3404 = vmatprep.subr.mxu0 0.0
    %3405 = vmatpush1.msra.mxu0 0.0
    %3406 = vmatprep.subr.mxu0 0.0
    %3407 = vmatpush1.msra.mxu0 0.0
    %3408 = vmatprep.subr.mxu0 0.0
    %3409 = vmatpush1.msra.mxu0 0.0
    %3410 = vmatprep.subr.mxu0 0.0
    %3411 = vmatpush1.msra.mxu0 0.0
    %3412 = vmatprep.subr.mxu0 0.0
    %3413 = vmatpush1.msra.mxu0 0.0
    %3414 = vmatprep.subr.mxu0 0.0
    %3415 = vmatpush1.msra.mxu0 0.0
    %3416 = vmatprep.mubr.f32.mxu0 0.0
    %3417 = vmatmul.mubr.f32.gmra.mrb[0].mxu0 %v3350
    %v3418 = vpop.f32.mrb[0].mxu0
    %v3419 = vadd.f32 0.0, %v3418
    %v3420 = vpop.f32.mrb[0].mxu0
    %3421 = vdwg.mxu0
    %v3422 = vrcp.pop %v3345
    %v3423 = vmul.f32 %v3419, %v3422
    %v3424 = vpack.c.bf16 %v3423, %v3423
    %3425 = vrot.lane.b32.xlu0 %v2403, 120
    %v3426 = vpop.permute.xlu0 %3425
    %3427 = vrot.lane.b32.xlu0 %v2403, 88
    %v3428 = vpop.permute.xlu0 %3427
    %v3429 = vsel %vm393, %v3426, 0
    %v3431 = vsel %vm393, %v3428, 0
    %3433 = vmatprep.subr.mxu0 0.0
    %3434 = vmatpush1.xpose.msra.mxu0 %v3431
    %3435 = vmatprep.subr.mxu0 0.0
    %3436 = vmatpush1.xpose.msra.mxu0 0.0
    %3437 = vmatprep.subr.mxu0 0.0
    %3438 = vmatpush1.xpose.msra.mxu0 0.0
    %3439 = vmatprep.subr.mxu0 0.0
    %3440 = vmatpush1.xpose.msra.mxu0 0.0
    %3441 = vmatprep.subr.mxu0 0.0
    %3442 = vmatpush1.xpose.msra.mxu0 0.0
    %3443 = vmatprep.subr.mxu0 0.0
    %3444 = vmatpush1.xpose.msra.mxu0 0.0
    %3445 = vmatprep.subr.mxu0 0.0
    %3446 = vmatpush1.xpose.msra.mxu0 0.0
    %3447 = vmatprep.subr.mxu0 0.0
    %3448 = vmatpush1.xpose.msra.mxu0 0.0
    %3449 = vmatprep.subr.mxu0 0.0
    %3450 = vmatpush1.xpose.msra.mxu0 0.0
    %3451 = vmatprep.subr.mxu0 0.0
    %3452 = vmatpush1.xpose.msra.mxu0 0.0
    %3453 = vmatprep.subr.mxu0 0.0
    %3454 = vmatpush1.xpose.msra.mxu0 0.0
    %3455 = vmatprep.subr.mxu0 0.0
    %3456 = vmatpush1.xpose.msra.mxu0 0.0
    %3457 = vmatprep.subr.mxu0 0.0
    %3458 = vmatpush1.xpose.msra.mxu0 0.0
    %3459 = vmatprep.subr.mxu0 0.0
    %3460 = vmatpush1.xpose.msra.mxu0 0.0
    %3461 = vmatprep.subr.mxu0 0.0
    %3462 = vmatpush1.xpose.msra.mxu0 0.0
    %3463 = vmatprep.subr.mxu0 0.0
    %3464 = vmatpush1.xpose.msra.mxu0 0.0
    %3465 = vmatprep.subr.mxu0 0.0
    %3466 = vmatpush1.xpose.msra.mxu0 0.0
    %3467 = vmatprep.subr.mxu0 0.0
    %3468 = vmatpush1.xpose.msra.mxu0 0.0
    %3469 = vmatprep.subr.mxu0 0.0
    %3470 = vmatpush1.xpose.msra.mxu0 0.0
    %3471 = vmatprep.subr.mxu0 0.0
    %3472 = vmatpush1.xpose.msra.mxu0 0.0
    %3473 = vmatprep.subr.mxu0 0.0
    %3474 = vmatpush1.xpose.msra.mxu0 0.0
    %3475 = vmatprep.subr.mxu0 0.0
    %3476 = vmatpush1.xpose.msra.mxu0 0.0
    %3477 = vmatprep.subr.mxu0 0.0
    %3478 = vmatpush1.xpose.msra.mxu0 0.0
    %3479 = vmatprep.subr.mxu0 0.0
    %3480 = vmatpush1.xpose.msra.mxu0 0.0
    %3481 = vmatprep.subr.mxu0 0.0
    %3482 = vmatpush1.xpose.msra.mxu0 0.0
    %3483 = vmatprep.subr.mxu0 0.0
    %3484 = vmatpush1.xpose.msra.mxu0 0.0
    %3485 = vmatprep.subr.mxu0 0.0
    %3486 = vmatpush1.xpose.msra.mxu0 0.0
    %3487 = vmatprep.subr.mxu0 0.0
    %3488 = vmatpush1.xpose.msra.mxu0 0.0
    %3489 = vmatprep.subr.mxu0 0.0
    %3490 = vmatpush1.xpose.msra.mxu0 0.0
    %3491 = vmatprep.subr.mxu0 0.0
    %3492 = vmatpush1.xpose.msra.mxu0 0.0
    %3493 = vmatprep.subr.mxu0 0.0
    %3494 = vmatpush1.xpose.msra.mxu0 0.0
    %3495 = vmatprep.subr.mxu0 0.0
    %3496 = vmatpush1.xpose.msra.mxu0 0.0
    %3497 = vmatprep.mubr.f32.mxu0 0.0
    %3498 = vmatmul.mubr.f32.gmra.mrb[0].mxu0 %v3429
    %v3499 = vpop.f32.mrb[0].mxu0
    %v3500 = vadd.f32 %v272, %v3499
    %v3501 = vpop.f32.mrb[0].mxu0
    %3502 = vdwg.mxu0
    %v3503 = vsel %vm393, %v3500, -inf
    %3504 = vmax.xlane.f32.xlu0 %v3503
    %v3505 = vpop.xlane.xlu0 %3504
    %v3506 = vsub.f32 %v3500, %v3505
    %v3507 = vmul.f32 %v3506, 1.442695
    %v3508 = vpow.pop %v3507
    %v3509 = vsel %vm393, %v3508, 0.0
    %3510 = vadd.xlane.f32.xlu0 %v3509
    %v3511 = vpop.xlane.xlu0 %3510
    %3512 = vrot.lane.b32.xlu0 %v2403, 56
    %v3513 = vpop.permute.xlu0 %3512
    %v3516 = vsel %vm393, %v3508, 0
    %3518 = vmatprep.subr.mxu0 0.0
    %3519 = vmatpush1.msra.mxu0 %v3513
    %3520 = vmatprep.subr.mxu0 0.0
    %3521 = vmatpush1.msra.mxu0 0.0
    %3522 = vmatprep.subr.mxu0 0.0
    %3523 = vmatpush1.msra.mxu0 0.0
    %3524 = vmatprep.subr.mxu0 0.0
    %3525 = vmatpush1.msra.mxu0 0.0
    %3526 = vmatprep.subr.mxu0 0.0
    %3527 = vmatpush1.msra.mxu0 0.0
    %3528 = vmatprep.subr.mxu0 0.0
    %3529 = vmatpush1.msra.mxu0 0.0
    %3530 = vmatprep.subr.mxu0 0.0
    %3531 = vmatpush1.msra.mxu0 0.0
    %3532 = vmatprep.subr.mxu0 0.0
    %3533 = vmatpush1.msra.mxu0 0.0
    %3534 = vmatprep.subr.mxu0 0.0
    %3535 = vmatpush1.msra.mxu0 0.0
    %3536 = vmatprep.subr.mxu0 0.0
    %3537 = vmatpush1.msra.mxu0 0.0
    %3538 = vmatprep.subr.mxu0 0.0
    %3539 = vmatpush1.msra.mxu0 0.0
    %3540 = vmatprep.subr.mxu0 0.0
    %3541 = vmatpush1.msra.mxu0 0.0
    %3542 = vmatprep.subr.mxu0 0.0
    %3543 = vmatpush1.msra.mxu0 0.0
    %3544 = vmatprep.subr.mxu0 0.0
    %3545 = vmatpush1.msra.mxu0 0.0
    %3546 = vmatprep.subr.mxu0 0.0
    %3547 = vmatpush1.msra.mxu0 0.0
    %3548 = vmatprep.subr.mxu0 0.0
    %3549 = vmatpush1.msra.mxu0 0.0
    %3550 = vmatprep.subr.mxu0 0.0
    %3551 = vmatpush1.msra.mxu0 0.0
    %3552 = vmatprep.subr.mxu0 0.0
    %3553 = vmatpush1.msra.mxu0 0.0
    %3554 = vmatprep.subr.mxu0 0.0
    %3555 = vmatpush1.msra.mxu0 0.0
    %3556 = vmatprep.subr.mxu0 0.0
    %3557 = vmatpush1.msra.mxu0 0.0
    %3558 = vmatprep.subr.mxu0 0.0
    %3559 = vmatpush1.msra.mxu0 0.0
    %3560 = vmatprep.subr.mxu0 0.0
    %3561 = vmatpush1.msra.mxu0 0.0
    %3562 = vmatprep.subr.mxu0 0.0
    %3563 = vmatpush1.msra.mxu0 0.0
    %3564 = vmatprep.subr.mxu0 0.0
    %3565 = vmatpush1.msra.mxu0 0.0
    %3566 = vmatprep.subr.mxu0 0.0
    %3567 = vmatpush1.msra.mxu0 0.0
    %3568 = vmatprep.subr.mxu0 0.0
    %3569 = vmatpush1.msra.mxu0 0.0
    %3570 = vmatprep.subr.mxu0 0.0
    %3571 = vmatpush1.msra.mxu0 0.0
    %3572 = vmatprep.subr.mxu0 0.0
    %3573 = vmatpush1.msra.mxu0 0.0
    %3574 = vmatprep.subr.mxu0 0.0
    %3575 = vmatpush1.msra.mxu0 0.0
    %3576 = vmatprep.subr.mxu0 0.0
    %3577 = vmatpush1.msra.mxu0 0.0
    %3578 = vmatprep.subr.mxu0 0.0
    %3579 = vmatpush1.msra.mxu0 0.0
    %3580 = vmatprep.subr.mxu0 0.0
    %3581 = vmatpush1.msra.mxu0 0.0
    %3582 = vmatprep.mubr.f32.mxu0 0.0
    %3583 = vmatmul.mubr.f32.gmra.mrb[0].mxu0 %v3516
    %v3584 = vpop.f32.mrb[0].mxu0
    %v3585 = vadd.f32 0.0, %v3584
    %v3586 = vpop.f32.mrb[0].mxu0
    %3587 = vdwg.mxu0
    %v3588 = vrcp.pop %v3511
    %v3589 = vmul.f32 %v3585, %v3588
    %v3590 = vpack.c.bf16 %v3589, %v3589
    %v3592 = vsel %vm393, %v3590, 0
    %3594 = vmatprep.subr.bf16.mxu0 0
    %3595 = vmatpush1.bf16.msra.mxu0 %v2746
    %3596 = vmatprep.subr.bf16.mxu0 0
    %3597 = vmatpush1.bf16.msra.mxu0 0
    %3598 = vmatprep.subr.bf16.mxu0 0
    %3599 = vmatpush1.bf16.msra.mxu0 0
    %3600 = vmatprep.subr.bf16.mxu0 0
    %3601 = vmatpush1.bf16.msra.mxu0 0
    %3602 = vmatprep.subr.bf16.mxu0 0
    %3603 = vmatpush1.bf16.msra.mxu0 0
    %3604 = vmatprep.subr.bf16.mxu0 0
    %3605 = vmatpush1.bf16.msra.mxu0 0
    %3606 = vmatprep.subr.bf16.mxu0 0
    %3607 = vmatpush1.bf16.msra.mxu0 0
    %3608 = vmatprep.subr.bf16.mxu0 0
    %3609 = vmatpush1.bf16.msra.mxu0 0
    %3610 = vmatprep.subr.bf16.mxu0 0
    %3611 = vmatpush1.bf16.msra.mxu0 0
    %3612 = vmatprep.subr.bf16.mxu0 0
    %3613 = vmatpush1.bf16.msra.mxu0 0
    %3614 = vmatprep.subr.bf16.mxu0 0
    %3615 = vmatpush1.bf16.msra.mxu0 0
    %3616 = vmatprep.subr.bf16.mxu0 0
    %3617 = vmatpush1.bf16.msra.mxu0 0
    %3618 = vmatprep.subr.bf16.mxu0 0
    %3619 = vmatpush1.bf16.msra.mxu0 0
    %3620 = vmatprep.subr.bf16.mxu0 0
    %3621 = vmatpush1.bf16.msra.mxu0 0
    %3622 = vmatprep.subr.bf16.mxu0 0
    %3623 = vmatpush1.bf16.msra.mxu0 0
    %3624 = vmatprep.subr.bf16.mxu0 0
    %3625 = vmatpush1.bf16.msra.mxu0 0
    %3626 = vmatprep.mubr.bf16.mxu0 0
    %3627 = vmatmul.mubr.bf16.gmra.mrb[0].mxu0 %v3592
    %v3628 = vpop.f32.mrb[0].mxu0
    %v3629 = vadd.f32 0.0, %v3628
    %v3630 = vpop.f32.mrb[0].mxu0
    %v3631 = vpop.f32.mrb[0].mxu0
    %v3632 = vpop.f32.mrb[0].mxu0
    %3633 = vdwg.mxu0
    %v3635 = vsel %vm393, %v3424, 0
    %3637 = vmatprep.subr.bf16.mxu0 0
    %3638 = vmatpush1.bf16.msra.mxu0 %v2792
    %3639 = vmatprep.subr.bf16.mxu0 0
    %3640 = vmatpush1.bf16.msra.mxu0 0
    %3641 = vmatprep.subr.bf16.mxu0 0
    %3642 = vmatpush1.bf16.msra.mxu0 0
    %3643 = vmatprep.subr.bf16.mxu0 0
    %3644 = vmatpush1.bf16.msra.mxu0 0
    %3645 = vmatprep.subr.bf16.mxu0 0
    %3646 = vmatpush1.bf16.msra.mxu0 0
    %3647 = vmatprep.subr.bf16.mxu0 0
    %3648 = vmatpush1.bf16.msra.mxu0 0
    %3649 = vmatprep.subr.bf16.mxu0 0
    %3650 = vmatpush1.bf16.msra.mxu0 0
    %3651 = vmatprep.subr.bf16.mxu0 0
    %3652 = vmatpush1.bf16.msra.mxu0 0
    %3653 = vmatprep.subr.bf16.mxu0 0
    %3654 = vmatpush1.bf16.msra.mxu0 0
    %3655 = vmatprep.subr.bf16.mxu0 0
    %3656 = vmatpush1.bf16.msra.mxu0 0
    %3657 = vmatprep.subr.bf16.mxu0 0
    %3658 = vmatpush1.bf16.msra.mxu0 0
    %3659 = vmatprep.subr.bf16.mxu0 0
    %3660 = vmatpush1.bf16.msra.mxu0 0
    %3661 = vmatprep.subr.bf16.mxu0 0
    %3662 = vmatpush1.bf16.msra.mxu0 0
    %3663 = vmatprep.subr.bf16.mxu0 0
    %3664 = vmatpush1.bf16.msra.mxu0 0
    %3665 = vmatprep.subr.bf16.mxu0 0
    %3666 = vmatpush1.bf16.msra.mxu0 0
    %3667 = vmatprep.subr.bf16.mxu0 0
    %3668 = vmatpush1.bf16.msra.mxu0 0
    %3669 = vmatprep.mubr.bf16.mxu0 0
    %3670 = vmatmul.mubr.bf16.gmra.mrb[0].mxu0 %v3635
    %v3671 = vpop.f32.mrb[0].mxu0
    %v3672 = vadd.f32 %v3629, %v3671
    %v3673 = vpop.f32.mrb[0].mxu0
    %v3674 = vpop.f32.mrb[0].mxu0
    %v3675 = vpop.f32.mrb[0].mxu0
    %3676 = vdwg.mxu0
    %3677 = vrot.lane.b32.xlu0 %v2403, 112
    %v3678 = vpop.permute.xlu0 %3677
    %3679 = vrot.lane.b32.xlu0 %v2403, 80
    %v3680 = vpop.permute.xlu0 %3679
    %v3681 = vsel %vm393, %v3678, 0
    %v3683 = vsel %vm393, %v3680, 0
    %3685 = vmatprep.subr.mxu0 0.0
    %3686 = vmatpush1.xpose.msra.mxu0 %v3683
    %3687 = vmatprep.subr.mxu0 0.0
    %3688 = vmatpush1.xpose.msra.mxu0 0.0
    %3689 = vmatprep.subr.mxu0 0.0
    %3690 = vmatpush1.xpose.msra.mxu0 0.0
    %3691 = vmatprep.subr.mxu0 0.0
    %3692 = vmatpush1.xpose.msra.mxu0 0.0
    %3693 = vmatprep.subr.mxu0 0.0
    %3694 = vmatpush1.xpose.msra.mxu0 0.0
    %3695 = vmatprep.subr.mxu0 0.0
    %3696 = vmatpush1.xpose.msra.mxu0 0.0
    %3697 = vmatprep.subr.mxu0 0.0
    %3698 = vmatpush1.xpose.msra.mxu0 0.0
    %3699 = vmatprep.subr.mxu0 0.0
    %3700 = vmatpush1.xpose.msra.mxu0 0.0
    %3701 = vmatprep.subr.mxu0 0.0
    %3702 = vmatpush1.xpose.msra.mxu0 0.0
    %3703 = vmatprep.subr.mxu0 0.0
    %3704 = vmatpush1.xpose.msra.mxu0 0.0
    %3705 = vmatprep.subr.mxu0 0.0
    %3706 = vmatpush1.xpose.msra.mxu0 0.0
    %3707 = vmatprep.subr.mxu0 0.0
    %3708 = vmatpush1.xpose.msra.mxu0 0.0
    %3709 = vmatprep.subr.mxu0 0.0
    %3710 = vmatpush1.xpose.msra.mxu0 0.0
    %3711 = vmatprep.subr.mxu0 0.0
    %3712 = vmatpush1.xpose.msra.mxu0 0.0
    %3713 = vmatprep.subr.mxu0 0.0
    %3714 = vmatpush1.xpose.msra.mxu0 0.0
    %3715 = vmatprep.subr.mxu0 0.0
    %3716 = vmatpush1.xpose.msra.mxu0 0.0
    %3717 = vmatprep.subr.mxu0 0.0
    %3718 = vmatpush1.xpose.msra.mxu0 0.0
    %3719 = vmatprep.subr.mxu0 0.0
    %3720 = vmatpush1.xpose.msra.mxu0 0.0
    %3721 = vmatprep.subr.mxu0 0.0
    %3722 = vmatpush1.xpose.msra.mxu0 0.0
    %3723 = vmatprep.subr.mxu0 0.0
    %3724 = vmatpush1.xpose.msra.mxu0 0.0
    %3725 = vmatprep.subr.mxu0 0.0
    %3726 = vmatpush1.xpose.msra.mxu0 0.0
    %3727 = vmatprep.subr.mxu0 0.0
    %3728 = vmatpush1.xpose.msra.mxu0 0.0
    %3729 = vmatprep.subr.mxu0 0.0
    %3730 = vmatpush1.xpose.msra.mxu0 0.0
    %3731 = vmatprep.subr.mxu0 0.0
    %3732 = vmatpush1.xpose.msra.mxu0 0.0
    %3733 = vmatprep.subr.mxu0 0.0
    %3734 = vmatpush1.xpose.msra.mxu0 0.0
    %3735 = vmatprep.subr.mxu0 0.0
    %3736 = vmatpush1.xpose.msra.mxu0 0.0
    %3737 = vmatprep.subr.mxu0 0.0
    %3738 = vmatpush1.xpose.msra.mxu0 0.0
    %3739 = vmatprep.subr.mxu0 0.0
    %3740 = vmatpush1.xpose.msra.mxu0 0.0
    %3741 = vmatprep.subr.mxu0 0.0
    %3742 = vmatpush1.xpose.msra.mxu0 0.0
    %3743 = vmatprep.subr.mxu0 0.0
    %3744 = vmatpush1.xpose.msra.mxu0 0.0
    %3745 = vmatprep.subr.mxu0 0.0
    %3746 = vmatpush1.xpose.msra.mxu0 0.0
    %3747 = vmatprep.subr.mxu0 0.0
    %3748 = vmatpush1.xpose.msra.mxu0 0.0
    %3749 = vmatprep.mubr.f32.mxu0 0.0
    %3750 = vmatmul.mubr.f32.gmra.mrb[0].mxu0 %v3681
    %v3751 = vpop.f32.mrb[0].mxu0
    %v3752 = vadd.f32 %v272, %v3751
    %v3753 = vpop.f32.mrb[0].mxu0
    %3754 = vdwg.mxu0
    %v3755 = vsel %vm393, %v3752, -inf
    %3756 = vmax.xlane.f32.xlu0 %v3755
    %v3757 = vpop.xlane.xlu0 %3756
    %v3758 = vsub.f32 %v3752, %v3757
    %v3759 = vmul.f32 %v3758, 1.442695
    %v3760 = vpow.pop %v3759
    %v3761 = vsel %vm393, %v3760, 0.0
    %3762 = vadd.xlane.f32.xlu0 %v3761
    %v3763 = vpop.xlane.xlu0 %3762
    %3764 = vrot.lane.b32.xlu0 %v2403, 48
    %v3765 = vpop.permute.xlu0 %3764
    %v3768 = vsel %vm393, %v3760, 0
    %3770 = vmatprep.subr.mxu0 0.0
    %3771 = vmatpush1.msra.mxu0 %v3765
    %3772 = vmatprep.subr.mxu0 0.0
    %3773 = vmatpush1.msra.mxu0 0.0
    %3774 = vmatprep.subr.mxu0 0.0
    %3775 = vmatpush1.msra.mxu0 0.0
    %3776 = vmatprep.subr.mxu0 0.0
    %3777 = vmatpush1.msra.mxu0 0.0
    %3778 = vmatprep.subr.mxu0 0.0
    %3779 = vmatpush1.msra.mxu0 0.0
    %3780 = vmatprep.subr.mxu0 0.0
    %3781 = vmatpush1.msra.mxu0 0.0
    %3782 = vmatprep.subr.mxu0 0.0
    %3783 = vmatpush1.msra.mxu0 0.0
    %3784 = vmatprep.subr.mxu0 0.0
    %3785 = vmatpush1.msra.mxu0 0.0
    %3786 = vmatprep.subr.mxu0 0.0
    %3787 = vmatpush1.msra.mxu0 0.0
    %3788 = vmatprep.subr.mxu0 0.0
    %3789 = vmatpush1.msra.mxu0 0.0
    %3790 = vmatprep.subr.mxu0 0.0
    %3791 = vmatpush1.msra.mxu0 0.0
    %3792 = vmatprep.subr.mxu0 0.0
    %3793 = vmatpush1.msra.mxu0 0.0
    %3794 = vmatprep.subr.mxu0 0.0
    %3795 = vmatpush1.msra.mxu0 0.0
    %3796 = vmatprep.subr.mxu0 0.0
    %3797 = vmatpush1.msra.mxu0 0.0
    %3798 = vmatprep.subr.mxu0 0.0
    %3799 = vmatpush1.msra.mxu0 0.0
    %3800 = vmatprep.subr.mxu0 0.0
    %3801 = vmatpush1.msra.mxu0 0.0
    %3802 = vmatprep.subr.mxu0 0.0
    %3803 = vmatpush1.msra.mxu0 0.0
    %3804 = vmatprep.subr.mxu0 0.0
    %3805 = vmatpush1.msra.mxu0 0.0
    %3806 = vmatprep.subr.mxu0 0.0
    %3807 = vmatpush1.msra.mxu0 0.0
    %3808 = vmatprep.subr.mxu0 0.0
    %3809 = vmatpush1.msra.mxu0 0.0
    %3810 = vmatprep.subr.mxu0 0.0
    %3811 = vmatpush1.msra.mxu0 0.0
    %3812 = vmatprep.subr.mxu0 0.0
    %3813 = vmatpush1.msra.mxu0 0.0
    %3814 = vmatprep.subr.mxu0 0.0
    %3815 = vmatpush1.msra.mxu0 0.0
    %3816 = vmatprep.subr.mxu0 0.0
    %3817 = vmatpush1.msra.mxu0 0.0
    %3818 = vmatprep.subr.mxu0 0.0
    %3819 = vmatpush1.msra.mxu0 0.0
    %3820 = vmatprep.subr.mxu0 0.0
    %3821 = vmatpush1.msra.mxu0 0.0
    %3822 = vmatprep.subr.mxu0 0.0
    %3823 = vmatpush1.msra.mxu0 0.0
    %3824 = vmatprep.subr.mxu0 0.0
    %3825 = vmatpush1.msra.mxu0 0.0
    %3826 = vmatprep.subr.mxu0 0.0
    %3827 = vmatpush1.msra.mxu0 0.0
    %3828 = vmatprep.subr.mxu0 0.0
    %3829 = vmatpush1.msra.mxu0 0.0
    %3830 = vmatprep.subr.mxu0 0.0
    %3831 = vmatpush1.msra.mxu0 0.0
    %3832 = vmatprep.subr.mxu0 0.0
    %3833 = vmatpush1.msra.mxu0 0.0
    %3834 = vmatprep.mubr.f32.mxu0 0.0
    %3835 = vmatmul.mubr.f32.gmra.mrb[0].mxu0 %v3768
    %v3836 = vpop.f32.mrb[0].mxu0
    %v3837 = vadd.f32 0.0, %v3836
    %v3838 = vpop.f32.mrb[0].mxu0
    %3839 = vdwg.mxu0
    %v3840 = vrcp.pop %v3763
    %v3841 = vmul.f32 %v3837, %v3840
    %v3842 = vpack.c.bf16 %v3841, %v3841
    %v3844 = vsel %vm393, %v3842, 0
    %3846 = vmatprep.subr.bf16.mxu0 0
    %3847 = vmatpush1.bf16.msra.mxu0 %v3004
    %3848 = vmatprep.subr.bf16.mxu0 0
    %3849 = vmatpush1.bf16.msra.mxu0 0
    %3850 = vmatprep.subr.bf16.mxu0 0
    %3851 = vmatpush1.bf16.msra.mxu0 0
    %3852 = vmatprep.subr.bf16.mxu0 0
    %3853 = vmatpush1.bf16.msra.mxu0 0
    %3854 = vmatprep.subr.bf16.mxu0 0
    %3855 = vmatpush1.bf16.msra.mxu0 0
    %3856 = vmatprep.subr.bf16.mxu0 0
    %3857 = vmatpush1.bf16.msra.mxu0 0
    %3858 = vmatprep.subr.bf16.mxu0 0
    %3859 = vmatpush1.bf16.msra.mxu0 0
    %3860 = vmatprep.subr.bf16.mxu0 0
    %3861 = vmatpush1.bf16.msra.mxu0 0
    %3862 = vmatprep.subr.bf16.mxu0 0
    %3863 = vmatpush1.bf16.msra.mxu0 0
    %3864 = vmatprep.subr.bf16.mxu0 0
    %3865 = vmatpush1.bf16.msra.mxu0 0
    %3866 = vmatprep.subr.bf16.mxu0 0
    %3867 = vmatpush1.bf16.msra.mxu0 0
    %3868 = vmatprep.subr.bf16.mxu0 0
    %3869 = vmatpush1.bf16.msra.mxu0 0
    %3870 = vmatprep.subr.bf16.mxu0 0
    %3871 = vmatpush1.bf16.msra.mxu0 0
    %3872 = vmatprep.subr.bf16.mxu0 0
    %3873 = vmatpush1.bf16.msra.mxu0 0
    %3874 = vmatprep.subr.bf16.mxu0 0
    %3875 = vmatpush1.bf16.msra.mxu0 0
    %3876 = vmatprep.subr.bf16.mxu0 0
    %3877 = vmatpush1.bf16.msra.mxu0 0
    %3878 = vmatprep.mubr.bf16.mxu0 0
    %3879 = vmatmul.mubr.bf16.gmra.mrb[0].mxu0 %v3844
    %v3880 = vpop.f32.mrb[0].mxu0
    %v3881 = vadd.f32 0.0, %v3880
    %v3882 = vpop.f32.mrb[0].mxu0
    %v3883 = vpop.f32.mrb[0].mxu0
    %v3884 = vpop.f32.mrb[0].mxu0
    %3885 = vdwg.mxu0
    %v3886 = vadd.f32 %v3672, %v3881
    %3887 = vrot.lane.b32.xlu0 %v2403, 104
    %v3888 = vpop.permute.xlu0 %3887
    %3889 = vrot.lane.b32.xlu0 %v2403, 72
    %v3890 = vpop.permute.xlu0 %3889
    %v3891 = vsel %vm393, %v3888, 0
    %v3893 = vsel %vm393, %v3890, 0
    %3895 = vmatprep.subr.mxu0 0.0
    %3896 = vmatpush1.xpose.msra.mxu0 %v3893
    %3897 = vmatprep.subr.mxu0 0.0
    %3898 = vmatpush1.xpose.msra.mxu0 0.0
    %3899 = vmatprep.subr.mxu0 0.0
    %3900 = vmatpush1.xpose.msra.mxu0 0.0
    %3901 = vmatprep.subr.mxu0 0.0
    %3902 = vmatpush1.xpose.msra.mxu0 0.0
    %3903 = vmatprep.subr.mxu0 0.0
    %3904 = vmatpush1.xpose.msra.mxu0 0.0
    %3905 = vmatprep.subr.mxu0 0.0
    %3906 = vmatpush1.xpose.msra.mxu0 0.0
    %3907 = vmatprep.subr.mxu0 0.0
    %3908 = vmatpush1.xpose.msra.mxu0 0.0
    %3909 = vmatprep.subr.mxu0 0.0
    %3910 = vmatpush1.xpose.msra.mxu0 0.0
    %3911 = vmatprep.subr.mxu0 0.0
    %3912 = vmatpush1.xpose.msra.mxu0 0.0
    %3913 = vmatprep.subr.mxu0 0.0
    %3914 = vmatpush1.xpose.msra.mxu0 0.0
    %3915 = vmatprep.subr.mxu0 0.0
    %3916 = vmatpush1.xpose.msra.mxu0 0.0
    %3917 = vmatprep.subr.mxu0 0.0
    %3918 = vmatpush1.xpose.msra.mxu0 0.0
    %3919 = vmatprep.subr.mxu0 0.0
    %3920 = vmatpush1.xpose.msra.mxu0 0.0
    %3921 = vmatprep.subr.mxu0 0.0
    %3922 = vmatpush1.xpose.msra.mxu0 0.0
    %3923 = vmatprep.subr.mxu0 0.0
    %3924 = vmatpush1.xpose.msra.mxu0 0.0
    %3925 = vmatprep.subr.mxu0 0.0
    %3926 = vmatpush1.xpose.msra.mxu0 0.0
    %3927 = vmatprep.subr.mxu0 0.0
    %3928 = vmatpush1.xpose.msra.mxu0 0.0
    %3929 = vmatprep.subr.mxu0 0.0
    %3930 = vmatpush1.xpose.msra.mxu0 0.0
    %3931 = vmatprep.subr.mxu0 0.0
    %3932 = vmatpush1.xpose.msra.mxu0 0.0
    %3933 = vmatprep.subr.mxu0 0.0
    %3934 = vmatpush1.xpose.msra.mxu0 0.0
    %3935 = vmatprep.subr.mxu0 0.0
    %3936 = vmatpush1.xpose.msra.mxu0 0.0
    %3937 = vmatprep.subr.mxu0 0.0
    %3938 = vmatpush1.xpose.msra.mxu0 0.0
    %3939 = vmatprep.subr.mxu0 0.0
    %3940 = vmatpush1.xpose.msra.mxu0 0.0
    %3941 = vmatprep.subr.mxu0 0.0
    %3942 = vmatpush1.xpose.msra.mxu0 0.0
    %3943 = vmatprep.subr.mxu0 0.0
    %3944 = vmatpush1.xpose.msra.mxu0 0.0
    %3945 = vmatprep.subr.mxu0 0.0
    %3946 = vmatpush1.xpose.msra.mxu0 0.0
    %3947 = vmatprep.subr.mxu0 0.0
    %3948 = vmatpush1.xpose.msra.mxu0 0.0
    %3949 = vmatprep.subr.mxu0 0.0
    %3950 = vmatpush1.xpose.msra.mxu0 0.0
    %3951 = vmatprep.subr.mxu0 0.0
    %3952 = vmatpush1.xpose.msra.mxu0 0.0
    %3953 = vmatprep.subr.mxu0 0.0
    %3954 = vmatpush1.xpose.msra.mxu0 0.0
    %3955 = vmatprep.subr.mxu0 0.0
    %3956 = vmatpush1.xpose.msra.mxu0 0.0
    %3957 = vmatprep.subr.mxu0 0.0
    %3958 = vmatpush1.xpose.msra.mxu0 0.0
    %3959 = vmatprep.mubr.f32.mxu0 0.0
    %3960 = vmatmul.mubr.f32.gmra.mrb[0].mxu0 %v3891
    %v3961 = vpop.f32.mrb[0].mxu0
    %v3962 = vadd.f32 %v272, %v3961
    %v3963 = vpop.f32.mrb[0].mxu0
    %3964 = vdwg.mxu0
    %v3965 = vsel %vm393, %v3962, -inf
    %3966 = vmax.xlane.f32.xlu0 %v3965
    %v3967 = vpop.xlane.xlu0 %3966
    %v3968 = vsub.f32 %v3962, %v3967
    %v3969 = vmul.f32 %v3968, 1.442695
    %v3970 = vpow.pop %v3969
    %v3971 = vsel %vm393, %v3970, 0.0
    %3972 = vadd.xlane.f32.xlu0 %v3971
    %v3973 = vpop.xlane.xlu0 %3972
    %3974 = vrot.lane.b32.xlu0 %v2403, 40
    %v3975 = vpop.permute.xlu0 %3974
    %v3978 = vsel %vm393, %v3970, 0
    %3980 = vmatprep.subr.mxu0 0.0
    %3981 = vmatpush1.msra.mxu0 %v3975
    %3982 = vmatprep.subr.mxu0 0.0
    %3983 = vmatpush1.msra.mxu0 0.0
    %3984 = vmatprep.subr.mxu0 0.0
    %3985 = vmatpush1.msra.mxu0 0.0
    %3986 = vmatprep.subr.mxu0 0.0
    %3987 = vmatpush1.msra.mxu0 0.0
    %3988 = vmatprep.subr.mxu0 0.0
    %3989 = vmatpush1.msra.mxu0 0.0
    %3990 = vmatprep.subr.mxu0 0.0
    %3991 = vmatpush1.msra.mxu0 0.0
    %3992 = vmatprep.subr.mxu0 0.0
    %3993 = vmatpush1.msra.mxu0 0.0
    %3994 = vmatprep.subr.mxu0 0.0
    %3995 = vmatpush1.msra.mxu0 0.0
    %3996 = vmatprep.subr.mxu0 0.0
    %3997 = vmatpush1.msra.mxu0 0.0
    %3998 = vmatprep.subr.mxu0 0.0
    %3999 = vmatpush1.msra.mxu0 0.0
    %4000 = vmatprep.subr.mxu0 0.0
    %4001 = vmatpush1.msra.mxu0 0.0
    %4002 = vmatprep.subr.mxu0 0.0
    %4003 = vmatpush1.msra.mxu0 0.0
    %4004 = vmatprep.subr.mxu0 0.0
    %4005 = vmatpush1.msra.mxu0 0.0
    %4006 = vmatprep.subr.mxu0 0.0
    %4007 = vmatpush1.msra.mxu0 0.0
    %4008 = vmatprep.subr.mxu0 0.0
    %4009 = vmatpush1.msra.mxu0 0.0
    %4010 = vmatprep.subr.mxu0 0.0
    %4011 = vmatpush1.msra.mxu0 0.0
    %4012 = vmatprep.subr.mxu0 0.0
    %4013 = vmatpush1.msra.mxu0 0.0
    %4014 = vmatprep.subr.mxu0 0.0
    %4015 = vmatpush1.msra.mxu0 0.0
    %4016 = vmatprep.subr.mxu0 0.0
    %4017 = vmatpush1.msra.mxu0 0.0
    %4018 = vmatprep.subr.mxu0 0.0
    %4019 = vmatpush1.msra.mxu0 0.0
    %4020 = vmatprep.subr.mxu0 0.0
    %4021 = vmatpush1.msra.mxu0 0.0
    %4022 = vmatprep.subr.mxu0 0.0
    %4023 = vmatpush1.msra.mxu0 0.0
    %4024 = vmatprep.subr.mxu0 0.0
    %4025 = vmatpush1.msra.mxu0 0.0
    %4026 = vmatprep.subr.mxu0 0.0
    %4027 = vmatpush1.msra.mxu0 0.0
    %4028 = vmatprep.subr.mxu0 0.0
    %4029 = vmatpush1.msra.mxu0 0.0
    %4030 = vmatprep.subr.mxu0 0.0
    %4031 = vmatpush1.msra.mxu0 0.0
    %4032 = vmatprep.subr.mxu0 0.0
    %4033 = vmatpush1.msra.mxu0 0.0
    %4034 = vmatprep.subr.mxu0 0.0
    %4035 = vmatpush1.msra.mxu0 0.0
    %4036 = vmatprep.subr.mxu0 0.0
    %4037 = vmatpush1.msra.mxu0 0.0
    %4038 = vmatprep.subr.mxu0 0.0
    %4039 = vmatpush1.msra.mxu0 0.0
    %4040 = vmatprep.subr.mxu0 0.0
    %4041 = vmatpush1.msra.mxu0 0.0
    %4042 = vmatprep.subr.mxu0 0.0
    %4043 = vmatpush1.msra.mxu0 0.0
    %4044 = vmatprep.mubr.f32.mxu0 0.0
    %4045 = vmatmul.mubr.f32.gmra.mrb[0].mxu0 %v3978
    %v4046 = vpop.f32.mrb[0].mxu0
    %v4047 = vadd.f32 0.0, %v4046
    %v4048 = vpop.f32.mrb[0].mxu0
    %4049 = vdwg.mxu0
    %v4050 = vrcp.pop %v3973
    %v4051 = vmul.f32 %v4047, %v4050
    %v4052 = vpack.c.bf16 %v4051, %v4051
    %v4054 = vsel %vm393, %v4052, 0
    %4056 = vmatprep.subr.bf16.mxu0 0
    %4057 = vmatpush1.bf16.msra.mxu0 %v3217
    %4058 = vmatprep.subr.bf16.mxu0 0
    %4059 = vmatpush1.bf16.msra.mxu0 0
    %4060 = vmatprep.subr.bf16.mxu0 0
    %4061 = vmatpush1.bf16.msra.mxu0 0
    %4062 = vmatprep.subr.bf16.mxu0 0
    %4063 = vmatpush1.bf16.msra.mxu0 0
    %4064 = vmatprep.subr.bf16.mxu0 0
    %4065 = vmatpush1.bf16.msra.mxu0 0
    %4066 = vmatprep.subr.bf16.mxu0 0
    %4067 = vmatpush1.bf16.msra.mxu0 0
    %4068 = vmatprep.subr.bf16.mxu0 0
    %4069 = vmatpush1.bf16.msra.mxu0 0
    %4070 = vmatprep.subr.bf16.mxu0 0
    %4071 = vmatpush1.bf16.msra.mxu0 0
    %4072 = vmatprep.subr.bf16.mxu0 0
    %4073 = vmatpush1.bf16.msra.mxu0 0
    %4074 = vmatprep.subr.bf16.mxu0 0
    %4075 = vmatpush1.bf16.msra.mxu0 0
    %4076 = vmatprep.subr.bf16.mxu0 0
    %4077 = vmatpush1.bf16.msra.mxu0 0
    %4078 = vmatprep.subr.bf16.mxu0 0
    %4079 = vmatpush1.bf16.msra.mxu0 0
    %4080 = vmatprep.subr.bf16.mxu0 0
    %4081 = vmatpush1.bf16.msra.mxu0 0
    %4082 = vmatprep.subr.bf16.mxu0 0
    %4083 = vmatpush1.bf16.msra.mxu0 0
    %4084 = vmatprep.subr.bf16.mxu0 0
    %4085 = vmatpush1.bf16.msra.mxu0 0
    %4086 = vmatprep.subr.bf16.mxu0 0
    %4087 = vmatpush1.bf16.msra.mxu0 0
    %4088 = vmatprep.mubr.bf16.mxu0 0
    %4089 = vmatmul.mubr.bf16.gmra.mrb[0].mxu0 %v4054
    %v4090 = vpop.f32.mrb[0].mxu0
    %v4091 = vadd.f32 0.0, %v4090
    %v4092 = vpop.f32.mrb[0].mxu0
    %v4093 = vpop.f32.mrb[0].mxu0
    %v4094 = vpop.f32.mrb[0].mxu0
    %4095 = vdwg.mxu0
    %v4096 = vadd.f32 %v3886, %v4091
    %v4097 = vadd.f32 %v2288, %v3259
    %v4098 = vadd.f32 %v2289, %v4096
    %s4099 = scalar_lea.vmem [#allocation10], 1
    %v4100 = vld [vmem:[%s4099] sm:$0x1]
    %v4102 = vlaneseq
    %v4103 = vshrl.u32 %v4102, 7
    %v4104 = vsub.s32 0, %v4103
    %v4105 = vrot.slane %v4100, %v4104
    %v4107 = vadd.f32 %v4097, %v4105
    %v4108 = vadd.f32 %v4098, %v4105
    %s4109 = scalar_lea.vmem %s9, 1
    %v4110 = vld [vmem:[%s4109] sm:$0x1]
    %s4111 = scalar_lea.vmem [#allocation11], 1
    %v4112 = vld [vmem:[%s4111] sm:$0x1]
    %v4113 = vsel %vm184, %v4107, 0.0
    %4114 = vadd.xlane.f32.xlu0 %v4113
    %v4115 = vpop.xlane.xlu0 %4114
    %v4116 = vsel %vm184, %v4108, 0.0
    %4117 = vadd.xlane.f32.xlu0 %v4116
    %v4118 = vpop.xlane.xlu0 %4117
    %v4119 = vmul.f32 %v4115, %v281
    %v4120 = vmul.f32 %v4118, %v281
    %v4121 = vsub.f32 %v4107, %v4119
    %v4122 = vsub.f32 %v4108, %v4120
    %v4123 = vmul.f32 %v4121, %v4121
    %v4124 = vmul.f32 %v4122, %v4122
    %v4125 = vsel %vm184, %v4123, 0.0
    %4126 = vadd.xlane.f32.xlu0 %v4125
    %v4127 = vpop.xlane.xlu0 %4126
    %v4128 = vsel %vm184, %v4124, 0.0
    %4129 = vadd.xlane.f32.xlu0 %v4128
    %v4130 = vpop.xlane.xlu0 %4129
    %v4131 = vmul.f32 %v4127, %v281
    %v4132 = vmul.f32 %v4130, %v281
    %v4133 = vadd.f32 %v4131, 1e-05
    %v4134 = vadd.f32 %v4132, 1e-05
    %v4135 = vrsqrt.pop %v4133
    %v4136 = vrsqrt.pop %v4134
    %v4137 = vmul.f32 %v4121, %v4135
    %v4138 = vmul.f32 %v4122, %v4136
    %v4140 = vlaneseq
    %v4141 = vshrl.u32 %v4140, 7
    %v4142 = vsub.s32 0, %v4141
    %v4143 = vrot.slane %v4110, %v4142
    %v4145 = vmul.f32 %v4137, %v4143
    %v4146 = vmul.f32 %v4138, %v4143
    %v4148 = vlaneseq
    %v4149 = vshrl.u32 %v4148, 7
    %v4150 = vsub.s32 0, %v4149
    %v4151 = vrot.slane %v4112, %v4150
    %v4153 = vadd.f32 %v4145, %v4151
    %v4154 = vadd.f32 %v4146, %v4151
    %v4155 = vpack.c.bf16 %v4154, %v4153
    %s4156 = scalar_lea.vmem %s11, 16
    %v4157 = vld [vmem:[%s4156] sm:$0xf]
    %v4158 = vld [vmem:[%s4156 + $0x4] sm:$0xf]
    %v4159 = vld [vmem:[%s4156 + $0x8] sm:$0xf]
    %v4160 = vld [vmem:[%s4156 + $0xc] sm:$0xf]
    %s4161 = scalar_lea.vmem [#allocation13], 1
    %v4162 = vld [vmem:[%s4161] sm:$0x1]
    %v4164 = vlaneseq
    %v4165 = vshrl.u32 %v4164, 7
    %v4166 = vsub.s32 0, %v4165
    %v4167 = vrot.slane %v4162, %v4166
    %v4173 = vunpack.c.l.b16 %v4157
    %v4174 = vunpack.c.l.b16 %v4158
    %v4175 = vunpack.c.l.b16 %v4159
    %v4176 = vunpack.c.l.b16 %v4160
    %v4177 = vpack.c.b16 %v4174, %v4173
    %v4178 = vpack.c.b16 %v4176, %v4175
    %v4182 = vsel %vm184, %v4155, 0
    %4184 = vmatprep.subr.bf16.mxu0 0
    %4185 = vmatpush1.bf16.msra.mxu0 %v4177
    %4186 = vmatprep.subr.bf16.mxu0 0
    %4187 = vmatpush1.bf16.msra.mxu0 %v4178
    %4188 = vmatprep.subr.bf16.mxu0 0
    %4189 = vmatpush1.bf16.msra.mxu0 0
    %4190 = vmatprep.subr.bf16.mxu0 0
    %4191 = vmatpush1.bf16.msra.mxu0 0
    %4192 = vmatprep.subr.bf16.mxu0 0
    %4193 = vmatpush1.bf16.msra.mxu0 0
    %4194 = vmatprep.subr.bf16.mxu0 0
    %4195 = vmatpush1.bf16.msra.mxu0 0
    %4196 = vmatprep.subr.bf16.mxu0 0
    %4197 = vmatpush1.bf16.msra.mxu0 0
    %4198 = vmatprep.subr.bf16.mxu0 0
    %4199 = vmatpush1.bf16.msra.mxu0 0
    %4200 = vmatprep.subr.bf16.mxu0 0
    %4201 = vmatpush1.bf16.msra.mxu0 0
    %4202 = vmatprep.subr.bf16.mxu0 0
    %4203 = vmatpush1.bf16.msra.mxu0 0
    %4204 = vmatprep.subr.bf16.mxu0 0
    %4205 = vmatpush1.bf16.msra.mxu0 0
    %4206 = vmatprep.subr.bf16.mxu0 0
    %4207 = vmatpush1.bf16.msra.mxu0 0
    %4208 = vmatprep.subr.bf16.mxu0 0
    %4209 = vmatpush1.bf16.msra.mxu0 0
    %4210 = vmatprep.subr.bf16.mxu0 0
    %4211 = vmatpush1.bf16.msra.mxu0 0
    %4212 = vmatprep.subr.bf16.mxu0 0
    %4213 = vmatpush1.bf16.msra.mxu0 0
    %4214 = vmatprep.subr.bf16.mxu0 0
    %4215 = vmatpush1.bf16.msra.mxu0 0
    %4216 = vmatprep.mubr.bf16.mxu0 0
    %4217 = vmatmul.mubr.bf16.gmra.mrb[0].mxu0 %v4182
    %v4218 = vpop.f32.mrb[0].mxu0
    %v4219 = vadd.f32 %v4167, %v4218
    %v4220 = vpop.f32.mrb[0].mxu0
    %v4221 = vpop.f32.mrb[0].mxu0
    %v4222 = vadd.f32 %v4167, %v4221
    %v4223 = vpop.f32.mrb[0].mxu0
    %4224 = vdwg.mxu0
    %v4225 = vmax.f32 %v4219, 0.0
    %v4226 = vmax.f32 %v4222, 0.0
    %v4227 = vpack.c.bf16 %v4226, %v4225
    %s4228 = scalar_lea.vmem %s13, 32
    %v4229 = vld [vmem:[%s4228] sm:$0xf]
    %v4230 = vld [vmem:[%s4228 + $0x4] sm:$0xf]
    %v4231 = vld [vmem:[%s4228 + $0x8] sm:$0xf]
    %v4232 = vld [vmem:[%s4228 + $0xc] sm:$0xf]
    %v4233 = vld [vmem:[%s4228 + $0x10] sm:$0xf]
    %v4234 = vld [vmem:[%s4228 + $0x14] sm:$0xf]
    %v4235 = vld [vmem:[%s4228 + $0x18] sm:$0xf]
    %v4236 = vld [vmem:[%s4228 + $0x1c] sm:$0xf]
    %s4237 = scalar_lea.vmem %s14, 1
    %v4238 = vld [vmem:[%s4237] sm:$0x1]
    %v4240 = vlaneseq
    %v4241 = vshrl.u32 %v4240, 7
    %v4242 = vsub.s32 0, %v4241
    %v4243 = vrot.slane %v4238, %v4242
    %v4253 = vunpack.c.l.b16 %v4229
    %v4254 = vunpack.c.l.b16 %v4230
    %v4255 = vunpack.c.l.b16 %v4231
    %v4256 = vunpack.c.l.b16 %v4232
    %v4257 = vunpack.c.l.b16 %v4233
    %v4258 = vunpack.c.l.b16 %v4234
    %v4259 = vunpack.c.l.b16 %v4235
    %v4260 = vunpack.c.l.b16 %v4236
    %v4261 = vpack.c.b16 %v4254, %v4253
    %v4262 = vpack.c.b16 %v4256, %v4255
    %v4263 = vpack.c.b16 %v4258, %v4257
    %v4264 = vpack.c.b16 %v4260, %v4259
    %v4270 = vsel %vm2243, %v4227, 0
    %4272 = vmatprep.subr.bf16.mxu0 0
    %4273 = vmatpush1.bf16.msra.mxu0 %v4261
    %4274 = vmatprep.subr.bf16.mxu0 0
    %4275 = vmatpush1.bf16.msra.mxu0 %v4262
    %4276 = vmatprep.subr.bf16.mxu0 0
    %4277 = vmatpush1.bf16.msra.mxu0 %v4263
    %4278 = vmatprep.subr.bf16.mxu0 0
    %4279 = vmatpush1.bf16.msra.mxu0 %v4264
    %4280 = vmatprep.subr.bf16.mxu0 0
    %4281 = vmatpush1.bf16.msra.mxu0 0
    %4282 = vmatprep.subr.bf16.mxu0 0
    %4283 = vmatpush1.bf16.msra.mxu0 0
    %4284 = vmatprep.subr.bf16.mxu0 0
    %4285 = vmatpush1.bf16.msra.mxu0 0
    %4286 = vmatprep.subr.bf16.mxu0 0
    %4287 = vmatpush1.bf16.msra.mxu0 0
    %4288 = vmatprep.subr.bf16.mxu0 0
    %4289 = vmatpush1.bf16.msra.mxu0 0
    %4290 = vmatprep.subr.bf16.mxu0 0
    %4291 = vmatpush1.bf16.msra.mxu0 0
    %4292 = vmatprep.subr.bf16.mxu0 0
    %4293 = vmatpush1.bf16.msra.mxu0 0
    %4294 = vmatprep.subr.bf16.mxu0 0
    %4295 = vmatpush1.bf16.msra.mxu0 0
    %4296 = vmatprep.subr.bf16.mxu0 0
    %4297 = vmatpush1.bf16.msra.mxu0 0
    %4298 = vmatprep.subr.bf16.mxu0 0
    %4299 = vmatpush1.bf16.msra.mxu0 0
    %4300 = vmatprep.subr.bf16.mxu0 0
    %4301 = vmatpush1.bf16.msra.mxu0 0
    %4302 = vmatprep.subr.bf16.mxu0 0
    %4303 = vmatpush1.bf16.msra.mxu0 0
    %4304 = vmatprep.mubr.bf16.mxu0 0
    %4305 = vmatmul.mubr.bf16.gmra.mrb[0].mxu0 %v4270
    %v4306 = vpop.f32.mrb[0].mxu0
    %v4307 = vadd.f32 %v4243, %v4306
    %v4308 = vpop.f32.mrb[0].mxu0
    %v4309 = vpop.f32.mrb[0].mxu0
    %v4310 = vadd.f32 %v4243, %v4309
    %v4311 = vpop.f32.mrb[0].mxu0
    %4312 = vdwg.mxu0
    %v4313 = vadd.f32 %v4107, %v4307
    %v4314 = vadd.f32 %v4108, %v4310
    %v4315 = vld [vmem:[%s15] sm:$0x1]
    %v4316 = vld [vmem:[%s16] sm:$0x1]
    %v4317 = vsel %vm184, %v4313, 0.0
    %4318 = vadd.xlane.f32.xlu0 %v4317
    %v4319 = vpop.xlane.xlu0 %4318
    %v4320 = vsel %vm184, %v4314, 0.0
    %4321 = vadd.xlane.f32.xlu0 %v4320
    %v4322 = vpop.xlane.xlu0 %4321
    %v4323 = vmul.f32 %v4319, %v281
    %v4324 = vmul.f32 %v4322, %v281
    %v4325 = vsub.f32 %v4313, %v4323
    %v4326 = vsub.f32 %v4314, %v4324
    %v4327 = vmul.f32 %v4325, %v4325
    %v4328 = vmul.f32 %v4326, %v4326
    %v4329 = vsel %vm184, %v4327, 0.0
    %4330 = vadd.xlane.f32.xlu0 %v4329
    %v4331 = vpop.xlane.xlu0 %4330
    %v4332 = vsel %vm184, %v4328, 0.0
    %4333 = vadd.xlane.f32.xlu0 %v4332
    %v4334 = vpop.xlane.xlu0 %4333
    %v4335 = vmul.f32 %v4331, %v281
    %v4336 = vmul.f32 %v4334, %v281
    %v4337 = vadd.f32 %v4335, 1e-05
    %v4338 = vadd.f32 %v4336, 1e-05
    %v4339 = vrsqrt.pop %v4337
    %v4340 = vrsqrt.pop %v4338
    %v4341 = vmul.f32 %v4325, %v4339
    %v4342 = vmul.f32 %v4326, %v4340
    %v4344 = vlaneseq
    %v4345 = vshrl.u32 %v4344, 7
    %v4346 = vsub.s32 0, %v4345
    %v4347 = vrot.slane %v4315, %v4346
    %v4349 = vmul.f32 %v4341, %v4347
    %v4350 = vmul.f32 %v4342, %v4347
    %v4352 = vlaneseq
    %v4353 = vshrl.u32 %v4352, 7
    %v4354 = vsub.s32 0, %v4353
    %v4355 = vrot.slane %v4316, %v4354
    %v4357 = vadd.f32 %v4349, %v4355
    %v4358 = vadd.f32 %v4350, %v4355
    %v4359 = vpack.c.bf16 %v4358, %v4357
    %v4360 = vld [vmem:[%s17] sm:$0xf]
    %v4361 = vld [vmem:[%s17 + $0x4] sm:$0xf]
    %v4362 = vld [vmem:[%s17 + $0x8] sm:$0xf]
    %v4363 = vld [vmem:[%s17 + $0xc] sm:$0xf]
    %v4364 = vld [vmem:[%s18] sm:$0x1]
    %v4366 = vlaneseq
    %v4367 = vshrl.u32 %v4366, 7
    %v4368 = vsub.s32 0, %v4367
    %v4369 = vrot.slane %v4364, %v4368
    %v4375 = vunpack.c.l.b16 %v4360
    %v4376 = vunpack.c.l.b16 %v4361
    %v4377 = vunpack.c.l.b16 %v4362
    %v4378 = vunpack.c.l.b16 %v4363
    %v4379 = vpack.c.b16 %v4376, %v4375
    %v4380 = vpack.c.b16 %v4378, %v4377
    %v4384 = vsel %vm184, %v4359, 0
    %4386 = vmatprep.subr.bf16.mxu0 0
    %4387 = vmatpush1.bf16.msra.mxu0 %v4379
    %4388 = vmatprep.subr.bf16.mxu0 0
    %4389 = vmatpush1.bf16.msra.mxu0 %v4380
    %4390 = vmatprep.subr.bf16.mxu0 0
    %4391 = vmatpush1.bf16.msra.mxu0 0
    %4392 = vmatprep.subr.bf16.mxu0 0
    %4393 = vmatpush1.bf16.msra.mxu0 0
    %4394 = vmatprep.subr.bf16.mxu0 0
    %4395 = vmatpush1.bf16.msra.mxu0 0
    %4396 = vmatprep.subr.bf16.mxu0 0
    %4397 = vmatpush1.bf16.msra.mxu0 0
    %4398 = vmatprep.subr.bf16.mxu0 0
    %4399 = vmatpush1.bf16.msra.mxu0 0
    %4400 = vmatprep.subr.bf16.mxu0 0
    %4401 = vmatpush1.bf16.msra.mxu0 0
    %4402 = vmatprep.subr.bf16.mxu0 0
    %4403 = vmatpush1.bf16.msra.mxu0 0
    %4404 = vmatprep.subr.bf16.mxu0 0
    %4405 = vmatpush1.bf16.msra.mxu0 0
    %4406 = vmatprep.subr.bf16.mxu0 0
    %4407 = vmatpush1.bf16.msra.mxu0 0
    %4408 = vmatprep.subr.bf16.mxu0 0
    %4409 = vmatpush1.bf16.msra.mxu0 0
    %4410 = vmatprep.subr.bf16.mxu0 0
    %4411 = vmatpush1.bf16.msra.mxu0 0
    %4412 = vmatprep.subr.bf16.mxu0 0
    %4413 = vmatpush1.bf16.msra.mxu0 0
    %4414 = vmatprep.subr.bf16.mxu0 0
    %4415 = vmatpush1.bf16.msra.mxu0 0
    %4416 = vmatprep.subr.bf16.mxu0 0
    %4417 = vmatpush1.bf16.msra.mxu0 0
    %4418 = vmatprep.mubr.bf16.mxu0 0
    %4419 = vmatmul.mubr.bf16.gmra.mrb[0].mxu0 %v4384
    %v4420 = vpop.f32.mrb[0].mxu0
    %v4421 = vadd.f32 %v4369, %v4420
    %v4422 = vpop.f32.mrb[0].mxu0
    %v4423 = vpop.f32.mrb[0].mxu0
    %v4424 = vadd.f32 %v4369, %v4423
    %v4425 = vpop.f32.mrb[0].mxu0
    %4426 = vdwg.mxu0
    %4427 = vst [vmem:[#allocation14] sm:$0xff] %v4421
    %4428 = vst [vmem:[#allocation14 + $0x8] sm:$0xff] %v4424
    %4429 = vmax.xlane.f32.xlu0 %v4421
    %v4430 = vpop.xlane.xlu0 %4429
    %4431 = vmax.xlane.f32.xlu0 %v4424
    %v4432 = vpop.xlane.xlu0 %4431
    %v4433 = vsub.f32 %v4421, %v4430
    %v4434 = vsub.f32 %v4424, %v4432
    %v4435 = vmul.f32 %v4433, 1.442695
    %v4436 = vpow.pop %v4435
    %v4437 = vmul.f32 %v4434, 1.442695
    %v4438 = vpow.pop %v4437
    %4439 = vadd.xlane.f32.xlu0 %v4436
    %v4440 = vpop.xlane.xlu0 %4439
    %4441 = vadd.xlane.f32.xlu0 %v4438
    %v4442 = vpop.xlane.xlu0 %4441
    %v4443 = vlog2.pop %v4440
    %v4444 = vmul.f32 %v4443, 0.6931472
    %v4445 = vlog2.pop %v4442
    %v4446 = vmul.f32 %v4445, 0.6931472
    %v4447 = vadd.f32 %v4444, %v4430
    %v4448 = vadd.f32 %v4446, %v4432
    %v4449 = vld [vmem:[%s19] sm:$0xff]
    %v4450 = vld [vmem:[%s19 + $0x8] sm:$0xff]
    %4451 = vset.pattern.permute.xlu0 0
    %4452 = vperm.xlu0 %4451, %v4449
    %v4453 = vpop.permute.xlu0 %4452
    %4454 = vset.pattern.permute.xlu0 0
    %4455 = vperm.xlu0 %4454, %v4450
    %v4456 = vpop.permute.xlu0 %4455
    %vm4457 = vcmp.eq.s32.totalorder %v164, %v4453
    %vm4458 = vcmp.eq.s32.totalorder %v164, %v4456
    %v4459 = vsel %vm4457, 1, 0
    %v4460 = vsel %vm4458, 1, 0
    %v4461 = vcvt.s32.f32 %v4459
    %v4462 = vcvt.s32.f32 %v4460
    %v4463 = vmul.f32 %v4421, %v4461
    %v4464 = vmul.f32 %v4424, %v4462
    %4465 = vadd.xlane.f32.xlu0 %v4463
    %v4466 = vpop.xlane.xlu0 %4465
    %4467 = vadd.xlane.f32.xlu0 %v4464
    %v4468 = vpop.xlane.xlu0 %4467
    %v4469 = vsub.f32 %v4447, %v4466
    %v4470 = vsub.f32 %v4448, %v4468
    %vm4471 = vcmask 7168
    %v4472 = vsel %vm4471, %v4469, 0.0
    %v4473 = vsel %vm4471, %v4470, 0.0
    %v4474 = vadd.f32 %v4472, %v4473
    %4475 = vadd.xlane.f32.xlu0 %v4474
    %v4476 = vpop.xlane.xlu0 %4475
    %v4477 = vrot.slane %v4476, 4
    %v4478 = vadd.f32 %v4476, %v4477
    %v4479 = vrot.slane %v4478, 2
    %v4480 = vadd.f32 %v4478, %v4479
    %v4481 = vrot.slane %v4480, 1
    %v4482 = vadd.f32 %v4480, %v4481
    %s4483 = vtos %v4482
    %v4484 = vstv %s4483
    %vm4485 = vcmask 0
    %4486 = vst.msk [vmem:[#allocation15] sm:$0x1] %vm4485, %v4484
    // Predicated region
    $region110: #{tpu_custom_call.1} parent=1 // pred_check
      _
    $region111: #{tpu_custom_call.1} parent=1 // pred_check_branch
      %4488 = sbr.rel (0) target = $region113
    $region112: #{tpu_custom_call.1} parent=1 // pred_region
      %s4490 = ssub.s32 256, 256
      %4491 = vsyncadd [#allocation4], %s4490
      %s4492 = sshll.u32 [#allocation14], 4
      %s4493 = int_to_ptr.vmem [resolvable:$true] %s4492
      %4498 = dma.vmem_to_hbm [thread:$0]  %s4493, 256, %s20, [#allocation4], 128, 128, 8
    $region113: #{tpu_custom_call.1} parent=1 // pred_fallthru
      _
    // Predicated region
    $region114: #{tpu_custom_call.1} parent=1 // pred_check
      _
    $region115: #{tpu_custom_call.1} parent=1 // pred_check_branch
      %4500 = sbr.rel (0) target = $region117
    $region116: #{tpu_custom_call.1} parent=1 // pred_region
      %s4502 = ssub.s32 16, 16
      %4503 = vsyncadd [#allocation16], %s4502
      %s4505 = sshll.u32 [#allocation15], 4
      %s4506 = int_to_ptr.vmem [resolvable:$true] %s4505
      %4508 = dma.vmem_to_hbm [thread:$0]  %s4506, 16, %s21, [#allocation16]
    $region117: #{tpu_custom_call.1} parent=1 // pred_fallthru
      _
    // Predicated region
    $region118: #{tpu_custom_call.1} parent=1 // pred_check
      _
    $region119: #{tpu_custom_call.1} parent=1 // pred_check_branch
      %4510 = sbr.rel (0) target = $region121
    $region120: #{tpu_custom_call.1} parent=1 // pred_region
      %4511 = dma.done [#allocation4], 256
    $region121: #{tpu_custom_call.1} parent=1 // pred_fallthru
      _
    // Predicated region
    $region122: #{tpu_custom_call.1} parent=1 // pred_check
      _
    $region123: #{tpu_custom_call.1} parent=1 // pred_check_branch
      %4513 = sbr.rel (0) target = $region125
    $region124: #{tpu_custom_call.1} parent=1 // pred_region
      %4514 = dma.done [#allocation16], 16
    $region125: #{tpu_custom_call.1} parent=1 // pred_fallthru
      _
    %4515 = vsyncpa [#allocation3], 1
    %4516 = vsyncpa [#allocation6], 1
    %4517 = vsyncpa [#allocation9], 1
    %4518 = vsyncpa [#allocation12], 1
    %4519 = vsyncpa [#allocation4], 1
    %4520 = vsyncpa [#allocation16], 1

</llo_original>
